<compile_context>
chip_gen: v7x
topology: tpu7x:2x2x1
jax: 0.10.0
libtpu: 0.0.40
codegen_flags: <defaults>
</compile_context>

<pallas_src>
import math
import functools

import jax
import jax.numpy as jnp
from jax import lax
from jax.experimental import pallas as pl
from jax.experimental.pallas import tpu as pltpu

VMEM = pltpu.MemorySpace.VMEM
FIX_LEN = 66          # self.fix_len
MAX_TARGET_LEN = 60   # length_module output size
PE_MAX_LEN = 500      # PositionalEncoding max_len


# ----------------------------------------------------------------------------- kernels

def _tag_pool_kernel(h_ref, m_ref, o_ref):
    # mean_pooling over the (injected) tag-encoder outputs: [Nt, Ts, D], [Nt, Ts] -> [Nt, D]
    h = h_ref[...]
    m = m_ref[...]
    me = m[:, :, None]
    num = jnp.sum(h * me, axis=1)
    den = jnp.maximum(jnp.sum(me, axis=1), 1e-9)
    o_ref[...] = num / den


def _fused_decoder_kernel(*refs, nhead, fix_len, scale_emb, eps):
    (tcol_ref, tkeep_ref, mkeep_ref, enc_ref,
     emb_ref, pe_ref, tagT_ref,
     wqkv_s_ref, bqkv_s_ref, wo_s_ref, bo_s_ref,
     wq_c_ref, bq_c_ref, wkv_c_ref, bkv_c_ref, wo_c_ref, bo_c_ref,
     ln1g_ref, ln1b_ref, ln2g_ref, ln2b_ref, ln3g_ref, ln3b_ref,
     wff1_ref, bff1_ref, wff2_ref, bff2_ref,
     lenw_ref, lenb_ref,
     scores_ref, part_ref) = refs

    f32 = jnp.float32
    bf16 = jnp.bfloat16

    T = tcol_ref.shape[1]
    S = enc_ref.shape[1]
    D = enc_ref.shape[2]
    Nt = tagT_ref.shape[1]
    hd = D // nhead
    scale_attn = 1.0 / math.sqrt(hd)

    tcol = tcol_ref[0]          # [T, 1] int32 target ids (labels)
    tkeep = tkeep_ref[0]        # [1, T]  1.0 = real target token
    mkeep = mkeep_ref[0]        # [1, S]  1.0 = real source token
    enc = enc_ref[0]            # [S, D] bf16 (matmul operand everywhere)

    # ---- decoder embedding (vocab=2, padding_idx=0) * sqrt(D) + positional encoding ----
    x = jnp.where(tcol > 0, emb_ref[1:2, :], emb_ref[0:1, :]) * scale_emb + pe_ref[...]  # [T, D]

    def layer_norm(v, g_ref, b_ref):
        mu = jnp.mean(v, axis=-1, keepdims=True)
        c = v - mu
        var = jnp.mean(c * c, axis=-1, keepdims=True)
        return c * lax.rsqrt(var + eps) * g_ref[...] + b_ref[...]

    def attend(q, k, v, keep_row, wo_ref, bo_ref):
        # q: [Tq, D] (already scaled by 1/sqrt(hd)), k/v: [Tk, D] f32; keep_row: [1, Tk].
        # Per-head softmax(q_h k_h^T + bias) v_h written to a bf16 concat buffer; ONE
        # [Tq, D] @ [D, D] output projection after the loop (full-K MXU utilization).
        bias = (keep_row - 1.0) * 1e30                      # 0 = keep, -1e30 = masked key
        ctx_heads = []
        for h in range(nhead):
            lo = h * hd
            qh = q[:, lo:lo + hd].astype(bf16)
            kh = k[:, lo:lo + hd].astype(bf16)
            vh = v[:, lo:lo + hd].astype(bf16)
            s = lax.dot_general(qh, kh, (((1,), (1,)), ((), ())),
                                preferred_element_type=f32) + bias      # [Tq, Tk]
            s = s - jnp.max(s, axis=-1, keepdims=True)
            p = jnp.exp(s)
            p = p * pl.reciprocal(jnp.sum(p, axis=-1, keepdims=True), approx=True)
            ctx_heads.append(jnp.dot(p.astype(bf16), vh,
                                     preferred_element_type=f32).astype(bf16))
        ctx = jnp.concatenate(ctx_heads, axis=1)                         # [Tq, D] bf16
        return jnp.dot(ctx, wo_ref[...], preferred_element_type=f32) + bo_ref[...]

    # ---- self attention (post-norm residual) --------------------------------------------
    qkv = jnp.dot(x.astype(bf16), wqkv_s_ref[...], preferred_element_type=f32) + bqkv_s_ref[...]
    q = qkv[:, 0:D] * scale_attn
    k = qkv[:, D:2 * D]
    v = qkv[:, 2 * D:3 * D]
    sa = attend(q, k, v, tkeep, wo_s_ref, bo_s_ref)
    x = layer_norm(x + sa, ln1g_ref, ln1b_ref)

    # ---- cross attention ------------------------------------------------------------------
    qc = (jnp.dot(x.astype(bf16), wq_c_ref[...], preferred_element_type=f32)
          + bq_c_ref[...]) * scale_attn
    kv = jnp.dot(enc, wkv_c_ref[...], preferred_element_type=f32) + bkv_c_ref[...]
    kc = kv[:, 0:D]
    vc = kv[:, D:2 * D]
    ca = attend(qc, kc, vc, mkeep, wo_c_ref, bo_c_ref)
    x = layer_norm(x + ca, ln2g_ref, ln2b_ref)

    # ---- feed forward (relu), hidden kept in bf16 --------------------------------------------
    h1 = jnp.maximum(jnp.dot(x.astype(bf16), wff1_ref[...], preferred_element_type=f32)
                     + bff1_ref[...], 0.0).astype(bf16)                            # [T, F] bf16
    ff = jnp.dot(h1, wff2_ref[...], preferred_element_type=f32) + bff2_ref[...]
    dec = layer_norm(x + ff, ln3g_ref, ln3b_ref)                                   # [T, D]

    # ---- pointer / tag scores ----------------------------------------------------------------
    decb = dec.astype(bf16)
    src_s = lax.dot_general(decb, enc, (((1,), (1,)), ((), ())),
                            preferred_element_type=f32) * mkeep                    # [T, S]
    tag_s = jnp.dot(decb, tagT_ref[...], preferred_element_type=f32)               # [T, Nt]

    # lane-aligned score slab [src | tag | 0-pad], one dense 128-wide store; the module's
    # column placement (2 .. 2+S, fix_len .. fix_len+Nt) is restored in the wrapper.
    v_slab = scores_ref.shape[2]
    pieces = [src_s, tag_s]
    if v_slab - S - Nt > 0:
        pieces.append(jnp.zeros((T, v_slab - S - Nt), f32))
    scores_ref[...] = jnp.concatenate(pieces, axis=1)[None, :, :]

    # ---- label cross entropy (ignore_index=0), partial sums over this batch row --------------
    n_zero = float(fix_len - S)   # columns whose logit is exactly 0 (cols 0,1 and the fix pad)
    m_row = jnp.maximum(jnp.maximum(jnp.max(src_s, axis=1, keepdims=True),
                                    jnp.max(tag_s, axis=1, keepdims=True)), 0.0)    # [T, 1]
    sum_exp = (n_zero * jnp.exp(-m_row)
               + jnp.sum(jnp.exp(src_s - m_row), axis=1, keepdims=True)
               + jnp.sum(jnp.exp(tag_s - m_row), axis=1, keepdims=True))
    lse = m_row + jnp.log(sum_exp)                                                   # [T, 1]
    src_col = lax.broadcasted_iota(jnp.int32, (T, S), 1)
    tag_col = lax.broadcasted_iota(jnp.int32, (T, Nt), 1)
    picked = (jnp.sum(jnp.where(src_col == (tcol - 2), src_s, 0.0), axis=1, keepdims=True)
              + jnp.sum(jnp.where(tag_col == (tcol - fix_len), tag_s, 0.0),
                        axis=1, keepdims=True))
    valid = (tcol != 0).astype(f32)                                                  # [T, 1]
    label_num = jnp.sum((lse - picked) * valid)
    label_den = jnp.sum(valid)

    # ---- encoder mean pooling (1xS @ SxD matmul) + length head + its cross entropy ------------
    den = jnp.maximum(jnp.sum(mkeep), 1e-9)
    pooled = jnp.dot(mkeep.astype(bf16), enc, preferred_element_type=f32) / den      # [1, D]
    len_logits = (jnp.dot(pooled.astype(bf16), lenw_ref[...], preferred_element_type=f32)
                  + lenb_ref[...])                                                   # [1, L]
    gold_len = jnp.sum((tcol > 0).astype(jnp.int32))
    mx = jnp.max(len_logits)
    lse_len = mx + jnp.log(jnp.sum(jnp.exp(len_logits - mx)))
    len_cols = lax.broadcasted_iota(jnp.int32, len_logits.shape, 1)
    picked_len = jnp.sum(jnp.where(len_cols == gold_len, len_logits, 0.0))
    len_valid = (gold_len != 0).astype(f32)
    len_num = (lse_len - picked_len) * len_valid
    len_den = len_valid

    lane = lax.broadcasted_iota(jnp.int32, (1, part_ref.shape[2]), 1)
    pvec = (jnp.where(lane == 0, label_num, 0.0)
            + jnp.where(lane == 1, label_den, 0.0)
            + jnp.where(lane == 2, len_num, 0.0)
            + jnp.where(lane == 3, len_den, 0.0))
    part_ref[...] = pvec[None, :, :]


# ----------------------------------------------------------------------------- wrappers

def tag_mean_pool(tag_hidden, tag_mask):
    Nt, Ts, D = tag_hidden.shape
    return pl.pallas_call(
        _tag_pool_kernel,
        out_shape=jax.ShapeDtypeStruct((Nt, D), jnp.float32),
        in_specs=[pl.BlockSpec(memory_space=VMEM)] * 2,
        out_specs=pl.BlockSpec(memory_space=VMEM),
    )(tag_hidden.astype(jnp.float32), tag_mask.astype(jnp.float32))


def positional_encoding(seq_len, d_model):
    pos = jnp.arange(seq_len, dtype=jnp.float32)[:, None]
    div = jnp.exp(jnp.arange(0, d_model, 2, dtype=jnp.float32) *
                  (-math.log(10000.0) / d_model))
    pe = jnp.zeros((seq_len, d_model), jnp.float32)
    pe = pe.at[:, 0::2].set(jnp.sin(pos * div))
    pe = pe.at[:, 1::2].set(jnp.cos(pos * div))
    return pe


def custom_seq2seq_forward(params, enc_hidden, attn_mask, target, tag_hidden, tag_mask,
                           *, nhead, fix_len=FIX_LEN):
    """Training-branch forward of CustomSeq2Seq. Returns (loss, final_scores)."""
    B, S, D = enc_hidden.shape
    T = target.shape[1]
    assert S + 2 <= fix_len, "source length must fit in the pointer region"

    # tag embeddings = mean pooling of (injected) tag-encoder outputs
    tag_emb = tag_mean_pool(tag_hidden, tag_mask)                 # [Nt, D]
    Nt = tag_emb.shape[0]
    tag_t = tag_emb.T.astype(jnp.bfloat16)                        # [D, Nt] ([K,N] for the MXU)
    V = fix_len + Nt
    v_slab = max(128, ((S + Nt + 127) // 128) * 128)              # lane-dense kernel slab

    pe = params["pe"][:T]                                         # [T, D]
    tgt_col = target.reshape(B, T, 1).astype(jnp.int32)           # labels / embed select
    tgt_keep = (target != 0).astype(jnp.float32).reshape(B, 1, T)
    mem_keep = attn_mask.astype(jnp.float32).reshape(B, 1, S)
    enc_bf = enc_hidden.astype(jnp.bfloat16)                      # matmul operand only

    per_batch = [tgt_col, tgt_keep, mem_keep, enc_bf]
    pb_specs = [
        pl.BlockSpec((1, T, 1), lambda b: (b, 0, 0)),
        pl.BlockSpec((1, 1, T), lambda b: (b, 0, 0)),
        pl.BlockSpec((1, 1, S), lambda b: (b, 0, 0)),
        pl.BlockSpec((1, S, D), lambda b: (b, 0, 0)),
    ]
    shared = [params["dec_emb"], pe, tag_t,
              params["wqkv_self"], params["bqkv_self"], params["wo_self"], params["bo_self"],
              params["wq_cross"], params["bq_cross"], params["wkv_cross"], params["bkv_cross"],
              params["wo_cross"], params["bo_cross"],
              params["ln1_g"], params["ln1_b"], params["ln2_g"], params["ln2_b"],
              params["ln3_g"], params["ln3_b"],
              params["ff_w1"], params["ff_b1"], params["ff_w2"], params["ff_b2"],
              params["len_w"], params["len_b"]]
    # Constant weights: unblocked VMEM residents (single copy, no per-step double buffering).
    sh_specs = [pl.BlockSpec(memory_space=VMEM) for _ in shared]

    kernel = functools.partial(_fused_decoder_kernel, nhead=nhead, fix_len=fix_len,
                               scale_emb=math.sqrt(D), eps=1e-5)
    scores_slab, partials = pl.pallas_call(
        kernel,
        out_shape=(jax.ShapeDtypeStruct((B, T, v_slab), jnp.float32),
                   jax.ShapeDtypeStruct((B, 1, 128), jnp.float32)),
        grid=(B,),
        in_specs=pb_specs + sh_specs,
        out_specs=(pl.BlockSpec((1, T, v_slab), lambda b: (b, 0, 0)),
                   pl.BlockSpec((1, 1, 128), lambda b: (b, 0, 0))),
        compiler_params=pltpu.CompilerParams(
            dimension_semantics=("parallel",),
            vmem_limit_bytes=48 * 1024 * 1024),
    )(*per_batch, *shared)

    # restore the module's score layout: [0, 0 | src_ptr at 2..2+S | 0 pad | tags at fix_len..]
    final_scores = jnp.zeros((B, T, V), jnp.float32)
    final_scores = final_scores.at[:, :, 2:2 + S].set(scores_slab[:, :, :S])
    final_scores = final_scores.at[:, :, fix_len:fix_len + Nt].set(scores_slab[:, :, S:S + Nt])

    parts = partials[:, 0, :]                                     # [B, 128]
    label_loss = jnp.sum(parts[:, 0]) / jnp.maximum(jnp.sum(parts[:, 1]), 1.0)
    length_loss = jnp.sum(parts[:, 2]) / jnp.maximum(jnp.sum(parts[:, 3]), 1.0)
    loss = label_loss + 0.1 * length_loss
    return loss, final_scores


# ----------------------------------------------------------------------------- params

def init_params(key, d_model, nhead, dim_ff, max_target_len, max_len=PE_MAX_LEN):
    D, F = d_model, dim_ff
    ks = iter(jax.random.split(key, 16))
    bf = jnp.bfloat16
    f32 = jnp.float32

    def w(shape, scale=0.02):
        return (scale * jax.random.normal(next(ks), shape)).astype(f32)

    dec_emb = jnp.concatenate(
        [jnp.zeros((1, D), f32), w((1, D), 1.0)], axis=0)          # padding_idx=0 row is zero

    # all Linear weights stored pre-transposed to [in, out] ([K, N]) layout, bf16 for the MXU
    params = {
        "dec_emb": dec_emb,
        "pe": positional_encoding(max_len, D),
        "wqkv_self": w((D, 3 * D)).astype(bf), "bqkv_self": jnp.zeros((1, 3 * D), f32),
        "wo_self": w((D, D)).astype(bf),       "bo_self": jnp.zeros((1, D), f32),
        "wq_cross": w((D, D)).astype(bf),      "bq_cross": jnp.zeros((1, D), f32),
        "wkv_cross": w((D, 2 * D)).astype(bf), "bkv_cross": jnp.zeros((1, 2 * D), f32),
        "wo_cross": w((D, D)).astype(bf),      "bo_cross": jnp.zeros((1, D), f32),
        "ln1_g": jnp.ones((1, D), f32), "ln1_b": jnp.zeros((1, D), f32),
        "ln2_g": jnp.ones((1, D), f32), "ln2_b": jnp.zeros((1, D), f32),
        "ln3_g": jnp.ones((1, D), f32), "ln3_b": jnp.zeros((1, D), f32),
        "ff_w1": w((D, F)).astype(bf), "ff_b1": jnp.zeros((1, F), f32),
        "ff_w2": w((F, D)).astype(bf), "ff_b2": jnp.zeros((1, D), f32),
        "len_w": w((D, max_target_len)).astype(bf),
        "len_b": jnp.zeros((1, max_target_len), f32),
    }
    return params


# ----------------------------------------------------------------------------- main

if __name__ == "__main__":
    B, S, T = 2, 8, 8          # batch, source seq, target seq
    D, NHEAD, DIM_FF = 32, 4, 64
    N_TAGS, TAG_S = 6, 4
    V = FIX_LEN + N_TAGS       # 72

    root = jax.random.PRNGKey(0)
    k_par, k_enc, k_tag, k_tgt = jax.random.split(root, 4)

    params = init_params(k_par, D, NHEAD, DIM_FF, MAX_TARGET_LEN)

    # simulated encoder last_hidden_state and attention mask (encoder is an injected HF model)
    enc_hidden = jax.random.normal(k_enc, (B, S, D), dtype=jnp.float32)
    attn_mask = jnp.array([[1, 1, 1, 1, 1, 1, 0, 0],
                           [1, 1, 1, 1, 0, 0, 0, 0]], dtype=jnp.float32)

    # simulated tag-encoder outputs
    tag_hidden = jax.random.normal(k_tag, (N_TAGS, TAG_S, D), dtype=jnp.float32)
    tag_mask = jnp.ones((N_TAGS, TAG_S), jnp.float32).at[:, -1].set(0.0)

    # target token ids in [0, V); 0 = <PAD>, trailing positions padded
    target = jax.random.randint(k_tgt, (B, T), 1, V, dtype=jnp.int32)
    pad_pattern = jnp.array([[1, 1, 1, 1, 1, 1, 1, 0],
                             [1, 1, 1, 1, 1, 0, 0, 0]], dtype=jnp.int32)
    target = target * pad_pattern

    fwd = jax.jit(functools.partial(custom_seq2seq_forward, nhead=NHEAD))
    loss, final_scores = fwd(params, enc_hidden, attn_mask, target, tag_hidden, tag_mask)
    loss = jax.block_until_ready(loss)
    final_scores = jax.block_until_ready(final_scores)

    assert final_scores.shape == (B, T, V)
    assert bool(jnp.isfinite(loss))
    assert bool(jnp.all(jnp.isfinite(final_scores)))
    print("KERNEL_OK")
</pallas_src>

<mosaic_0001>
module attributes {stable_mosaic.version = 11 : i64} {
  func.func @_tag_pool_kernel(%arg0: memref<6x4x32xf32, #tpu.memory_space<vmem>>, %arg1: memref<6x4xf32, #tpu.memory_space<vmem>>, %arg2: memref<6x32xf32, #tpu.memory_space<vmem>>) attributes {dimension_semantics = [], scalar_prefetch = 0 : i64, scratch_operands = 0 : i64, tpu.core_type = #tpu.core_type<tc>} {
    %c0 = arith.constant 0 : index
    %c0_0 = arith.constant 0 : index
    %c0_1 = arith.constant 0 : index
    %0 = vector.load %arg0[%c0, %c0_0, %c0_1] : memref<6x4x32xf32, #tpu.memory_space<vmem>>, vector<6x4x32xf32>
    %c0_2 = arith.constant 0 : index
    %c0_3 = arith.constant 0 : index
    %1 = vector.load %arg1[%c0_2, %c0_3] : memref<6x4xf32, #tpu.memory_space<vmem>>, vector<6x4xf32>
    %2 = vector.shape_cast %1 : vector<6x4xf32> to vector<6x4x1xf32>
    %3 = vector.broadcast %2 : vector<6x4x1xf32> to vector<6x4x32xf32>
    %4 = arith.mulf %0, %3 : vector<6x4x32xf32>
    %cst = arith.constant dense<0.000000e+00> : vector<6x32xf32>
    %5 = vector.multi_reduction <add>, %4, %cst [1] : vector<6x4x32xf32> to vector<6x32xf32>
    %cst_4 = arith.constant dense<0.000000e+00> : vector<6x1xf32>
    %6 = vector.multi_reduction <add>, %2, %cst_4 [1] : vector<6x4x1xf32> to vector<6x1xf32>
    %cst_5 = arith.constant 9.99999971E-10 : f32
    %7 = vector.broadcast %cst_5 : f32 to vector<6x1xf32>
    %8 = arith.maximumf %6, %7 : vector<6x1xf32>
    %9 = vector.broadcast %8 : vector<6x1xf32> to vector<6x32xf32>
    %10 = arith.divf %5, %9 : vector<6x32xf32>
    %c0_6 = arith.constant 0 : index
    %c0_7 = arith.constant 0 : index
    %11 = vector.load %arg2[%c0_6, %c0_7] : memref<6x32xf32, #tpu.memory_space<vmem>>, vector<6x32xf32>
    tpu.vector_store %arg2[%c0_6, %c0_7], %10 {strides = array<i32>} : memref<6x32xf32, #tpu.memory_space<vmem>>, vector<6x32xf32>,
    return
  }
}

module attributes {stable_mosaic.version = 11 : i64} {
  func.func @_fused_decoder_kernel(%arg0: i32, %arg1: memref<1x8x1xi32, #tpu.memory_space<vmem>>, %arg2: memref<1x1x8xf32, #tpu.memory_space<vmem>>, %arg3: memref<1x1x8xf32, #tpu.memory_space<vmem>>, %arg4: memref<1x8x32xbf16, #tpu.memory_space<vmem>>, %arg5: memref<2x32xf32, #tpu.memory_space<vmem>>, %arg6: memref<8x32xf32, #tpu.memory_space<vmem>>, %arg7: memref<32x6xbf16, #tpu.memory_space<vmem>>, %arg8: memref<32x96xbf16, #tpu.memory_space<vmem>>, %arg9: memref<1x96xf32, #tpu.memory_space<vmem>>, %arg10: memref<32x32xbf16, #tpu.memory_space<vmem>>, %arg11: memref<1x32xf32, #tpu.memory_space<vmem>>, %arg12: memref<32x32xbf16, #tpu.memory_space<vmem>>, %arg13: memref<1x32xf32, #tpu.memory_space<vmem>>, %arg14: memref<32x64xbf16, #tpu.memory_space<vmem>>, %arg15: memref<1x64xf32, #tpu.memory_space<vmem>>, %arg16: memref<32x32xbf16, #tpu.memory_space<vmem>>, %arg17: memref<1x32xf32, #tpu.memory_space<vmem>>, %arg18: memref<1x32xf32, #tpu.memory_space<vmem>>, %arg19: memref<1x32xf32, #tpu.memory_space<vmem>>, %arg20: memref<1x32xf32, #tpu.memory_space<vmem>>, %arg21: memref<1x32xf32, #tpu.memory_space<vmem>>, %arg22: memref<1x32xf32, #tpu.memory_space<vmem>>, %arg23: memref<1x32xf32, #tpu.memory_space<vmem>>, %arg24: memref<32x64xbf16, #tpu.memory_space<vmem>>, %arg25: memref<1x64xf32, #tpu.memory_space<vmem>>, %arg26: memref<64x32xbf16, #tpu.memory_space<vmem>>, %arg27: memref<1x32xf32, #tpu.memory_space<vmem>>, %arg28: memref<32x60xbf16, #tpu.memory_space<vmem>>, %arg29: memref<1x60xf32, #tpu.memory_space<vmem>>, %arg30: memref<1x8x128xf32, #tpu.memory_space<vmem>>, %arg31: memref<1x1x128xf32, #tpu.memory_space<vmem>>) attributes {dimension_semantics = [#tpu.dimension_semantics<parallel>], iteration_bounds = array<i64: 2>, scalar_prefetch = 0 : i64, scratch_operands = 0 : i64, tpu.core_type = #tpu.core_type<tc>, window_params = [{transform_indices = @transform_0, window_bounds = array<i64: 1, 8, 1>}, {transform_indices = @transform_1, window_bounds = array<i64: 1, 1, 8>}, {transform_indices = @transform_2, window_bounds = array<i64: 1, 1, 8>}, {transform_indices = @transform_3, window_bounds = array<i64: 1, 8, 32>}, {pipeline_mode = #tpu.pipeline_mode<synchronous>, transform_indices = @transform_4, window_bounds = array<i64: 2, 32>}, {pipeline_mode = #tpu.pipeline_mode<synchronous>, transform_indices = @transform_5, window_bounds = array<i64: 8, 32>}, {pipeline_mode = #tpu.pipeline_mode<synchronous>, transform_indices = @transform_6, window_bounds = array<i64: 32, 6>}, {pipeline_mode = #tpu.pipeline_mode<synchronous>, transform_indices = @transform_7, window_bounds = array<i64: 32, 96>}, {pipeline_mode = #tpu.pipeline_mode<synchronous>, transform_indices = @transform_8, window_bounds = array<i64: 1, 96>}, {pipeline_mode = #tpu.pipeline_mode<synchronous>, transform_indices = @transform_9, window_bounds = array<i64: 32, 32>}, {pipeline_mode = #tpu.pipeline_mode<synchronous>, transform_indices = @transform_10, window_bounds = array<i64: 1, 32>}, {pipeline_mode = #tpu.pipeline_mode<synchronous>, transform_indices = @transform_11, window_bounds = array<i64: 32, 32>}, {pipeline_mode = #tpu.pipeline_mode<synchronous>, transform_indices = @transform_12, window_bounds = array<i64: 1, 32>}, {pipeline_mode = #tpu.pipeline_mode<synchronous>, transform_indices = @transform_13, window_bounds = array<i64: 32, 64>}, {pipeline_mode = #tpu.pipeline_mode<synchronous>, transform_indices = @transform_14, window_bounds = array<i64: 1, 64>}, {pipeline_mode = #tpu.pipeline_mode<synchronous>, transform_indices = @transform_15, window_bounds = array<i64: 32, 32>}, {pipeline_mode = #tpu.pipeline_mode<synchronous>, transform_indices = @transform_16, window_bounds = array<i64: 1, 32>}, {pipeline_mode = #tpu.pipeline_mode<synchronous>, transform_indices = @transform_17, window_bounds = array<i64: 1, 32>}, {pipeline_mode = #tpu.pipeline_mode<synchronous>, transform_indices = @transform_18, window_bounds = array<i64: 1, 32>}, {pipeline_mode = #tpu.pipeline_mode<synchronous>, transform_indices = @transform_19, window_bounds = array<i64: 1, 32>}, {pipeline_mode = #tpu.pipeline_mode<synchronous>, transform_indices = @transform_20, window_bounds = array<i64: 1, 32>}, {pipeline_mode = #tpu.pipeline_mode<synchronous>, transform_indices = @transform_21, window_bounds = array<i64: 1, 32>}, {pipeline_mode = #tpu.pipeline_mode<synchronous>, transform_indices = @transform_22, window_bounds = array<i64: 1, 32>}, {pipeline_mode = #tpu.pipeline_mode<synchronous>, transform_indices = @transform_23, window_bounds = array<i64: 32, 64>}, {pipeline_mode = #tpu.pipeline_mode<synchronous>, transform_indices = @transform_24, window_bounds = array<i64: 1, 64>}, {pipeline_mode = #tpu.pipeline_mode<synchronous>, transform_indices = @transform_25, window_bounds = array<i64: 64, 32>}, {pipeline_mode = #tpu.pipeline_mode<synchronous>, transform_indices = @transform_26, window_bounds = array<i64: 1, 32>}, {pipeline_mode = #tpu.pipeline_mode<synchronous>, transform_indices = @transform_27, window_bounds = array<i64: 32, 60>}, {pipeline_mode = #tpu.pipeline_mode<synchronous>, transform_indices = @transform_28, window_bounds = array<i64: 1, 60>}, {transform_indices = @transform_29, window_bounds = array<i64: 1, 8, 128>}, {transform_indices = @transform_30, window_bounds = array<i64: 1, 1, 128>}]} {
    %c0 = arith.constant 0 : index
    %c0_0 = arith.constant 0 : index
    %c0_1 = arith.constant 0 : index
    %0 = vector.load %arg1[%c0, %c0_0, %c0_1] : memref<1x8x1xi32, #tpu.memory_space<vmem>>, vector<1x8x1xi32>
    %1 = vector.shape_cast %0 : vector<1x8x1xi32> to vector<8x1xi32>
    %c0_2 = arith.constant 0 : index
    %c0_3 = arith.constant 0 : index
    %c0_4 = arith.constant 0 : index
    %2 = vector.load %arg2[%c0_2, %c0_3, %c0_4] : memref<1x1x8xf32, #tpu.memory_space<vmem>>, vector<1x1x8xf32>
    %3 = vector.shape_cast %2 : vector<1x1x8xf32> to vector<1x8xf32>
    %c0_5 = arith.constant 0 : index
    %c0_6 = arith.constant 0 : index
    %c0_7 = arith.constant 0 : index
    %4 = vector.load %arg3[%c0_5, %c0_6, %c0_7] : memref<1x1x8xf32, #tpu.memory_space<vmem>>, vector<1x1x8xf32>
    %5 = vector.shape_cast %4 : vector<1x1x8xf32> to vector<1x8xf32>
    %c0_8 = arith.constant 0 : index
    %c0_9 = arith.constant 0 : index
    %c0_10 = arith.constant 0 : index
    %6 = vector.load %arg4[%c0_8, %c0_9, %c0_10] : memref<1x8x32xbf16, #tpu.memory_space<vmem>>, vector<1x8x32xbf16>
    %7 = vector.shape_cast %6 : vector<1x8x32xbf16> to vector<8x32xbf16>
    %c0_i32 = arith.constant 0 : i32
    %8 = vector.broadcast %c0_i32 : i32 to vector<8x1xi32>
    %9 = arith.cmpi sgt, %1, %8 : vector<8x1xi32>
    %c1 = arith.constant 1 : index
    %c0_11 = arith.constant 0 : index
    %10 = vector.load %arg5[%c1, %c0_11] : memref<2x32xf32, #tpu.memory_space<vmem>>, vector<1x32xf32>
    %c0_12 = arith.constant 0 : index
    %c0_13 = arith.constant 0 : index
    %11 = vector.load %arg5[%c0_12, %c0_13] : memref<2x32xf32, #tpu.memory_space<vmem>>, vector<1x32xf32>
    %12 = vector.shape_cast %9 : vector<8x1xi1> to vector<8x1xi1>
    %13 = vector.broadcast %12 : vector<8x1xi1> to vector<8x32xi1>
    %14 = vector.shape_cast %10 : vector<1x32xf32> to vector<1x32xf32>
    %15 = vector.broadcast %14 : vector<1x32xf32> to vector<8x32xf32>
    %16 = vector.shape_cast %11 : vector<1x32xf32> to vector<1x32xf32>
    %17 = vector.broadcast %16 : vector<1x32xf32> to vector<8x32xf32>
    %18 = arith.select %13, %15, %17 : vector<8x32xi1>, vector<8x32xf32>
    %cst = arith.constant 5.65685415 : f32
    %19 = vector.broadcast %cst : f32 to vector<8x32xf32>
    %20 = arith.mulf %18, %19 : vector<8x32xf32>
    %c0_14 = arith.constant 0 : index
    %c0_15 = arith.constant 0 : index
    %21 = vector.load %arg6[%c0_14, %c0_15] : memref<8x32xf32, #tpu.memory_space<vmem>>, vector<8x32xf32>
    %22 = arith.addf %20, %21 : vector<8x32xf32>
    %23 = arith.truncf %22 : vector<8x32xf32> to vector<8x32xbf16>
    %c0_16 = arith.constant 0 : index
    %c0_17 = arith.constant 0 : index
    %24 = vector.load %arg8[%c0_16, %c0_17] : memref<32x96xbf16, #tpu.memory_space<vmem>>, vector<32x96xbf16>
    %cst_18 = arith.constant dense<0.000000e+00> : vector<8x96xf32>
    %25 = tpu.matmul %23, %24, %cst_18 {dimension_numbers = #tpu.dot_dimension_numbers<[1], [0], [0], [1], [0, 0, 1, 1], [], []>} : vector<8x32xbf16>, vector<32x96xbf16>, vector<8x96xf32> -> vector<8x96xf32>
    %c0_19 = arith.constant 0 : index
    %c0_20 = arith.constant 0 : index
    %26 = vector.load %arg9[%c0_19, %c0_20] : memref<1x96xf32, #tpu.memory_space<vmem>>, vector<1x96xf32>
    %27 = vector.broadcast %26 : vector<1x96xf32> to vector<8x96xf32>
    %28 = arith.addf %25, %27 : vector<8x96xf32>
    %29 = vector.extract_strided_slice %28 {offsets = [0, 0], sizes = [8, 32], strides = [1, 1]} : vector<8x96xf32> to vector<8x32xf32>
    %cst_21 = arith.constant 0.353553385 : f32
    %30 = vector.broadcast %cst_21 : f32 to vector<8x32xf32>
    %31 = arith.mulf %29, %30 : vector<8x32xf32>
    %32 = vector.extract_strided_slice %28 {offsets = [0, 32], sizes = [8, 32], strides = [1, 1]} : vector<8x96xf32> to vector<8x32xf32>
    %33 = vector.extract_strided_slice %28 {offsets = [0, 64], sizes = [8, 32], strides = [1, 1]} : vector<8x96xf32> to vector<8x32xf32>
    %cst_22 = arith.constant 1.000000e+00 : f32
    %34 = vector.broadcast %cst_22 : f32 to vector<1x8xf32>
    %35 = arith.subf %3, %34 : vector<1x8xf32>
    %cst_23 = arith.constant 1.000000e+30 : f32
    %36 = vector.broadcast %cst_23 : f32 to vector<1x8xf32>
    %37 = arith.mulf %35, %36 : vector<1x8xf32>
    %38 = vector.extract_strided_slice %31 {offsets = [0, 0], sizes = [8, 8], strides = [1, 1]} : vector<8x32xf32> to vector<8x8xf32>
    %39 = arith.truncf %38 : vector<8x8xf32> to vector<8x8xbf16>
    %40 = vector.extract_strided_slice %32 {offsets = [0, 0], sizes = [8, 8], strides = [1, 1]} : vector<8x32xf32> to vector<8x8xf32>
    %41 = arith.truncf %40 : vector<8x8xf32> to vector<8x8xbf16>
    %42 = vector.extract_strided_slice %33 {offsets = [0, 0], sizes = [8, 8], strides = [1, 1]} : vector<8x32xf32> to vector<8x8xf32>
    %43 = arith.truncf %42 : vector<8x8xf32> to vector<8x8xbf16>
    %cst_24 = arith.constant dense<0.000000e+00> : vector<8x8xf32>
    %44 = tpu.matmul %39, %41, %cst_24 {dimension_numbers = #tpu.dot_dimension_numbers<[1], [1], [0], [0], [0, 0, 1, 0], [], []>} : vector<8x8xbf16>, vector<8x8xbf16>, vector<8x8xf32> -> vector<8x8xf32>
    %45 = vector.broadcast %37 : vector<1x8xf32> to vector<8x8xf32>
    %46 = arith.addf %44, %45 : vector<8x8xf32>
    %cst_25 = arith.constant dense<0xFF800000> : vector<8xf32>
    %47 = vector.multi_reduction <maximumf>, %46, %cst_25 [1] : vector<8x8xf32> to vector<8xf32>
    %48 = vector.shape_cast %47 : vector<8xf32> to vector<8x1xf32>
    %49 = vector.broadcast %48 : vector<8x1xf32> to vector<8x8xf32>
    %50 = arith.subf %46, %49 : vector<8x8xf32>
    %51 = math.exp %50 : vector<8x8xf32>
    %cst_26 = arith.constant dense<0.000000e+00> : vector<8xf32>
    %52 = vector.multi_reduction <add>, %51, %cst_26 [1] : vector<8x8xf32> to vector<8xf32>
    %53 = vector.shape_cast %52 : vector<8xf32> to vector<8x1xf32>
    %54 = tpu.reciprocal %53 {approx = true} : vector<8x1xf32> -> vector<8x1xf32>
    %55 = vector.broadcast %54 : vector<8x1xf32> to vector<8x8xf32>
    %56 = arith.mulf %51, %55 : vector<8x8xf32>
    %57 = arith.truncf %56 : vector<8x8xf32> to vector<8x8xbf16>
    %cst_27 = arith.constant dense<0.000000e+00> : vector<8x8xf32>
    %58 = tpu.matmul %57, %43, %cst_27 {dimension_numbers = #tpu.dot_dimension_numbers<[1], [0], [0], [1], [0, 0, 1, 1], [], []>} : vector<8x8xbf16>, vector<8x8xbf16>, vector<8x8xf32> -> vector<8x8xf32>
    %59 = arith.truncf %58 : vector<8x8xf32> to vector<8x8xbf16>
    %60 = vector.extract_strided_slice %31 {offsets = [0, 8], sizes = [8, 8], strides = [1, 1]} : vector<8x32xf32> to vector<8x8xf32>
    %61 = arith.truncf %60 : vector<8x8xf32> to vector<8x8xbf16>
    %62 = vector.extract_strided_slice %32 {offsets = [0, 8], sizes = [8, 8], strides = [1, 1]} : vector<8x32xf32> to vector<8x8xf32>
    %63 = arith.truncf %62 : vector<8x8xf32> to vector<8x8xbf16>
    %64 = vector.extract_strided_slice %33 {offsets = [0, 8], sizes = [8, 8], strides = [1, 1]} : vector<8x32xf32> to vector<8x8xf32>
    %65 = arith.truncf %64 : vector<8x8xf32> to vector<8x8xbf16>
    %cst_28 = arith.constant dense<0.000000e+00> : vector<8x8xf32>
    %66 = tpu.matmul %61, %63, %cst_28 {dimension_numbers = #tpu.dot_dimension_numbers<[1], [1], [0], [0], [0, 0, 1, 0], [], []>} : vector<8x8xbf16>, vector<8x8xbf16>, vector<8x8xf32> -> vector<8x8xf32>
    %67 = vector.broadcast %37 : vector<1x8xf32> to vector<8x8xf32>
    %68 = arith.addf %66, %67 : vector<8x8xf32>
    %cst_29 = arith.constant dense<0xFF800000> : vector<8xf32>
    %69 = vector.multi_reduction <maximumf>, %68, %cst_29 [1] : vector<8x8xf32> to vector<8xf32>
    %70 = vector.shape_cast %69 : vector<8xf32> to vector<8x1xf32>
    %71 = vector.broadcast %70 : vector<8x1xf32> to vector<8x8xf32>
    %72 = arith.subf %68, %71 : vector<8x8xf32>
    %73 = math.exp %72 : vector<8x8xf32>
    %cst_30 = arith.constant dense<0.000000e+00> : vector<8xf32>
    %74 = vector.multi_reduction <add>, %73, %cst_30 [1] : vector<8x8xf32> to vector<8xf32>
    %75 = vector.shape_cast %74 : vector<8xf32> to vector<8x1xf32>
    %76 = tpu.reciprocal %75 {approx = true} : vector<8x1xf32> -> vector<8x1xf32>
    %77 = vector.broadcast %76 : vector<8x1xf32> to vector<8x8xf32>
    %78 = arith.mulf %73, %77 : vector<8x8xf32>
    %79 = arith.truncf %78 : vector<8x8xf32> to vector<8x8xbf16>
    %cst_31 = arith.constant dense<0.000000e+00> : vector<8x8xf32>
    %80 = tpu.matmul %79, %65, %cst_31 {dimension_numbers = #tpu.dot_dimension_numbers<[1], [0], [0], [1], [0, 0, 1, 1], [], []>} : vector<8x8xbf16>, vector<8x8xbf16>, vector<8x8xf32> -> vector<8x8xf32>
    %81 = arith.truncf %80 : vector<8x8xf32> to vector<8x8xbf16>
    %82 = vector.extract_strided_slice %31 {offsets = [0, 16], sizes = [8, 8], strides = [1, 1]} : vector<8x32xf32> to vector<8x8xf32>
    %83 = arith.truncf %82 : vector<8x8xf32> to vector<8x8xbf16>
    %84 = vector.extract_strided_slice %32 {offsets = [0, 16], sizes = [8, 8], strides = [1, 1]} : vector<8x32xf32> to vector<8x8xf32>
    %85 = arith.truncf %84 : vector<8x8xf32> to vector<8x8xbf16>
    %86 = vector.extract_strided_slice %33 {offsets = [0, 16], sizes = [8, 8], strides = [1, 1]} : vector<8x32xf32> to vector<8x8xf32>
    %87 = arith.truncf %86 : vector<8x8xf32> to vector<8x8xbf16>
    %cst_32 = arith.constant dense<0.000000e+00> : vector<8x8xf32>
    %88 = tpu.matmul %83, %85, %cst_32 {dimension_numbers = #tpu.dot_dimension_numbers<[1], [1], [0], [0], [0, 0, 1, 0], [], []>} : vector<8x8xbf16>, vector<8x8xbf16>, vector<8x8xf32> -> vector<8x8xf32>
    %89 = vector.broadcast %37 : vector<1x8xf32> to vector<8x8xf32>
    %90 = arith.addf %88, %89 : vector<8x8xf32>
    %cst_33 = arith.constant dense<0xFF800000> : vector<8xf32>
    %91 = vector.multi_reduction <maximumf>, %90, %cst_33 [1] : vector<8x8xf32> to vector<8xf32>
    %92 = vector.shape_cast %91 : vector<8xf32> to vector<8x1xf32>
    %93 = vector.broadcast %92 : vector<8x1xf32> to vector<8x8xf32>
    %94 = arith.subf %90, %93 : vector<8x8xf32>
    %95 = math.exp %94 : vector<8x8xf32>
    %cst_34 = arith.constant dense<0.000000e+00> : vector<8xf32>
    %96 = vector.multi_reduction <add>, %95, %cst_34 [1] : vector<8x8xf32> to vector<8xf32>
    %97 = vector.shape_cast %96 : vector<8xf32> to vector<8x1xf32>
    %98 = tpu.reciprocal %97 {approx = true} : vector<8x1xf32> -> vector<8x1xf32>
    %99 = vector.broadcast %98 : vector<8x1xf32> to vector<8x8xf32>
    %100 = arith.mulf %95, %99 : vector<8x8xf32>
    %101 = arith.truncf %100 : vector<8x8xf32> to vector<8x8xbf16>
    %cst_35 = arith.constant dense<0.000000e+00> : vector<8x8xf32>
    %102 = tpu.matmul %101, %87, %cst_35 {dimension_numbers = #tpu.dot_dimension_numbers<[1], [0], [0], [1], [0, 0, 1, 1], [], []>} : vector<8x8xbf16>, vector<8x8xbf16>, vector<8x8xf32> -> vector<8x8xf32>
    %103 = arith.truncf %102 : vector<8x8xf32> to vector<8x8xbf16>
    %104 = vector.extract_strided_slice %31 {offsets = [0, 24], sizes = [8, 8], strides = [1, 1]} : vector<8x32xf32> to vector<8x8xf32>
    %105 = arith.truncf %104 : vector<8x8xf32> to vector<8x8xbf16>
    %106 = vector.extract_strided_slice %32 {offsets = [0, 24], sizes = [8, 8], strides = [1, 1]} : vector<8x32xf32> to vector<8x8xf32>
    %107 = arith.truncf %106 : vector<8x8xf32> to vector<8x8xbf16>
    %108 = vector.extract_strided_slice %33 {offsets = [0, 24], sizes = [8, 8], strides = [1, 1]} : vector<8x32xf32> to vector<8x8xf32>
    %109 = arith.truncf %108 : vector<8x8xf32> to vector<8x8xbf16>
    %cst_36 = arith.constant dense<0.000000e+00> : vector<8x8xf32>
    %110 = tpu.matmul %105, %107, %cst_36 {dimension_numbers = #tpu.dot_dimension_numbers<[1], [1], [0], [0], [0, 0, 1, 0], [], []>} : vector<8x8xbf16>, vector<8x8xbf16>, vector<8x8xf32> -> vector<8x8xf32>
    %111 = vector.broadcast %37 : vector<1x8xf32> to vector<8x8xf32>
    %112 = arith.addf %110, %111 : vector<8x8xf32>
    %cst_37 = arith.constant dense<0xFF800000> : vector<8xf32>
    %113 = vector.multi_reduction <maximumf>, %112, %cst_37 [1] : vector<8x8xf32> to vector<8xf32>
    %114 = vector.shape_cast %113 : vector<8xf32> to vector<8x1xf32>
    %115 = vector.broadcast %114 : vector<8x1xf32> to vector<8x8xf32>
    %116 = arith.subf %112, %115 : vector<8x8xf32>
    %117 = math.exp %116 : vector<8x8xf32>
    %cst_38 = arith.constant dense<0.000000e+00> : vector<8xf32>
    %118 = vector.multi_reduction <add>, %117, %cst_38 [1] : vector<8x8xf32> to vector<8xf32>
    %119 = vector.shape_cast %118 : vector<8xf32> to vector<8x1xf32>
    %120 = tpu.reciprocal %119 {approx = true} : vector<8x1xf32> -> vector<8x1xf32>
    %121 = vector.broadcast %120 : vector<8x1xf32> to vector<8x8xf32>
    %122 = arith.mulf %117, %121 : vector<8x8xf32>
    %123 = arith.truncf %122 : vector<8x8xf32> to vector<8x8xbf16>
    %cst_39 = arith.constant dense<0.000000e+00> : vector<8x8xf32>
    %124 = tpu.matmul %123, %109, %cst_39 {dimension_numbers = #tpu.dot_dimension_numbers<[1], [0], [0], [1], [0, 0, 1, 1], [], []>} : vector<8x8xbf16>, vector<8x8xbf16>, vector<8x8xf32> -> vector<8x8xf32>
    %125 = arith.truncf %124 : vector<8x8xf32> to vector<8x8xbf16>
    %126 = tpu.concatenate %59, %81, %103, %125 in 1 : vector<8x8xbf16>, vector<8x8xbf16>, vector<8x8xbf16>, vector<8x8xbf16> -> vector<8x32xbf16>
    %c0_40 = arith.constant 0 : index
    %c0_41 = arith.constant 0 : index
    %127 = vector.load %arg10[%c0_40, %c0_41] : memref<32x32xbf16, #tpu.memory_space<vmem>>, vector<32x32xbf16>
    %cst_42 = arith.constant dense<0.000000e+00> : vector<8x32xf32>
    %128 = tpu.matmul %126, %127, %cst_42 {dimension_numbers = #tpu.dot_dimension_numbers<[1], [0], [0], [1], [0, 0, 1, 1], [], []>} : vector<8x32xbf16>, vector<32x32xbf16>, vector<8x32xf32> -> vector<8x32xf32>
    %c0_43 = arith.constant 0 : index
    %c0_44 = arith.constant 0 : index
    %129 = vector.load %arg11[%c0_43, %c0_44] : memref<1x32xf32, #tpu.memory_space<vmem>>, vector<1x32xf32>
    %130 = vector.broadcast %129 : vector<1x32xf32> to vector<8x32xf32>
    %131 = arith.addf %128, %130 : vector<8x32xf32>
    %132 = arith.addf %22, %131 : vector<8x32xf32>
    %cst_45 = arith.constant dense<0.000000e+00> : vector<8xf32>
    %133 = vector.multi_reduction <add>, %132, %cst_45 [1] : vector<8x32xf32> to vector<8xf32>
    %134 = vector.shape_cast %133 : vector<8xf32> to vector<8x1xf32>
    %cst_46 = arith.constant 3.200000e+01 : f32
    %135 = vector.broadcast %cst_46 : f32 to vector<8x1xf32>
    %136 = arith.divf %134, %135 : vector<8x1xf32>
    %137 = vector.broadcast %136 : vector<8x1xf32> to vector<8x32xf32>
    %138 = arith.subf %132, %137 : vector<8x32xf32>
    %139 = arith.mulf %138, %138 : vector<8x32xf32>
    %cst_47 = arith.constant dense<0.000000e+00> : vector<8xf32>
    %140 = vector.multi_reduction <add>, %139, %cst_47 [1] : vector<8x32xf32> to vector<8xf32>
    %141 = vector.shape_cast %140 : vector<8xf32> to vector<8x1xf32>
    %cst_48 = arith.constant 3.200000e+01 : f32
    %142 = vector.broadcast %cst_48 : f32 to vector<8x1xf32>
    %143 = arith.divf %141, %142 : vector<8x1xf32>
    %cst_49 = arith.constant 9.99999974E-6 : f32
    %144 = vector.broadcast %cst_49 : f32 to vector<8x1xf32>
    %145 = arith.addf %143, %144 : vector<8x1xf32>
    %146 = math.rsqrt %145 : vector<8x1xf32>
    %147 = vector.broadcast %146 : vector<8x1xf32> to vector<8x32xf32>
    %148 = arith.mulf %138, %147 : vector<8x32xf32>
    %c0_50 = arith.constant 0 : index
    %c0_51 = arith.constant 0 : index
    %149 = vector.load %arg18[%c0_50, %c0_51] : memref<1x32xf32, #tpu.memory_space<vmem>>, vector<1x32xf32>
    %150 = vector.broadcast %149 : vector<1x32xf32> to vector<8x32xf32>
    %151 = arith.mulf %148, %150 : vector<8x32xf32>
    %c0_52 = arith.constant 0 : index
    %c0_53 = arith.constant 0 : index
    %152 = vector.load %arg19[%c0_52, %c0_53] : memref<1x32xf32, #tpu.memory_space<vmem>>, vector<1x32xf32>
    %153 = vector.broadcast %152 : vector<1x32xf32> to vector<8x32xf32>
    %154 = arith.addf %151, %153 : vector<8x32xf32>
    %155 = arith.truncf %154 : vector<8x32xf32> to vector<8x32xbf16>
    %c0_54 = arith.constant 0 : index
    %c0_55 = arith.constant 0 : index
    %156 = vector.load %arg12[%c0_54, %c0_55] : memref<32x32xbf16, #tpu.memory_space<vmem>>, vector<32x32xbf16>
    %cst_56 = arith.constant dense<0.000000e+00> : vector<8x32xf32>
    %157 = tpu.matmul %155, %156, %cst_56 {dimension_numbers = #tpu.dot_dimension_numbers<[1], [0], [0], [1], [0, 0, 1, 1], [], []>} : vector<8x32xbf16>, vector<32x32xbf16>, vector<8x32xf32> -> vector<8x32xf32>
    %c0_57 = arith.constant 0 : index
    %c0_58 = arith.constant 0 : index
    %158 = vector.load %arg13[%c0_57, %c0_58] : memref<1x32xf32, #tpu.memory_space<vmem>>, vector<1x32xf32>
    %159 = vector.broadcast %158 : vector<1x32xf32> to vector<8x32xf32>
    %160 = arith.addf %157, %159 : vector<8x32xf32>
    %cst_59 = arith.constant 0.353553385 : f32
    %161 = vector.broadcast %cst_59 : f32 to vector<8x32xf32>
    %162 = arith.mulf %160, %161 : vector<8x32xf32>
    %c0_60 = arith.constant 0 : index
    %c0_61 = arith.constant 0 : index
    %163 = vector.load %arg14[%c0_60, %c0_61] : memref<32x64xbf16, #tpu.memory_space<vmem>>, vector<32x64xbf16>
    %cst_62 = arith.constant dense<0.000000e+00> : vector<8x64xf32>
    %164 = tpu.matmul %7, %163, %cst_62 {dimension_numbers = #tpu.dot_dimension_numbers<[1], [0], [0], [1], [0, 0, 1, 1], [], []>} : vector<8x32xbf16>, vector<32x64xbf16>, vector<8x64xf32> -> vector<8x64xf32>
    %c0_63 = arith.constant 0 : index
    %c0_64 = arith.constant 0 : index
    %165 = vector.load %arg15[%c0_63, %c0_64] : memref<1x64xf32, #tpu.memory_space<vmem>>, vector<1x64xf32>
    %166 = vector.broadcast %165 : vector<1x64xf32> to vector<8x64xf32>
    %167 = arith.addf %164, %166 : vector<8x64xf32>
    %168 = vector.extract_strided_slice %167 {offsets = [0, 0], sizes = [8, 32], strides = [1, 1]} : vector<8x64xf32> to vector<8x32xf32>
    %169 = vector.extract_strided_slice %167 {offsets = [0, 32], sizes = [8, 32], strides = [1, 1]} : vector<8x64xf32> to vector<8x32xf32>
    %cst_65 = arith.constant 1.000000e+00 : f32
    %170 = vector.broadcast %cst_65 : f32 to vector<1x8xf32>
    %171 = arith.subf %5, %170 : vector<1x8xf32>
    %cst_66 = arith.constant 1.000000e+30 : f32
    %172 = vector.broadcast %cst_66 : f32 to vector<1x8xf32>
    %173 = arith.mulf %171, %172 : vector<1x8xf32>
    %174 = vector.extract_strided_slice %162 {offsets = [0, 0], sizes = [8, 8], strides = [1, 1]} : vector<8x32xf32> to vector<8x8xf32>
    %175 = arith.truncf %174 : vector<8x8xf32> to vector<8x8xbf16>
    %176 = vector.extract_strided_slice %168 {offsets = [0, 0], sizes = [8, 8], strides = [1, 1]} : vector<8x32xf32> to vector<8x8xf32>
    %177 = arith.truncf %176 : vector<8x8xf32> to vector<8x8xbf16>
    %178 = vector.extract_strided_slice %169 {offsets = [0, 0], sizes = [8, 8], strides = [1, 1]} : vector<8x32xf32> to vector<8x8xf32>
    %179 = arith.truncf %178 : vector<8x8xf32> to vector<8x8xbf16>
    %cst_67 = arith.constant dense<0.000000e+00> : vector<8x8xf32>
    %180 = tpu.matmul %175, %177, %cst_67 {dimension_numbers = #tpu.dot_dimension_numbers<[1], [1], [0], [0], [0, 0, 1, 0], [], []>} : vector<8x8xbf16>, vector<8x8xbf16>, vector<8x8xf32> -> vector<8x8xf32>
    %181 = vector.broadcast %173 : vector<1x8xf32> to vector<8x8xf32>
    %182 = arith.addf %180, %181 : vector<8x8xf32>
    %cst_68 = arith.constant dense<0xFF800000> : vector<8xf32>
    %183 = vector.multi_reduction <maximumf>, %182, %cst_68 [1] : vector<8x8xf32> to vector<8xf32>
    %184 = vector.shape_cast %183 : vector<8xf32> to vector<8x1xf32>
    %185 = vector.broadcast %184 : vector<8x1xf32> to vector<8x8xf32>
    %186 = arith.subf %182, %185 : vector<8x8xf32>
    %187 = math.exp %186 : vector<8x8xf32>
    %cst_69 = arith.constant dense<0.000000e+00> : vector<8xf32>
    %188 = vector.multi_reduction <add>, %187, %cst_69 [1] : vector<8x8xf32> to vector<8xf32>
    %189 = vector.shape_cast %188 : vector<8xf32> to vector<8x1xf32>
    %190 = tpu.reciprocal %189 {approx = true} : vector<8x1xf32> -> vector<8x1xf32>
    %191 = vector.broadcast %190 : vector<8x1xf32> to vector<8x8xf32>
    %192 = arith.mulf %187, %191 : vector<8x8xf32>
    %193 = arith.truncf %192 : vector<8x8xf32> to vector<8x8xbf16>
    %cst_70 = arith.constant dense<0.000000e+00> : vector<8x8xf32>
    %194 = tpu.matmul %193, %179, %cst_70 {dimension_numbers = #tpu.dot_dimension_numbers<[1], [0], [0], [1], [0, 0, 1, 1], [], []>} : vector<8x8xbf16>, vector<8x8xbf16>, vector<8x8xf32> -> vector<8x8xf32>
    %195 = arith.truncf %194 : vector<8x8xf32> to vector<8x8xbf16>
    %196 = vector.extract_strided_slice %162 {offsets = [0, 8], sizes = [8, 8], strides = [1, 1]} : vector<8x32xf32> to vector<8x8xf32>
    %197 = arith.truncf %196 : vector<8x8xf32> to vector<8x8xbf16>
    %198 = vector.extract_strided_slice %168 {offsets = [0, 8], sizes = [8, 8], strides = [1, 1]} : vector<8x32xf32> to vector<8x8xf32>
    %199 = arith.truncf %198 : vector<8x8xf32> to vector<8x8xbf16>
    %200 = vector.extract_strided_slice %169 {offsets = [0, 8], sizes = [8, 8], strides = [1, 1]} : vector<8x32xf32> to vector<8x8xf32>
    %201 = arith.truncf %200 : vector<8x8xf32> to vector<8x8xbf16>
    %cst_71 = arith.constant dense<0.000000e+00> : vector<8x8xf32>
    %202 = tpu.matmul %197, %199, %cst_71 {dimension_numbers = #tpu.dot_dimension_numbers<[1], [1], [0], [0], [0, 0, 1, 0], [], []>} : vector<8x8xbf16>, vector<8x8xbf16>, vector<8x8xf32> -> vector<8x8xf32>
    %203 = vector.broadcast %173 : vector<1x8xf32> to vector<8x8xf32>
    %204 = arith.addf %202, %203 : vector<8x8xf32>
    %cst_72 = arith.constant dense<0xFF800000> : vector<8xf32>
    %205 = vector.multi_reduction <maximumf>, %204, %cst_72 [1] : vector<8x8xf32> to vector<8xf32>
    %206 = vector.shape_cast %205 : vector<8xf32> to vector<8x1xf32>
    %207 = vector.broadcast %206 : vector<8x1xf32> to vector<8x8xf32>
    %208 = arith.subf %204, %207 : vector<8x8xf32>
    %209 = math.exp %208 : vector<8x8xf32>
    %cst_73 = arith.constant dense<0.000000e+00> : vector<8xf32>
    %210 = vector.multi_reduction <add>, %209, %cst_73 [1] : vector<8x8xf32> to vector<8xf32>
    %211 = vector.shape_cast %210 : vector<8xf32> to vector<8x1xf32>
    %212 = tpu.reciprocal %211 {approx = true} : vector<8x1xf32> -> vector<8x1xf32>
    %213 = vector.broadcast %212 : vector<8x1xf32> to vector<8x8xf32>
    %214 = arith.mulf %209, %213 : vector<8x8xf32>
    %215 = arith.truncf %214 : vector<8x8xf32> to vector<8x8xbf16>
    %cst_74 = arith.constant dense<0.000000e+00> : vector<8x8xf32>
    %216 = tpu.matmul %215, %201, %cst_74 {dimension_numbers = #tpu.dot_dimension_numbers<[1], [0], [0], [1], [0, 0, 1, 1], [], []>} : vector<8x8xbf16>, vector<8x8xbf16>, vector<8x8xf32> -> vector<8x8xf32>
    %217 = arith.truncf %216 : vector<8x8xf32> to vector<8x8xbf16>
    %218 = vector.extract_strided_slice %162 {offsets = [0, 16], sizes = [8, 8], strides = [1, 1]} : vector<8x32xf32> to vector<8x8xf32>
    %219 = arith.truncf %218 : vector<8x8xf32> to vector<8x8xbf16>
    %220 = vector.extract_strided_slice %168 {offsets = [0, 16], sizes = [8, 8], strides = [1, 1]} : vector<8x32xf32> to vector<8x8xf32>
    %221 = arith.truncf %220 : vector<8x8xf32> to vector<8x8xbf16>
    %222 = vector.extract_strided_slice %169 {offsets = [0, 16], sizes = [8, 8], strides = [1, 1]} : vector<8x32xf32> to vector<8x8xf32>
    %223 = arith.truncf %222 : vector<8x8xf32> to vector<8x8xbf16>
    %cst_75 = arith.constant dense<0.000000e+00> : vector<8x8xf32>
    %224 = tpu.matmul %219, %221, %cst_75 {dimension_numbers = #tpu.dot_dimension_numbers<[1], [1], [0], [0], [0, 0, 1, 0], [], []>} : vector<8x8xbf16>, vector<8x8xbf16>, vector<8x8xf32> -> vector<8x8xf32>
    %225 = vector.broadcast %173 : vector<1x8xf32> to vector<8x8xf32>
    %226 = arith.addf %224, %225 : vector<8x8xf32>
    %cst_76 = arith.constant dense<0xFF800000> : vector<8xf32>
    %227 = vector.multi_reduction <maximumf>, %226, %cst_76 [1] : vector<8x8xf32> to vector<8xf32>
    %228 = vector.shape_cast %227 : vector<8xf32> to vector<8x1xf32>
    %229 = vector.broadcast %228 : vector<8x1xf32> to vector<8x8xf32>
    %230 = arith.subf %226, %229 : vector<8x8xf32>
    %231 = math.exp %230 : vector<8x8xf32>
    %cst_77 = arith.constant dense<0.000000e+00> : vector<8xf32>
    %232 = vector.multi_reduction <add>, %231, %cst_77 [1] : vector<8x8xf32> to vector<8xf32>
    %233 = vector.shape_cast %232 : vector<8xf32> to vector<8x1xf32>
    %234 = tpu.reciprocal %233 {approx = true} : vector<8x1xf32> -> vector<8x1xf32>
    %235 = vector.broadcast %234 : vector<8x1xf32> to vector<8x8xf32>
    %236 = arith.mulf %231, %235 : vector<8x8xf32>
    %237 = arith.truncf %236 : vector<8x8xf32> to vector<8x8xbf16>
    %cst_78 = arith.constant dense<0.000000e+00> : vector<8x8xf32>
    %238 = tpu.matmul %237, %223, %cst_78 {dimension_numbers = #tpu.dot_dimension_numbers<[1], [0], [0], [1], [0, 0, 1, 1], [], []>} : vector<8x8xbf16>, vector<8x8xbf16>, vector<8x8xf32> -> vector<8x8xf32>
    %239 = arith.truncf %238 : vector<8x8xf32> to vector<8x8xbf16>
    %240 = vector.extract_strided_slice %162 {offsets = [0, 24], sizes = [8, 8], strides = [1, 1]} : vector<8x32xf32> to vector<8x8xf32>
    %241 = arith.truncf %240 : vector<8x8xf32> to vector<8x8xbf16>
    %242 = vector.extract_strided_slice %168 {offsets = [0, 24], sizes = [8, 8], strides = [1, 1]} : vector<8x32xf32> to vector<8x8xf32>
    %243 = arith.truncf %242 : vector<8x8xf32> to vector<8x8xbf16>
    %244 = vector.extract_strided_slice %169 {offsets = [0, 24], sizes = [8, 8], strides = [1, 1]} : vector<8x32xf32> to vector<8x8xf32>
    %245 = arith.truncf %244 : vector<8x8xf32> to vector<8x8xbf16>
    %cst_79 = arith.constant dense<0.000000e+00> : vector<8x8xf32>
    %246 = tpu.matmul %241, %243, %cst_79 {dimension_numbers = #tpu.dot_dimension_numbers<[1], [1], [0], [0], [0, 0, 1, 0], [], []>} : vector<8x8xbf16>, vector<8x8xbf16>, vector<8x8xf32> -> vector<8x8xf32>
    %247 = vector.broadcast %173 : vector<1x8xf32> to vector<8x8xf32>
    %248 = arith.addf %246, %247 : vector<8x8xf32>
    %cst_80 = arith.constant dense<0xFF800000> : vector<8xf32>
    %249 = vector.multi_reduction <maximumf>, %248, %cst_80 [1] : vector<8x8xf32> to vector<8xf32>
    %250 = vector.shape_cast %249 : vector<8xf32> to vector<8x1xf32>
    %251 = vector.broadcast %250 : vector<8x1xf32> to vector<8x8xf32>
    %252 = arith.subf %248, %251 : vector<8x8xf32>
    %253 = math.exp %252 : vector<8x8xf32>
    %cst_81 = arith.constant dense<0.000000e+00> : vector<8xf32>
    %254 = vector.multi_reduction <add>, %253, %cst_81 [1] : vector<8x8xf32> to vector<8xf32>
    %255 = vector.shape_cast %254 : vector<8xf32> to vector<8x1xf32>
    %256 = tpu.reciprocal %255 {approx = true} : vector<8x1xf32> -> vector<8x1xf32>
    %257 = vector.broadcast %256 : vector<8x1xf32> to vector<8x8xf32>
    %258 = arith.mulf %253, %257 : vector<8x8xf32>
    %259 = arith.truncf %258 : vector<8x8xf32> to vector<8x8xbf16>
    %cst_82 = arith.constant dense<0.000000e+00> : vector<8x8xf32>
    %260 = tpu.matmul %259, %245, %cst_82 {dimension_numbers = #tpu.dot_dimension_numbers<[1], [0], [0], [1], [0, 0, 1, 1], [], []>} : vector<8x8xbf16>, vector<8x8xbf16>, vector<8x8xf32> -> vector<8x8xf32>
    %261 = arith.truncf %260 : vector<8x8xf32> to vector<8x8xbf16>
    %262 = tpu.concatenate %195, %217, %239, %261 in 1 : vector<8x8xbf16>, vector<8x8xbf16>, vector<8x8xbf16>, vector<8x8xbf16> -> vector<8x32xbf16>
    %c0_83 = arith.constant 0 : index
    %c0_84 = arith.constant 0 : index
    %263 = vector.load %arg16[%c0_83, %c0_84] : memref<32x32xbf16, #tpu.memory_space<vmem>>, vector<32x32xbf16>
    %cst_85 = arith.constant dense<0.000000e+00> : vector<8x32xf32>
    %264 = tpu.matmul %262, %263, %cst_85 {dimension_numbers = #tpu.dot_dimension_numbers<[1], [0], [0], [1], [0, 0, 1, 1], [], []>} : vector<8x32xbf16>, vector<32x32xbf16>, vector<8x32xf32> -> vector<8x32xf32>
    %c0_86 = arith.constant 0 : index
    %c0_87 = arith.constant 0 : index
    %265 = vector.load %arg17[%c0_86, %c0_87] : memref<1x32xf32, #tpu.memory_space<vmem>>, vector<1x32xf32>
    %266 = vector.broadcast %265 : vector<1x32xf32> to vector<8x32xf32>
    %267 = arith.addf %264, %266 : vector<8x32xf32>
    %268 = arith.addf %154, %267 : vector<8x32xf32>
    %cst_88 = arith.constant dense<0.000000e+00> : vector<8xf32>
    %269 = vector.multi_reduction <add>, %268, %cst_88 [1] : vector<8x32xf32> to vector<8xf32>
    %270 = vector.shape_cast %269 : vector<8xf32> to vector<8x1xf32>
    %cst_89 = arith.constant 3.200000e+01 : f32
    %271 = vector.broadcast %cst_89 : f32 to vector<8x1xf32>
    %272 = arith.divf %270, %271 : vector<8x1xf32>
    %273 = vector.broadcast %272 : vector<8x1xf32> to vector<8x32xf32>
    %274 = arith.subf %268, %273 : vector<8x32xf32>
    %275 = arith.mulf %274, %274 : vector<8x32xf32>
    %cst_90 = arith.constant dense<0.000000e+00> : vector<8xf32>
    %276 = vector.multi_reduction <add>, %275, %cst_90 [1] : vector<8x32xf32> to vector<8xf32>
    %277 = vector.shape_cast %276 : vector<8xf32> to vector<8x1xf32>
    %cst_91 = arith.constant 3.200000e+01 : f32
    %278 = vector.broadcast %cst_91 : f32 to vector<8x1xf32>
    %279 = arith.divf %277, %278 : vector<8x1xf32>
    %cst_92 = arith.constant 9.99999974E-6 : f32
    %280 = vector.broadcast %cst_92 : f32 to vector<8x1xf32>
    %281 = arith.addf %279, %280 : vector<8x1xf32>
    %282 = math.rsqrt %281 : vector<8x1xf32>
    %283 = vector.broadcast %282 : vector<8x1xf32> to vector<8x32xf32>
    %284 = arith.mulf %274, %283 : vector<8x32xf32>
    %c0_93 = arith.constant 0 : index
    %c0_94 = arith.constant 0 : index
    %285 = vector.load %arg20[%c0_93, %c0_94] : memref<1x32xf32, #tpu.memory_space<vmem>>, vector<1x32xf32>
    %286 = vector.broadcast %285 : vector<1x32xf32> to vector<8x32xf32>
    %287 = arith.mulf %284, %286 : vector<8x32xf32>
    %c0_95 = arith.constant 0 : index
    %c0_96 = arith.constant 0 : index
    %288 = vector.load %arg21[%c0_95, %c0_96] : memref<1x32xf32, #tpu.memory_space<vmem>>, vector<1x32xf32>
    %289 = vector.broadcast %288 : vector<1x32xf32> to vector<8x32xf32>
    %290 = arith.addf %287, %289 : vector<8x32xf32>
    %291 = arith.truncf %290 : vector<8x32xf32> to vector<8x32xbf16>
    %c0_97 = arith.constant 0 : index
    %c0_98 = arith.constant 0 : index
    %292 = vector.load %arg24[%c0_97, %c0_98] : memref<32x64xbf16, #tpu.memory_space<vmem>>, vector<32x64xbf16>
    %cst_99 = arith.constant dense<0.000000e+00> : vector<8x64xf32>
    %293 = tpu.matmul %291, %292, %cst_99 {dimension_numbers = #tpu.dot_dimension_numbers<[1], [0], [0], [1], [0, 0, 1, 1], [], []>} : vector<8x32xbf16>, vector<32x64xbf16>, vector<8x64xf32> -> vector<8x64xf32>
    %c0_100 = arith.constant 0 : index
    %c0_101 = arith.constant 0 : index
    %294 = vector.load %arg25[%c0_100, %c0_101] : memref<1x64xf32, #tpu.memory_space<vmem>>, vector<1x64xf32>
    %295 = vector.broadcast %294 : vector<1x64xf32> to vector<8x64xf32>
    %296 = arith.addf %293, %295 : vector<8x64xf32>
    %cst_102 = arith.constant 0.000000e+00 : f32
    %297 = vector.broadcast %cst_102 : f32 to vector<8x64xf32>
    %298 = arith.maximumf %296, %297 : vector<8x64xf32>
    %299 = arith.truncf %298 : vector<8x64xf32> to vector<8x64xbf16>
    %c0_103 = arith.constant 0 : index
    %c0_104 = arith.constant 0 : index
    %300 = vector.load %arg26[%c0_103, %c0_104] : memref<64x32xbf16, #tpu.memory_space<vmem>>, vector<64x32xbf16>
    %cst_105 = arith.constant dense<0.000000e+00> : vector<8x32xf32>
    %301 = tpu.matmul %299, %300, %cst_105 {dimension_numbers = #tpu.dot_dimension_numbers<[1], [0], [0], [1], [0, 0, 1, 1], [], []>} : vector<8x64xbf16>, vector<64x32xbf16>, vector<8x32xf32> -> vector<8x32xf32>
    %c0_106 = arith.constant 0 : index
    %c0_107 = arith.constant 0 : index
    %302 = vector.load %arg27[%c0_106, %c0_107] : memref<1x32xf32, #tpu.memory_space<vmem>>, vector<1x32xf32>
    %303 = vector.broadcast %302 : vector<1x32xf32> to vector<8x32xf32>
    %304 = arith.addf %301, %303 : vector<8x32xf32>
    %305 = arith.addf %290, %304 : vector<8x32xf32>
    %cst_108 = arith.constant dense<0.000000e+00> : vector<8xf32>
    %306 = vector.multi_reduction <add>, %305, %cst_108 [1] : vector<8x32xf32> to vector<8xf32>
    %307 = vector.shape_cast %306 : vector<8xf32> to vector<8x1xf32>
    %cst_109 = arith.constant 3.200000e+01 : f32
    %308 = vector.broadcast %cst_109 : f32 to vector<8x1xf32>
    %309 = arith.divf %307, %308 : vector<8x1xf32>
    %310 = vector.broadcast %309 : vector<8x1xf32> to vector<8x32xf32>
    %311 = arith.subf %305, %310 : vector<8x32xf32>
    %312 = arith.mulf %311, %311 : vector<8x32xf32>
    %cst_110 = arith.constant dense<0.000000e+00> : vector<8xf32>
    %313 = vector.multi_reduction <add>, %312, %cst_110 [1] : vector<8x32xf32> to vector<8xf32>
    %314 = vector.shape_cast %313 : vector<8xf32> to vector<8x1xf32>
    %cst_111 = arith.constant 3.200000e+01 : f32
    %315 = vector.broadcast %cst_111 : f32 to vector<8x1xf32>
    %316 = arith.divf %314, %315 : vector<8x1xf32>
    %cst_112 = arith.constant 9.99999974E-6 : f32
    %317 = vector.broadcast %cst_112 : f32 to vector<8x1xf32>
    %318 = arith.addf %316, %317 : vector<8x1xf32>
    %319 = math.rsqrt %318 : vector<8x1xf32>
    %320 = vector.broadcast %319 : vector<8x1xf32> to vector<8x32xf32>
    %321 = arith.mulf %311, %320 : vector<8x32xf32>
    %c0_113 = arith.constant 0 : index
    %c0_114 = arith.constant 0 : index
    %322 = vector.load %arg22[%c0_113, %c0_114] : memref<1x32xf32, #tpu.memory_space<vmem>>, vector<1x32xf32>
    %323 = vector.broadcast %322 : vector<1x32xf32> to vector<8x32xf32>
    %324 = arith.mulf %321, %323 : vector<8x32xf32>
    %c0_115 = arith.constant 0 : index
    %c0_116 = arith.constant 0 : index
    %325 = vector.load %arg23[%c0_115, %c0_116] : memref<1x32xf32, #tpu.memory_space<vmem>>, vector<1x32xf32>
    %326 = vector.broadcast %325 : vector<1x32xf32> to vector<8x32xf32>
    %327 = arith.addf %324, %326 : vector<8x32xf32>
    %328 = arith.truncf %327 : vector<8x32xf32> to vector<8x32xbf16>
    %cst_117 = arith.constant dense<0.000000e+00> : vector<8x8xf32>
    %329 = tpu.matmul %328, %7, %cst_117 {dimension_numbers = #tpu.dot_dimension_numbers<[1], [1], [0], [0], [0, 0, 1, 0], [], []>} : vector<8x32xbf16>, vector<8x32xbf16>, vector<8x8xf32> -> vector<8x8xf32>
    %330 = vector.broadcast %5 : vector<1x8xf32> to vector<8x8xf32>
    %331 = arith.mulf %329, %330 : vector<8x8xf32>
    %c0_118 = arith.constant 0 : index
    %c0_119 = arith.constant 0 : index
    %332 = vector.load %arg7[%c0_118, %c0_119] : memref<32x6xbf16, #tpu.memory_space<vmem>>, vector<32x6xbf16>
    %cst_120 = arith.constant dense<0.000000e+00> : vector<8x6xf32>
    %333 = tpu.matmul %328, %332, %cst_120 {dimension_numbers = #tpu.dot_dimension_numbers<[1], [0], [0], [1], [0, 0, 1, 1], [], []>} : vector<8x32xbf16>, vector<32x6xbf16>, vector<8x6xf32> -> vector<8x6xf32>
    %cst_121 = arith.constant 0.000000e+00 : f32
    %334 = vector.broadcast %cst_121 : f32 to vector<8x114xf32>
    %335 = tpu.concatenate %331, %333, %334 in 1 : vector<8x8xf32>, vector<8x6xf32>, vector<8x114xf32> -> vector<8x128xf32>
    %336 = vector.shape_cast %335 : vector<8x128xf32> to vector<1x8x128xf32>
    %c0_122 = arith.constant 0 : index
    %c0_123 = arith.constant 0 : index
    %c0_124 = arith.constant 0 : index
    %337 = vector.load %arg30[%c0_122, %c0_123, %c0_124] : memref<1x8x128xf32, #tpu.memory_space<vmem>>, vector<1x8x128xf32>
    tpu.vector_store %arg30[%c0_122, %c0_123, %c0_124], %336 {strides = array<i32>} : memref<1x8x128xf32, #tpu.memory_space<vmem>>, vector<1x8x128xf32>,
    %cst_125 = arith.constant dense<0xFF800000> : vector<8xf32>
    %338 = vector.multi_reduction <maximumf>, %331, %cst_125 [1] : vector<8x8xf32> to vector<8xf32>
    %339 = vector.shape_cast %338 : vector<8xf32> to vector<8x1xf32>
    %cst_126 = arith.constant dense<0xFF800000> : vector<8xf32>
    %340 = vector.multi_reduction <maximumf>, %333, %cst_126 [1] : vector<8x6xf32> to vector<8xf32>
    %341 = vector.shape_cast %340 : vector<8xf32> to vector<8x1xf32>
    %342 = arith.maximumf %339, %341 : vector<8x1xf32>
    %cst_127 = arith.constant 0.000000e+00 : f32
    %343 = vector.broadcast %cst_127 : f32 to vector<8x1xf32>
    %344 = arith.maximumf %342, %343 : vector<8x1xf32>
    %cst_128 = arith.constant 0.000000e+00 : f32
    %345 = vector.broadcast %cst_128 : f32 to vector<8x1xf32>
    %346 = arith.subf %345, %344 : vector<8x1xf32>
    %347 = math.exp %346 : vector<8x1xf32>
    %cst_129 = arith.constant 5.800000e+01 : f32
    %348 = vector.broadcast %cst_129 : f32 to vector<8x1xf32>
    %349 = arith.mulf %348, %347 : vector<8x1xf32>
    %350 = vector.broadcast %344 : vector<8x1xf32> to vector<8x8xf32>
    %351 = arith.subf %331, %350 : vector<8x8xf32>
    %352 = math.exp %351 : vector<8x8xf32>
    %cst_130 = arith.constant dense<0.000000e+00> : vector<8xf32>
    %353 = vector.multi_reduction <add>, %352, %cst_130 [1] : vector<8x8xf32> to vector<8xf32>
    %354 = vector.shape_cast %353 : vector<8xf32> to vector<8x1xf32>
    %355 = arith.addf %349, %354 : vector<8x1xf32>
    %356 = vector.broadcast %344 : vector<8x1xf32> to vector<8x6xf32>
    %357 = arith.subf %333, %356 : vector<8x6xf32>
    %358 = math.exp %357 : vector<8x6xf32>
    %cst_131 = arith.constant dense<0.000000e+00> : vector<8xf32>
    %359 = vector.multi_reduction <add>, %358, %cst_131 [1] : vector<8x6xf32> to vector<8xf32>
    %360 = vector.shape_cast %359 : vector<8xf32> to vector<8x1xf32>
    %361 = arith.addf %355, %360 : vector<8x1xf32>
    %362 = math.log %361 : vector<8x1xf32>
    %363 = arith.addf %344, %362 : vector<8x1xf32>
    %364 = tpu.iota {dimensions = array<i32: 1>} : vector<8x8xi32>
    %365 = tpu.iota {dimensions = array<i32: 1>} : vector<8x6xi32>
    %c2_i32 = arith.constant 2 : i32
    %366 = vector.broadcast %c2_i32 : i32 to vector<8x1xi32>
    %367 = arith.subi %1, %366 : vector<8x1xi32>
    %368 = vector.broadcast %367 : vector<8x1xi32> to vector<8x8xi32>
    %369 = arith.cmpi eq, %364, %368 : vector<8x8xi32>
    %cst_132 = arith.constant 0.000000e+00 : f32
    %370 = vector.broadcast %cst_132 : f32 to vector<8x8xf32>
    %371 = arith.select %369, %331, %370 : vector<8x8xi1>, vector<8x8xf32>
    %cst_133 = arith.constant dense<0.000000e+00> : vector<8xf32>
    %372 = vector.multi_reduction <add>, %371, %cst_133 [1] : vector<8x8xf32> to vector<8xf32>
    %373 = vector.shape_cast %372 : vector<8xf32> to vector<8x1xf32>
    %c66_i32 = arith.constant 66 : i32
    %374 = vector.broadcast %c66_i32 : i32 to vector<8x1xi32>
    %375 = arith.subi %1, %374 : vector<8x1xi32>
    %376 = vector.broadcast %375 : vector<8x1xi32> to vector<8x6xi32>
    %377 = arith.cmpi eq, %365, %376 : vector<8x6xi32>
    %cst_134 = arith.constant 0.000000e+00 : f32
    %378 = vector.broadcast %cst_134 : f32 to vector<8x6xf32>
    %379 = arith.select %377, %333, %378 : vector<8x6xi1>, vector<8x6xf32>
    %cst_135 = arith.constant dense<0.000000e+00> : vector<8xf32>
    %380 = vector.multi_reduction <add>, %379, %cst_135 [1] : vector<8x6xf32> to vector<8xf32>
    %381 = vector.shape_cast %380 : vector<8xf32> to vector<8x1xf32>
    %382 = arith.addf %373, %381 : vector<8x1xf32>
    %c0_i32_136 = arith.constant 0 : i32
    %383 = vector.broadcast %c0_i32_136 : i32 to vector<8x1xi32>
    %384 = arith.cmpi ne, %1, %383 : vector<8x1xi32>
    %385 = arith.extui %384 : vector<8x1xi1> to vector<8x1xi32>
    %386 = arith.sitofp %385 : vector<8x1xi32> to vector<8x1xf32>
    %387 = arith.subf %363, %382 : vector<8x1xf32>
    %388 = arith.mulf %387, %386 : vector<8x1xf32>
    %389 = vector.shape_cast %388 : vector<8x1xf32> to vector<1x8x1xf32>
    %cst_137 = arith.constant dense<0.000000e+00> : vector<1xf32>
    %390 = vector.multi_reduction <add>, %389, %cst_137 [1, 2] : vector<1x8x1xf32> to vector<1xf32>
    %391 = vector.shape_cast %390 : vector<1xf32> to vector<1x1x1xf32>
    %392 = vector.extract %391[0, 0, 0] : f32 from vector<1x1x1xf32>
    %393 = vector.shape_cast %386 : vector<8x1xf32> to vector<1x8x1xf32>
    %cst_138 = arith.constant dense<0.000000e+00> : vector<1xf32>
    %394 = vector.multi_reduction <add>, %393, %cst_138 [1, 2] : vector<1x8x1xf32> to vector<1xf32>
    %395 = vector.shape_cast %394 : vector<1xf32> to vector<1x1x1xf32>
    %396 = vector.extract %395[0, 0, 0] : f32 from vector<1x1x1xf32>
    %397 = vector.shape_cast %5 : vector<1x8xf32> to vector<1x1x8xf32>
    %cst_139 = arith.constant dense<0.000000e+00> : vector<1xf32>
    %398 = vector.multi_reduction <add>, %397, %cst_139 [1, 2] : vector<1x1x8xf32> to vector<1xf32>
    %399 = vector.shape_cast %398 : vector<1xf32> to vector<1x1x1xf32>
    %400 = vector.extract %399[0, 0, 0] : f32 from vector<1x1x1xf32>
    %cst_140 = arith.constant 9.99999971E-10 : f32
    %401 = arith.maximumf %400, %cst_140 : f32
    %402 = arith.truncf %5 : vector<1x8xf32> to vector<1x8xbf16>
    %cst_141 = arith.constant dense<0.000000e+00> : vector<1x32xf32>
    %403 = tpu.matmul %402, %7, %cst_141 {dimension_numbers = #tpu.dot_dimension_numbers<[1], [0], [0], [1], [0, 0, 1, 1], [], []>} : vector<1x8xbf16>, vector<8x32xbf16>, vector<1x32xf32> -> vector<1x32xf32>
    %404 = vector.broadcast %401 : f32 to vector<1x32xf32>
    %405 = arith.divf %403, %404 : vector<1x32xf32>
    %406 = arith.truncf %405 : vector<1x32xf32> to vector<1x32xbf16>
    %c0_142 = arith.constant 0 : index
    %c0_143 = arith.constant 0 : index
    %407 = vector.load %arg28[%c0_142, %c0_143] : memref<32x60xbf16, #tpu.memory_space<vmem>>, vector<32x60xbf16>
    %cst_144 = arith.constant dense<0.000000e+00> : vector<1x60xf32>
    %408 = tpu.matmul %406, %407, %cst_144 {dimension_numbers = #tpu.dot_dimension_numbers<[1], [0], [0], [1], [0, 0, 1, 1], [], []>} : vector<1x32xbf16>, vector<32x60xbf16>, vector<1x60xf32> -> vector<1x60xf32>
    %c0_145 = arith.constant 0 : index
    %c0_146 = arith.constant 0 : index
    %409 = vector.load %arg29[%c0_145, %c0_146] : memref<1x60xf32, #tpu.memory_space<vmem>>, vector<1x60xf32>
    %410 = arith.addf %408, %409 : vector<1x60xf32>
    %c0_i32_147 = arith.constant 0 : i32
    %411 = vector.broadcast %c0_i32_147 : i32 to vector<8x1xi32>
    %412 = arith.cmpi sgt, %1, %411 : vector<8x1xi32>
    %413 = arith.extui %412 : vector<8x1xi1> to vector<8x1xi32>
    %414 = vector.shape_cast %413 : vector<8x1xi32> to vector<1x8x1xi32>
    %cst_148 = arith.constant dense<0> : vector<1xi32>
    %415 = vector.multi_reduction <add>, %414, %cst_148 [1, 2] : vector<1x8x1xi32> to vector<1xi32>
    %416 = vector.shape_cast %415 : vector<1xi32> to vector<1x1x1xi32>
    %417 = vector.extract %416[0, 0, 0] : i32 from vector<1x1x1xi32>
    %418 = vector.shape_cast %410 : vector<1x60xf32> to vector<1x1x60xf32>
    %cst_149 = arith.constant dense<0xFF800000> : vector<1xf32>
    %419 = vector.multi_reduction <maximumf>, %418, %cst_149 [1, 2] : vector<1x1x60xf32> to vector<1xf32>
    %420 = vector.shape_cast %419 : vector<1xf32> to vector<1x1x1xf32>
    %421 = vector.extract %420[0, 0, 0] : f32 from vector<1x1x1xf32>
    %422 = vector.broadcast %421 : f32 to vector<1x60xf32>
    %423 = arith.subf %410, %422 : vector<1x60xf32>
    %424 = math.exp %423 : vector<1x60xf32>
    %425 = vector.shape_cast %424 : vector<1x60xf32> to vector<1x1x60xf32>
    %cst_150 = arith.constant dense<0.000000e+00> : vector<1xf32>
    %426 = vector.multi_reduction <add>, %425, %cst_150 [1, 2] : vector<1x1x60xf32> to vector<1xf32>
    %427 = vector.shape_cast %426 : vector<1xf32> to vector<1x1x1xf32>
    %428 = vector.extract %427[0, 0, 0] : f32 from vector<1x1x1xf32>
    %429 = math.log %428 : f32
    %430 = arith.addf %421, %429 : f32
    %431 = tpu.iota {dimensions = array<i32: 1>} : vector<1x60xi32>
    %432 = vector.broadcast %417 : i32 to vector<1x60xi32>
    %433 = arith.cmpi eq, %431, %432 : vector<1x60xi32>
    %cst_151 = arith.constant 0.000000e+00 : f32
    %434 = vector.broadcast %cst_151 : f32 to vector<1x60xf32>
    %435 = arith.select %433, %410, %434 : vector<1x60xi1>, vector<1x60xf32>
    %436 = vector.shape_cast %435 : vector<1x60xf32> to vector<1x1x60xf32>
    %cst_152 = arith.constant dense<0.000000e+00> : vector<1xf32>
    %437 = vector.multi_reduction <add>, %436, %cst_152 [1, 2] : vector<1x1x60xf32> to vector<1xf32>
    %438 = vector.shape_cast %437 : vector<1xf32> to vector<1x1x1xf32>
    %439 = vector.extract %438[0, 0, 0] : f32 from vector<1x1x1xf32>
    %c0_i32_153 = arith.constant 0 : i32
    %440 = arith.cmpi ne, %417, %c0_i32_153 : i32
    %441 = arith.extui %440 : i1 to i32
    %442 = arith.sitofp %441 : i32 to f32
    %443 = arith.subf %430, %439 : f32
    %444 = arith.mulf %443, %442 : f32
    %445 = tpu.iota {dimensions = array<i32: 1>} : vector<1x128xi32>
    %c0_i32_154 = arith.constant 0 : i32
    %446 = vector.broadcast %c0_i32_154 : i32 to vector<1x128xi32>
    %447 = arith.cmpi eq, %445, %446 : vector<1x128xi32>
    %cst_155 = arith.constant 0.000000e+00 : f32
    %448 = vector.broadcast %392 : f32 to vector<1x128xf32>
    %449 = vector.broadcast %cst_155 : f32 to vector<1x128xf32>
    %450 = arith.select %447, %448, %449 : vector<1x128xi1>, vector<1x128xf32>
    %c1_i32 = arith.constant 1 : i32
    %451 = vector.broadcast %c1_i32 : i32 to vector<1x128xi32>
    %452 = arith.cmpi eq, %445, %451 : vector<1x128xi32>
    %cst_156 = arith.constant 0.000000e+00 : f32
    %453 = vector.broadcast %396 : f32 to vector<1x128xf32>
    %454 = vector.broadcast %cst_156 : f32 to vector<1x128xf32>
    %455 = arith.select %452, %453, %454 : vector<1x128xi1>, vector<1x128xf32>
    %456 = arith.addf %450, %455 : vector<1x128xf32>
    %c2_i32_157 = arith.constant 2 : i32
    %457 = vector.broadcast %c2_i32_157 : i32 to vector<1x128xi32>
    %458 = arith.cmpi eq, %445, %457 : vector<1x128xi32>
    %cst_158 = arith.constant 0.000000e+00 : f32
    %459 = vector.broadcast %444 : f32 to vector<1x128xf32>
    %460 = vector.broadcast %cst_158 : f32 to vector<1x128xf32>
    %461 = arith.select %458, %459, %460 : vector<1x128xi1>, vector<1x128xf32>
    %462 = arith.addf %456, %461 : vector<1x128xf32>
    %c3_i32 = arith.constant 3 : i32
    %463 = vector.broadcast %c3_i32 : i32 to vector<1x128xi32>
    %464 = arith.cmpi eq, %445, %463 : vector<1x128xi32>
    %cst_159 = arith.constant 0.000000e+00 : f32
    %465 = vector.broadcast %442 : f32 to vector<1x128xf32>
    %466 = vector.broadcast %cst_159 : f32 to vector<1x128xf32>
    %467 = arith.select %464, %465, %466 : vector<1x128xi1>, vector<1x128xf32>
    %468 = arith.addf %462, %467 : vector<1x128xf32>
    %469 = vector.shape_cast %468 : vector<1x128xf32> to vector<1x1x128xf32>
    %c0_160 = arith.constant 0 : index
    %c0_161 = arith.constant 0 : index
    %c0_162 = arith.constant 0 : index
    %470 = vector.load %arg31[%c0_160, %c0_161, %c0_162] : memref<1x1x128xf32, #tpu.memory_space<vmem>>, vector<1x1x128xf32>
    tpu.vector_store %arg31[%c0_160, %c0_161, %c0_162], %469 {strides = array<i32>} : memref<1x1x128xf32, #tpu.memory_space<vmem>>, vector<1x1x128xf32>,
    return
  }
  func.func @transform_0(%arg0: i32) -> (i32, i32, i32) {
    %c0_i32 = arith.constant 0 : i32
    %c0_i32_0 = arith.constant 0 : i32
    %c0_i32_1 = arith.constant 0 : i32
    return %arg0, %c0_i32, %c0_i32_0 : i32, i32, i32
  }
  func.func @transform_1(%arg0: i32) -> (i32, i32, i32) {
    %c0_i32 = arith.constant 0 : i32
    %c0_i32_0 = arith.constant 0 : i32
    %c0_i32_1 = arith.constant 0 : i32
    return %arg0, %c0_i32, %c0_i32_0 : i32, i32, i32
  }
  func.func @transform_2(%arg0: i32) -> (i32, i32, i32) {
    %c0_i32 = arith.constant 0 : i32
    %c0_i32_0 = arith.constant 0 : i32
    %c0_i32_1 = arith.constant 0 : i32
    return %arg0, %c0_i32, %c0_i32_0 : i32, i32, i32
  }
  func.func @transform_3(%arg0: i32) -> (i32, i32, i32) {
    %c0_i32 = arith.constant 0 : i32
    %c0_i32_0 = arith.constant 0 : i32
    %c0_i32_1 = arith.constant 0 : i32
    return %arg0, %c0_i32, %c0_i32_0 : i32, i32, i32
  }
  func.func @transform_4(%arg0: i32) -> (i32, i32) {
    %c0_i32 = arith.constant 0 : i32
    %c0_i32_0 = arith.constant 0 : i32
    %c0_i32_1 = arith.constant 0 : i32
    return %c0_i32, %c0_i32_0 : i32, i32
  }
  func.func @transform_5(%arg0: i32) -> (i32, i32) {
    %c0_i32 = arith.constant 0 : i32
    %c0_i32_0 = arith.constant 0 : i32
    %c0_i32_1 = arith.constant 0 : i32
    return %c0_i32, %c0_i32_0 : i32, i32
  }
  func.func @transform_6(%arg0: i32) -> (i32, i32) {
    %c0_i32 = arith.constant 0 : i32
    %c0_i32_0 = arith.constant 0 : i32
    %c0_i32_1 = arith.constant 0 : i32
    return %c0_i32, %c0_i32_0 : i32, i32
  }
  func.func @transform_7(%arg0: i32) -> (i32, i32) {
    %c0_i32 = arith.constant 0 : i32
    %c0_i32_0 = arith.constant 0 : i32
    %c0_i32_1 = arith.constant 0 : i32
    return %c0_i32, %c0_i32_0 : i32, i32
  }
  func.func @transform_8(%arg0: i32) -> (i32, i32) {
    %c0_i32 = arith.constant 0 : i32
    %c0_i32_0 = arith.constant 0 : i32
    %c0_i32_1 = arith.constant 0 : i32
    return %c0_i32, %c0_i32_0 : i32, i32
  }
  func.func @transform_9(%arg0: i32) -> (i32, i32) {
    %c0_i32 = arith.constant 0 : i32
    %c0_i32_0 = arith.constant 0 : i32
    %c0_i32_1 = arith.constant 0 : i32
    return %c0_i32, %c0_i32_0 : i32, i32
  }
  func.func @transform_10(%arg0: i32) -> (i32, i32) {
    %c0_i32 = arith.constant 0 : i32
    %c0_i32_0 = arith.constant 0 : i32
    %c0_i32_1 = arith.constant 0 : i32
    return %c0_i32, %c0_i32_0 : i32, i32
  }
  func.func @transform_11(%arg0: i32) -> (i32, i32) {
    %c0_i32 = arith.constant 0 : i32
    %c0_i32_0 = arith.constant 0 : i32
    %c0_i32_1 = arith.constant 0 : i32
    return %c0_i32, %c0_i32_0 : i32, i32
  }
  func.func @transform_12(%arg0: i32) -> (i32, i32) {
    %c0_i32 = arith.constant 0 : i32
    %c0_i32_0 = arith.constant 0 : i32
    %c0_i32_1 = arith.constant 0 : i32
    return %c0_i32, %c0_i32_0 : i32, i32
  }
  func.func @transform_13(%arg0: i32) -> (i32, i32) {
    %c0_i32 = arith.constant 0 : i32
    %c0_i32_0 = arith.constant 0 : i32
    %c0_i32_1 = arith.constant 0 : i32
    return %c0_i32, %c0_i32_0 : i32, i32
  }
  func.func @transform_14(%arg0: i32) -> (i32, i32) {
    %c0_i32 = arith.constant 0 : i32
    %c0_i32_0 = arith.constant 0 : i32
    %c0_i32_1 = arith.constant 0 : i32
    return %c0_i32, %c0_i32_0 : i32, i32
  }
  func.func @transform_15(%arg0: i32) -> (i32, i32) {
    %c0_i32 = arith.constant 0 : i32
    %c0_i32_0 = arith.constant 0 : i32
    %c0_i32_1 = arith.constant 0 : i32
    return %c0_i32, %c0_i32_0 : i32, i32
  }
  func.func @transform_16(%arg0: i32) -> (i32, i32) {
    %c0_i32 = arith.constant 0 : i32
    %c0_i32_0 = arith.constant 0 : i32
    %c0_i32_1 = arith.constant 0 : i32
    return %c0_i32, %c0_i32_0 : i32, i32
  }
  func.func @transform_17(%arg0: i32) -> (i32, i32) {
    %c0_i32 = arith.constant 0 : i32
    %c0_i32_0 = arith.constant 0 : i32
    %c0_i32_1 = arith.constant 0 : i32
    return %c0_i32, %c0_i32_0 : i32, i32
  }
  func.func @transform_18(%arg0: i32) -> (i32, i32) {
    %c0_i32 = arith.constant 0 : i32
    %c0_i32_0 = arith.constant 0 : i32
    %c0_i32_1 = arith.constant 0 : i32
    return %c0_i32, %c0_i32_0 : i32, i32
  }
  func.func @transform_19(%arg0: i32) -> (i32, i32) {
    %c0_i32 = arith.constant 0 : i32
    %c0_i32_0 = arith.constant 0 : i32
    %c0_i32_1 = arith.constant 0 : i32
    return %c0_i32, %c0_i32_0 : i32, i32
  }
  func.func @transform_20(%arg0: i32) -> (i32, i32) {
    %c0_i32 = arith.constant 0 : i32
    %c0_i32_0 = arith.constant 0 : i32
    %c0_i32_1 = arith.constant 0 : i32
    return %c0_i32, %c0_i32_0 : i32, i32
  }
  func.func @transform_21(%arg0: i32) -> (i32, i32) {
    %c0_i32 = arith.constant 0 : i32
    %c0_i32_0 = arith.constant 0 : i32
    %c0_i32_1 = arith.constant 0 : i32
    return %c0_i32, %c0_i32_0 : i32, i32
  }
  func.func @transform_22(%arg0: i32) -> (i32, i32) {
    %c0_i32 = arith.constant 0 : i32
    %c0_i32_0 = arith.constant 0 : i32
    %c0_i32_1 = arith.constant 0 : i32
    return %c0_i32, %c0_i32_0 : i32, i32
  }
  func.func @transform_23(%arg0: i32) -> (i32, i32) {
    %c0_i32 = arith.constant 0 : i32
    %c0_i32_0 = arith.constant 0 : i32
    %c0_i32_1 = arith.constant 0 : i32
    return %c0_i32, %c0_i32_0 : i32, i32
  }
  func.func @transform_24(%arg0: i32) -> (i32, i32) {
    %c0_i32 = arith.constant 0 : i32
    %c0_i32_0 = arith.constant 0 : i32
    %c0_i32_1 = arith.constant 0 : i32
    return %c0_i32, %c0_i32_0 : i32, i32
  }
  func.func @transform_25(%arg0: i32) -> (i32, i32) {
    %c0_i32 = arith.constant 0 : i32
    %c0_i32_0 = arith.constant 0 : i32
    %c0_i32_1 = arith.constant 0 : i32
    return %c0_i32, %c0_i32_0 : i32, i32
  }
  func.func @transform_26(%arg0: i32) -> (i32, i32) {
    %c0_i32 = arith.constant 0 : i32
    %c0_i32_0 = arith.constant 0 : i32
    %c0_i32_1 = arith.constant 0 : i32
    return %c0_i32, %c0_i32_0 : i32, i32
  }
  func.func @transform_27(%arg0: i32) -> (i32, i32) {
    %c0_i32 = arith.constant 0 : i32
    %c0_i32_0 = arith.constant 0 : i32
    %c0_i32_1 = arith.constant 0 : i32
    return %c0_i32, %c0_i32_0 : i32, i32
  }
  func.func @transform_28(%arg0: i32) -> (i32, i32) {
    %c0_i32 = arith.constant 0 : i32
    %c0_i32_0 = arith.constant 0 : i32
    %c0_i32_1 = arith.constant 0 : i32
    return %c0_i32, %c0_i32_0 : i32, i32
  }
  func.func @transform_29(%arg0: i32) -> (i32, i32, i32) {
    %c0_i32 = arith.constant 0 : i32
    %c0_i32_0 = arith.constant 0 : i32
    %c0_i32_1 = arith.constant 0 : i32
    return %arg0, %c0_i32, %c0_i32_0 : i32, i32, i32
  }
  func.func @transform_30(%arg0: i32) -> (i32, i32, i32) {
    %c0_i32 = arith.constant 0 : i32
    %c0_i32_0 = arith.constant 0 : i32
    %c0_i32_1 = arith.constant 0 : i32
    return %arg0, %c0_i32, %c0_i32_0 : i32, i32, i32
  }
}

</mosaic_0001>

<llo_original>
// kernel: custom_seq2seq_forward.2
$region0: #{custom_seq2seq_forward.2}
  #allocation0 [shape = 'u32[]', space=smem, size = 0x4, offset = 0x4, fixed_abs, tag = 'smem constant byte address 0x4 - core index']
  #allocation1 [shape = 'u32[144,128]{1,0:T(1,128)}', space=vmem, size = 0x12000, scoped, tag = 'internal scratch']
  %s0 = inlined_call_operand.vmem [shape: f32[6,4,32], index: 0, kind: input, shape index: {}]
  %s1 = inlined_call_operand.vmem [shape: f32[6,4], index: 1, kind: input, shape index: {}]
  %s2 = inlined_call_operand.vmem [shape: f32[6,32], index: 2, kind: output, shape index: {}]
  %s3 = sld [smem:[#allocation0]]
  $region18: #{custom_seq2seq_forward.2} parent=0
    _
  %s5 = ssub.s32 1, %s3
  %s6 = scalar_select 0, %s5, %s3
  // Predicated region
  $region2: #{custom_seq2seq_forward.2} parent=0 // pred_check
    _
  $region3: #{custom_seq2seq_forward.2} parent=0 // pred_check_branch
    %8 = sbr.rel (0) target = $region5
  $region4: #{custom_seq2seq_forward.2} parent=0 // pred_region
    _
  $region5: #{custom_seq2seq_forward.2} parent=0 // pred_fallthru
    _
  // Predicated region
  $region6: #{custom_seq2seq_forward.2} parent=0 // pred_check
    _
  $region7: #{custom_seq2seq_forward.2} parent=0 // pred_check_branch
    %10 = sbr.rel (0) target = $region9
  $region8: #{custom_seq2seq_forward.2} parent=0 // pred_region
    _
  $region9: #{custom_seq2seq_forward.2} parent=0 // pred_fallthru
    _
  %v11 = vld [vmem:[%s0] sm:$0xf]
  %v12 = vld [vmem:[%s0 + $0x4] sm:$0xf]
  %v13 = vld [vmem:[%s0 + $0x8] sm:$0xf]
  %v14 = vld [vmem:[%s0 + $0xc] sm:$0xf]
  %v15 = vld [vmem:[%s0 + $0x10] sm:$0xf]
  %v16 = vld [vmem:[%s0 + $0x14] sm:$0xf]
  %v17 = vld [vmem:[%s1] sm:$0x3f]
  %v18 = vlaneseq
  %v19 = vshrl.u32 %v18, 7
  %v20 = vsub.s32 0, %v19
  %v21 = vrot.slane %v17, %v20
  %23 = vbcast.lane.b32.xlu0 %v21, 256
  %v24 = vpop.permute.xlu0 %23
  %v25 = vlaneseq
  %v26 = vshrl.u32 %v25, 7
  %v27 = vsub.s32 1, %v26
  %v28 = vrot.slane %v17, %v27
  %30 = vbcast.lane.b32.xlu0 %v28, 256
  %v31 = vpop.permute.xlu0 %30
  %v32 = vlaneseq
  %v33 = vshrl.u32 %v32, 7
  %v34 = vsub.s32 2, %v33
  %v35 = vrot.slane %v17, %v34
  %37 = vbcast.lane.b32.xlu0 %v35, 256
  %v38 = vpop.permute.xlu0 %37
  %v39 = vlaneseq
  %v40 = vshrl.u32 %v39, 7
  %v41 = vsub.s32 3, %v40
  %v42 = vrot.slane %v17, %v41
  %44 = vbcast.lane.b32.xlu0 %v42, 256
  %v45 = vpop.permute.xlu0 %44
  %v46 = vlaneseq
  %v47 = vshrl.u32 %v46, 7
  %v48 = vsub.s32 4, %v47
  %v49 = vrot.slane %v17, %v48
  %51 = vbcast.lane.b32.xlu0 %v49, 256
  %v52 = vpop.permute.xlu0 %51
  %v53 = vlaneseq
  %v54 = vshrl.u32 %v53, 7
  %v55 = vsub.s32 5, %v54
  %v56 = vrot.slane %v17, %v55
  %58 = vbcast.lane.b32.xlu0 %v56, 256
  %v59 = vpop.permute.xlu0 %58
  %v60 = vmul.f32 %v11, %v24
  %v61 = vmul.f32 %v12, %v31
  %v62 = vmul.f32 %v13, %v38
  %v63 = vmul.f32 %v14, %v45
  %v64 = vmul.f32 %v15, %v52
  %v65 = vmul.f32 %v16, %v59
  %vm66 = vcmask 257024
  %v67 = vsel %vm66, %v60, 0.0
  %v68 = vrot.slane %v67, 4
  %v69 = vadd.f32 %v67, %v68
  %v70 = vrot.slane %v69, 2
  %v71 = vadd.f32 %v69, %v70
  %v72 = vrot.slane %v71, 1
  %v73 = vadd.f32 %v71, %v72
  %v74 = vsel %vm66, %v61, 0.0
  %v75 = vrot.slane %v74, 4
  %v76 = vadd.f32 %v74, %v75
  %v77 = vrot.slane %v76, 2
  %v78 = vadd.f32 %v76, %v77
  %v79 = vrot.slane %v78, 1
  %v80 = vadd.f32 %v78, %v79
  %v81 = vsel %vm66, %v62, 0.0
  %v82 = vrot.slane %v81, 4
  %v83 = vadd.f32 %v81, %v82
  %v84 = vrot.slane %v83, 2
  %v85 = vadd.f32 %v83, %v84
  %v86 = vrot.slane %v85, 1
  %v87 = vadd.f32 %v85, %v86
  %v88 = vsel %vm66, %v63, 0.0
  %v89 = vrot.slane %v88, 4
  %v90 = vadd.f32 %v88, %v89
  %v91 = vrot.slane %v90, 2
  %v92 = vadd.f32 %v90, %v91
  %v93 = vrot.slane %v92, 1
  %v94 = vadd.f32 %v92, %v93
  %v95 = vsel %vm66, %v64, 0.0
  %v96 = vrot.slane %v95, 4
  %v97 = vadd.f32 %v95, %v96
  %v98 = vrot.slane %v97, 2
  %v99 = vadd.f32 %v97, %v98
  %v100 = vrot.slane %v99, 1
  %v101 = vadd.f32 %v99, %v100
  %v102 = vsel %vm66, %v65, 0.0
  %v103 = vrot.slane %v102, 4
  %v104 = vadd.f32 %v102, %v103
  %v105 = vrot.slane %v104, 2
  %v106 = vadd.f32 %v104, %v105
  %v107 = vrot.slane %v106, 1
  %v108 = vadd.f32 %v106, %v107
  %vm109 = vcmask 1043456
  %v110 = vsel %vm109, %v24, 0.0
  %v111 = vrot.slane %v110, 4
  %v112 = vadd.f32 %v110, %v111
  %v113 = vrot.slane %v112, 2
  %v114 = vadd.f32 %v112, %v113
  %v115 = vrot.slane %v114, 1
  %v116 = vadd.f32 %v114, %v115
  %v117 = vsel %vm109, %v31, 0.0
  %v118 = vrot.slane %v117, 4
  %v119 = vadd.f32 %v117, %v118
  %v120 = vrot.slane %v119, 2
  %v121 = vadd.f32 %v119, %v120
  %v122 = vrot.slane %v121, 1
  %v123 = vadd.f32 %v121, %v122
  %v124 = vsel %vm109, %v38, 0.0
  %v125 = vrot.slane %v124, 4
  %v126 = vadd.f32 %v124, %v125
  %v127 = vrot.slane %v126, 2
  %v128 = vadd.f32 %v126, %v127
  %v129 = vrot.slane %v128, 1
  %v130 = vadd.f32 %v128, %v129
  %v131 = vsel %vm109, %v45, 0.0
  %v132 = vrot.slane %v131, 4
  %v133 = vadd.f32 %v131, %v132
  %v134 = vrot.slane %v133, 2
  %v135 = vadd.f32 %v133, %v134
  %v136 = vrot.slane %v135, 1
  %v137 = vadd.f32 %v135, %v136
  %v138 = vsel %vm109, %v52, 0.0
  %v139 = vrot.slane %v138, 4
  %v140 = vadd.f32 %v138, %v139
  %v141 = vrot.slane %v140, 2
  %v142 = vadd.f32 %v140, %v141
  %v143 = vrot.slane %v142, 1
  %v144 = vadd.f32 %v142, %v143
  %v145 = vsel %vm109, %v59, 0.0
  %v146 = vrot.slane %v145, 4
  %v147 = vadd.f32 %v145, %v146
  %v148 = vrot.slane %v147, 2
  %v149 = vadd.f32 %v147, %v148
  %v150 = vrot.slane %v149, 1
  %v151 = vadd.f32 %v149, %v150
  %v152 = vmax.f32 %v116, 1e-09
  %v153 = vmax.f32 %v123, 1e-09
  %v154 = vmax.f32 %v130, 1e-09
  %v155 = vmax.f32 %v137, 1e-09
  %v156 = vmax.f32 %v144, 1e-09
  %v157 = vmax.f32 %v151, 1e-09
  %v158 = vrcp.pop %v152
  %v159 = vmul.f32 %v73, %v158
  %v160 = vrcp.pop %v153
  %v161 = vmul.f32 %v80, %v160
  %v162 = vrcp.pop %v154
  %v163 = vmul.f32 %v87, %v162
  %v164 = vrcp.pop %v155
  %v165 = vmul.f32 %v94, %v164
  %v166 = vrcp.pop %v156
  %v167 = vmul.f32 %v101, %v166
  %v168 = vrcp.pop %v157
  %v169 = vmul.f32 %v108, %v168
  %vm176 = vcmask 1041409
  %v177 = vsel %vm176, %v161, %v159
  %vm178 = vcmask 1042434
  %v179 = vsel %vm178, %v163, %v177
  %vm180 = vcmask 1043459
  %v181 = vsel %vm180, %v165, %v179
  %vm182 = vcmask 1044484
  %v183 = vsel %vm182, %v167, %v181
  %vm184 = vcmask 1045509
  %v185 = vsel %vm184, %v169, %v183
  %vm187 = vcmask 259072
  %188 = vst.msk [vmem:[%s2] sm:$0x3f] %vm187, %v185
  // Predicated region
  $region10: #{custom_seq2seq_forward.2} parent=0 // pred_check
    _
  $region11: #{custom_seq2seq_forward.2} parent=0 // pred_check_branch
    %190 = sbr.rel (0) target = $region13
  $region12: #{custom_seq2seq_forward.2} parent=0 // pred_region
    _
  $region13: #{custom_seq2seq_forward.2} parent=0 // pred_fallthru
    _
  // Predicated region
  $region14: #{custom_seq2seq_forward.2} parent=0 // pred_check
    _
  $region15: #{custom_seq2seq_forward.2} parent=0 // pred_check_branch
    %192 = sbr.rel (0) target = $region17
  $region16: #{custom_seq2seq_forward.2} parent=0 // pred_region
    _
  $region17: #{custom_seq2seq_forward.2} parent=0 // pred_fallthru
    _

// kernel: custom_seq2seq_forward.3
$region0: #{custom_seq2seq_forward.3}
  #allocation0 [shape = 'u32[]', space=smem, size = 0x4, offset = 0x4, fixed_abs, tag = 'smem constant byte address 0x4 - core index']
  #allocation1 [shape = 'u32[144,128]{1,0:T(1,128)}', space=vmem, size = 0x12000, scoped, tag = 'internal scratch']
  %s0 = inlined_call_operand.smem [shape: u32[31], index: -1, kind: input, shape index: {}]
  %s1 = sld [smem:[%s0]]
  %s2 = scalar_lea.smem %s0, 1
  %s3 = sld [smem:[%s2]]
  %s4 = scalar_lea.smem %s0, 2
  %s5 = sld [smem:[%s4]]
  %s6 = scalar_lea.smem %s0, 3
  %s7 = sld [smem:[%s6]]
  %s8 = scalar_lea.smem %s0, 4
  %s9 = sld [smem:[%s8]]
  %s10 = scalar_lea.smem %s0, 5
  %s11 = sld [smem:[%s10]]
  %s12 = scalar_lea.smem %s0, 6
  %s13 = sld [smem:[%s12]]
  %s14 = scalar_lea.smem %s0, 7
  %s15 = sld [smem:[%s14]]
  %s16 = scalar_lea.smem %s0, 8
  %s17 = sld [smem:[%s16]]
  %s18 = scalar_lea.smem %s0, 9
  %s19 = sld [smem:[%s18]]
  %s20 = scalar_lea.smem %s0, 10
  %s21 = sld [smem:[%s20]]
  %s22 = scalar_lea.smem %s0, 11
  %s23 = sld [smem:[%s22]]
  %s24 = scalar_lea.smem %s0, 12
  %s25 = sld [smem:[%s24]]
  %s26 = scalar_lea.smem %s0, 13
  %s27 = sld [smem:[%s26]]
  %s28 = scalar_lea.smem %s0, 14
  %s29 = sld [smem:[%s28]]
  %s30 = scalar_lea.smem %s0, 15
  %s31 = sld [smem:[%s30]]
  %s32 = scalar_lea.smem %s0, 16
  %s33 = sld [smem:[%s32]]
  %s34 = scalar_lea.smem %s0, 17
  %s35 = sld [smem:[%s34]]
  %s36 = scalar_lea.smem %s0, 18
  %s37 = sld [smem:[%s36]]
  %s38 = scalar_lea.smem %s0, 19
  %s39 = sld [smem:[%s38]]
  %s40 = scalar_lea.smem %s0, 20
  %s41 = sld [smem:[%s40]]
  %s42 = scalar_lea.smem %s0, 21
  %s43 = sld [smem:[%s42]]
  %s44 = scalar_lea.smem %s0, 22
  %s45 = sld [smem:[%s44]]
  %s46 = scalar_lea.smem %s0, 23
  %s47 = sld [smem:[%s46]]
  %s48 = scalar_lea.smem %s0, 24
  %s49 = sld [smem:[%s48]]
  %s50 = scalar_lea.smem %s0, 25
  %s51 = sld [smem:[%s50]]
  %s52 = scalar_lea.smem %s0, 26
  %s53 = sld [smem:[%s52]]
  %s54 = scalar_lea.smem %s0, 27
  %s55 = sld [smem:[%s54]]
  %s56 = scalar_lea.smem %s0, 28
  %s57 = sld [smem:[%s56]]
  %s58 = scalar_lea.smem %s0, 29
  %s59 = sld [smem:[%s58]]
  %s60 = scalar_lea.smem %s0, 30
  %s61 = sld [smem:[%s60]]
  %62 = xla_tuple %s59, %s61
  %s63 = sld [smem:[#allocation0]]
  $region157: #{custom_seq2seq_forward.3} parent=0
    _
  %s65 = ssub.s32 1, %s63
  %s66 = scalar_select 0, %s65, %s63
  loop: start=0, step=1, limit=4
  $region2: #{custom_seq2seq_forward.3} parent=0 // loop_pre_header
    _
  $region3: #{custom_seq2seq_forward.3} parent=0 // loop_header
    %s68 = sphi 0, %s72
    %p69 = scmp.ge.s32.totalorder %s68, 4
    %s78 = sphi 0, %s80
    %s81 = sphi 0, %s78
    %s82 = sphi 0, %s81
    %s98 = sphi 0, %s82
    %s104 = sphi 0, %s106
    %s107 = sphi 0, %s104
    %s108 = sphi 0, %s107
    %s124 = sphi 0, %s108
    %s130 = sphi 0, %s132
    %s133 = sphi 0, %s130
    %s134 = sphi 0, %s133
    %s150 = sphi 0, %s134
    %s156 = sphi 0, %s158
    %s159 = sphi 0, %s156
    %s160 = sphi 0, %s159
    %s176 = sphi 0, %s160
    %s180 = sphi 0, %s180
    %s182 = sphi 0, %s180
    %s183 = sphi 0, %s182
    %s197 = sphi 0, %s183
    %s201 = sphi 0, %s201
    %s203 = sphi 0, %s201
    %s204 = sphi 0, %s203
    %s218 = sphi 0, %s204
    %s222 = sphi 0, %s222
    %s224 = sphi 0, %s222
    %s225 = sphi 0, %s224
    %s239 = sphi 0, %s225
    %s243 = sphi 0, %s243
    %s245 = sphi 0, %s243
    %s246 = sphi 0, %s245
    %s260 = sphi 0, %s246
    %s264 = sphi 0, %s264
    %s266 = sphi 0, %s264
    %s267 = sphi 0, %s266
    %s281 = sphi 0, %s267
    %s285 = sphi 0, %s285
    %s287 = sphi 0, %s285
    %s288 = sphi 0, %s287
    %s302 = sphi 0, %s288
    %s306 = sphi 0, %s306
    %s308 = sphi 0, %s306
    %s309 = sphi 0, %s308
    %s323 = sphi 0, %s309
    %s327 = sphi 0, %s327
    %s329 = sphi 0, %s327
    %s330 = sphi 0, %s329
    %s344 = sphi 0, %s330
    %s348 = sphi 0, %s348
    %s350 = sphi 0, %s348
    %s351 = sphi 0, %s350
    %s365 = sphi 0, %s351
    %s369 = sphi 0, %s369
    %s371 = sphi 0, %s369
    %s372 = sphi 0, %s371
    %s386 = sphi 0, %s372
    %s390 = sphi 0, %s390
    %s392 = sphi 0, %s390
    %s393 = sphi 0, %s392
    %s407 = sphi 0, %s393
    %s411 = sphi 0, %s411
    %s413 = sphi 0, %s411
    %s414 = sphi 0, %s413
    %s428 = sphi 0, %s414
    %s432 = sphi 0, %s432
    %s434 = sphi 0, %s432
    %s435 = sphi 0, %s434
    %s449 = sphi 0, %s435
    %s453 = sphi 0, %s453
    %s455 = sphi 0, %s453
    %s456 = sphi 0, %s455
    %s470 = sphi 0, %s456
    %s474 = sphi 0, %s474
    %s476 = sphi 0, %s474
    %s477 = sphi 0, %s476
    %s491 = sphi 0, %s477
    %s495 = sphi 0, %s495
    %s497 = sphi 0, %s495
    %s498 = sphi 0, %s497
    %s512 = sphi 0, %s498
    %s516 = sphi 0, %s516
    %s518 = sphi 0, %s516
    %s519 = sphi 0, %s518
    %s533 = sphi 0, %s519
    %s537 = sphi 0, %s537
    %s539 = sphi 0, %s537
    %s540 = sphi 0, %s539
    %s554 = sphi 0, %s540
    %s558 = sphi 0, %s558
    %s560 = sphi 0, %s558
    %s561 = sphi 0, %s560
    %s575 = sphi 0, %s561
    %s579 = sphi 0, %s579
    %s581 = sphi 0, %s579
    %s582 = sphi 0, %s581
    %s596 = sphi 0, %s582
    %s600 = sphi 0, %s600
    %s602 = sphi 0, %s600
    %s603 = sphi 0, %s602
    %s617 = sphi 0, %s603
    %s621 = sphi 0, %s621
    %s623 = sphi 0, %s621
    %s624 = sphi 0, %s623
    %s638 = sphi 0, %s624
    %s642 = sphi 0, %s642
    %s644 = sphi 0, %s642
    %s645 = sphi 0, %s644
    %s659 = sphi 0, %s645
    %s663 = sphi 0, %s663
    %s665 = sphi 0, %s663
    %s666 = sphi 0, %s665
    %s680 = sphi 0, %s666
    %s684 = sphi 0, %s684
    %s686 = sphi 0, %s684
    %s687 = sphi 0, %s686
    %s701 = sphi 0, %s687
    %s707 = sphi 0, %s709
    %s710 = sphi 0, %s707
    %s711 = sphi 0, %s710
    %s727 = sphi 0, %s711
    %s733 = sphi 0, %s735
    %s736 = sphi 0, %s733
    %s737 = sphi 0, %s736
    %s753 = sphi 0, %s737
  $region4: #{custom_seq2seq_forward.3} parent=0 // loop_header_branch
    %71 = sbr.rel (%p69) target = $region8
  $region5: #{custom_seq2seq_forward.3} parent=0 // loop_body
    %s73 = ssub.s32 %s68, 1
    %s74 = ssub.s32 %s68, 2
    %s75 = sadd.s32 %s68, 1
    %s76 = ssub.s32 %s68, %s75
    %p77 = scmp.eq.s32.totalorder %s76, 0
    %s79 = sadd.s32 %s78, 1
    %s80 = scalar_select %p77, %s78, %s79
    %p83 = pneg %p77
    %p84 = scmp.eq.s32.totalorder %s68, 1
    %p85 = por %p83, %p84
    %p86 = scmp.ne.s32.totalorder %s78, %s81
    %p87 = scmp.eq.s32.totalorder %s68, 0
    %p88 = por %p86, %p87
    %p89 = scmp.ne.s32.totalorder %s78, %s81
    %p90 = scmp.eq.s32.totalorder %s73, 1
    %p91 = por %p89, %p90
    %p92 = scmp.ne.s32.totalorder %s81, %s82
    %p93 = scmp.eq.s32.totalorder %s73, 0
    %p94 = por %p92, %p93
    %p95 = scmp.ne.s32.totalorder %s81, %s82
    %p96 = scmp.eq.s32.totalorder %s74, 1
    %p97 = por %p95, %p96
    %p99 = scmp.ne.s32.totalorder %s82, %s98
    %p100 = scmp.eq.s32.totalorder %s74, 0
    %p101 = por %p99, %p100
    %s102 = ssub.s32 %s68, %s75
    %p103 = scmp.eq.s32.totalorder %s102, 0
    %s105 = sadd.s32 %s104, 1
    %s106 = scalar_select %p103, %s104, %s105
    %p109 = pneg %p103
    %p110 = scmp.eq.s32.totalorder %s68, 1
    %p111 = por %p109, %p110
    %p112 = scmp.ne.s32.totalorder %s104, %s107
    %p113 = scmp.eq.s32.totalorder %s68, 0
    %p114 = por %p112, %p113
    %p115 = scmp.ne.s32.totalorder %s104, %s107
    %p116 = scmp.eq.s32.totalorder %s73, 1
    %p117 = por %p115, %p116
    %p118 = scmp.ne.s32.totalorder %s107, %s108
    %p119 = scmp.eq.s32.totalorder %s73, 0
    %p120 = por %p118, %p119
    %p121 = scmp.ne.s32.totalorder %s107, %s108
    %p122 = scmp.eq.s32.totalorder %s74, 1
    %p123 = por %p121, %p122
    %p125 = scmp.ne.s32.totalorder %s108, %s124
    %p126 = scmp.eq.s32.totalorder %s74, 0
    %p127 = por %p125, %p126
    %s128 = ssub.s32 %s68, %s75
    %p129 = scmp.eq.s32.totalorder %s128, 0
    %s131 = sadd.s32 %s130, 1
    %s132 = scalar_select %p129, %s130, %s131
    %p135 = pneg %p129
    %p136 = scmp.eq.s32.totalorder %s68, 1
    %p137 = por %p135, %p136
    %p138 = scmp.ne.s32.totalorder %s130, %s133
    %p139 = scmp.eq.s32.totalorder %s68, 0
    %p140 = por %p138, %p139
    %p141 = scmp.ne.s32.totalorder %s130, %s133
    %p142 = scmp.eq.s32.totalorder %s73, 1
    %p143 = por %p141, %p142
    %p144 = scmp.ne.s32.totalorder %s133, %s134
    %p145 = scmp.eq.s32.totalorder %s73, 0
    %p146 = por %p144, %p145
    %p147 = scmp.ne.s32.totalorder %s133, %s134
    %p148 = scmp.eq.s32.totalorder %s74, 1
    %p149 = por %p147, %p148
    %p151 = scmp.ne.s32.totalorder %s134, %s150
    %p152 = scmp.eq.s32.totalorder %s74, 0
    %p153 = por %p151, %p152
    %s154 = ssub.s32 %s68, %s75
    %p155 = scmp.eq.s32.totalorder %s154, 0
    %s157 = sadd.s32 %s156, 1
    %s158 = scalar_select %p155, %s156, %s157
    %p161 = pneg %p155
    %p162 = scmp.eq.s32.totalorder %s68, 1
    %p163 = por %p161, %p162
    %p164 = scmp.ne.s32.totalorder %s156, %s159
    %p165 = scmp.eq.s32.totalorder %s68, 0
    %p166 = por %p164, %p165
    %p167 = scmp.ne.s32.totalorder %s156, %s159
    %p168 = scmp.eq.s32.totalorder %s73, 1
    %p169 = por %p167, %p168
    %p170 = scmp.ne.s32.totalorder %s159, %s160
    %p171 = scmp.eq.s32.totalorder %s73, 0
    %p172 = por %p170, %p171
    %p173 = scmp.ne.s32.totalorder %s159, %s160
    %p174 = scmp.eq.s32.totalorder %s74, 1
    %p175 = por %p173, %p174
    %p177 = scmp.ne.s32.totalorder %s160, %s176
    %p178 = scmp.eq.s32.totalorder %s74, 0
    %p179 = por %p177, %p178
    %s181 = sadd.s32 %s180, 1
    %p184 = scmp.eq.s32.totalorder %s68, 1
    %p185 = scmp.ne.s32.totalorder %s180, %s182
    %p186 = scmp.eq.s32.totalorder %s68, 0
    %p187 = por %p185, %p186
    %p188 = scmp.ne.s32.totalorder %s180, %s182
    %p189 = scmp.eq.s32.totalorder %s73, 1
    %p190 = por %p188, %p189
    %p191 = scmp.ne.s32.totalorder %s182, %s183
    %p192 = scmp.eq.s32.totalorder %s73, 0
    %p193 = por %p191, %p192
    %p194 = scmp.ne.s32.totalorder %s182, %s183
    %p195 = scmp.eq.s32.totalorder %s74, 1
    %p196 = por %p194, %p195
    %p198 = scmp.ne.s32.totalorder %s183, %s197
    %p199 = scmp.eq.s32.totalorder %s74, 0
    %p200 = por %p198, %p199
    %s202 = sadd.s32 %s201, 1
    %p205 = scmp.eq.s32.totalorder %s68, 1
    %p206 = scmp.ne.s32.totalorder %s201, %s203
    %p207 = scmp.eq.s32.totalorder %s68, 0
    %p208 = por %p206, %p207
    %p209 = scmp.ne.s32.totalorder %s201, %s203
    %p210 = scmp.eq.s32.totalorder %s73, 1
    %p211 = por %p209, %p210
    %p212 = scmp.ne.s32.totalorder %s203, %s204
    %p213 = scmp.eq.s32.totalorder %s73, 0
    %p214 = por %p212, %p213
    %p215 = scmp.ne.s32.totalorder %s203, %s204
    %p216 = scmp.eq.s32.totalorder %s74, 1
    %p217 = por %p215, %p216
    %p219 = scmp.ne.s32.totalorder %s204, %s218
    %p220 = scmp.eq.s32.totalorder %s74, 0
    %p221 = por %p219, %p220
    %s223 = sadd.s32 %s222, 1
    %p226 = scmp.eq.s32.totalorder %s68, 1
    %p227 = scmp.ne.s32.totalorder %s222, %s224
    %p228 = scmp.eq.s32.totalorder %s68, 0
    %p229 = por %p227, %p228
    %p230 = scmp.ne.s32.totalorder %s222, %s224
    %p231 = scmp.eq.s32.totalorder %s73, 1
    %p232 = por %p230, %p231
    %p233 = scmp.ne.s32.totalorder %s224, %s225
    %p234 = scmp.eq.s32.totalorder %s73, 0
    %p235 = por %p233, %p234
    %p236 = scmp.ne.s32.totalorder %s224, %s225
    %p237 = scmp.eq.s32.totalorder %s74, 1
    %p238 = por %p236, %p237
    %p240 = scmp.ne.s32.totalorder %s225, %s239
    %p241 = scmp.eq.s32.totalorder %s74, 0
    %p242 = por %p240, %p241
    %s244 = sadd.s32 %s243, 1
    %p247 = scmp.eq.s32.totalorder %s68, 1
    %p248 = scmp.ne.s32.totalorder %s243, %s245
    %p249 = scmp.eq.s32.totalorder %s68, 0
    %p250 = por %p248, %p249
    %p251 = scmp.ne.s32.totalorder %s243, %s245
    %p252 = scmp.eq.s32.totalorder %s73, 1
    %p253 = por %p251, %p252
    %p254 = scmp.ne.s32.totalorder %s245, %s246
    %p255 = scmp.eq.s32.totalorder %s73, 0
    %p256 = por %p254, %p255
    %p257 = scmp.ne.s32.totalorder %s245, %s246
    %p258 = scmp.eq.s32.totalorder %s74, 1
    %p259 = por %p257, %p258
    %p261 = scmp.ne.s32.totalorder %s246, %s260
    %p262 = scmp.eq.s32.totalorder %s74, 0
    %p263 = por %p261, %p262
    %s265 = sadd.s32 %s264, 1
    %p268 = scmp.eq.s32.totalorder %s68, 1
    %p269 = scmp.ne.s32.totalorder %s264, %s266
    %p270 = scmp.eq.s32.totalorder %s68, 0
    %p271 = por %p269, %p270
    %p272 = scmp.ne.s32.totalorder %s264, %s266
    %p273 = scmp.eq.s32.totalorder %s73, 1
    %p274 = por %p272, %p273
    %p275 = scmp.ne.s32.totalorder %s266, %s267
    %p276 = scmp.eq.s32.totalorder %s73, 0
    %p277 = por %p275, %p276
    %p278 = scmp.ne.s32.totalorder %s266, %s267
    %p279 = scmp.eq.s32.totalorder %s74, 1
    %p280 = por %p278, %p279
    %p282 = scmp.ne.s32.totalorder %s267, %s281
    %p283 = scmp.eq.s32.totalorder %s74, 0
    %p284 = por %p282, %p283
    %s286 = sadd.s32 %s285, 1
    %p289 = scmp.eq.s32.totalorder %s68, 1
    %p290 = scmp.ne.s32.totalorder %s285, %s287
    %p291 = scmp.eq.s32.totalorder %s68, 0
    %p292 = por %p290, %p291
    %p293 = scmp.ne.s32.totalorder %s285, %s287
    %p294 = scmp.eq.s32.totalorder %s73, 1
    %p295 = por %p293, %p294
    %p296 = scmp.ne.s32.totalorder %s287, %s288
    %p297 = scmp.eq.s32.totalorder %s73, 0
    %p298 = por %p296, %p297
    %p299 = scmp.ne.s32.totalorder %s287, %s288
    %p300 = scmp.eq.s32.totalorder %s74, 1
    %p301 = por %p299, %p300
    %p303 = scmp.ne.s32.totalorder %s288, %s302
    %p304 = scmp.eq.s32.totalorder %s74, 0
    %p305 = por %p303, %p304
    %s307 = sadd.s32 %s306, 1
    %p310 = scmp.eq.s32.totalorder %s68, 1
    %p311 = scmp.ne.s32.totalorder %s306, %s308
    %p312 = scmp.eq.s32.totalorder %s68, 0
    %p313 = por %p311, %p312
    %p314 = scmp.ne.s32.totalorder %s306, %s308
    %p315 = scmp.eq.s32.totalorder %s73, 1
    %p316 = por %p314, %p315
    %p317 = scmp.ne.s32.totalorder %s308, %s309
    %p318 = scmp.eq.s32.totalorder %s73, 0
    %p319 = por %p317, %p318
    %p320 = scmp.ne.s32.totalorder %s308, %s309
    %p321 = scmp.eq.s32.totalorder %s74, 1
    %p322 = por %p320, %p321
    %p324 = scmp.ne.s32.totalorder %s309, %s323
    %p325 = scmp.eq.s32.totalorder %s74, 0
    %p326 = por %p324, %p325
    %s328 = sadd.s32 %s327, 1
    %p331 = scmp.eq.s32.totalorder %s68, 1
    %p332 = scmp.ne.s32.totalorder %s327, %s329
    %p333 = scmp.eq.s32.totalorder %s68, 0
    %p334 = por %p332, %p333
    %p335 = scmp.ne.s32.totalorder %s327, %s329
    %p336 = scmp.eq.s32.totalorder %s73, 1
    %p337 = por %p335, %p336
    %p338 = scmp.ne.s32.totalorder %s329, %s330
    %p339 = scmp.eq.s32.totalorder %s73, 0
    %p340 = por %p338, %p339
    %p341 = scmp.ne.s32.totalorder %s329, %s330
    %p342 = scmp.eq.s32.totalorder %s74, 1
    %p343 = por %p341, %p342
    %p345 = scmp.ne.s32.totalorder %s330, %s344
    %p346 = scmp.eq.s32.totalorder %s74, 0
    %p347 = por %p345, %p346
    %s349 = sadd.s32 %s348, 1
    %p352 = scmp.eq.s32.totalorder %s68, 1
    %p353 = scmp.ne.s32.totalorder %s348, %s350
    %p354 = scmp.eq.s32.totalorder %s68, 0
    %p355 = por %p353, %p354
    %p356 = scmp.ne.s32.totalorder %s348, %s350
    %p357 = scmp.eq.s32.totalorder %s73, 1
    %p358 = por %p356, %p357
    %p359 = scmp.ne.s32.totalorder %s350, %s351
    %p360 = scmp.eq.s32.totalorder %s73, 0
    %p361 = por %p359, %p360
    %p362 = scmp.ne.s32.totalorder %s350, %s351
    %p363 = scmp.eq.s32.totalorder %s74, 1
    %p364 = por %p362, %p363
    %p366 = scmp.ne.s32.totalorder %s351, %s365
    %p367 = scmp.eq.s32.totalorder %s74, 0
    %p368 = por %p366, %p367
    %s370 = sadd.s32 %s369, 1
    %p373 = scmp.eq.s32.totalorder %s68, 1
    %p374 = scmp.ne.s32.totalorder %s369, %s371
    %p375 = scmp.eq.s32.totalorder %s68, 0
    %p376 = por %p374, %p375
    %p377 = scmp.ne.s32.totalorder %s369, %s371
    %p378 = scmp.eq.s32.totalorder %s73, 1
    %p379 = por %p377, %p378
    %p380 = scmp.ne.s32.totalorder %s371, %s372
    %p381 = scmp.eq.s32.totalorder %s73, 0
    %p382 = por %p380, %p381
    %p383 = scmp.ne.s32.totalorder %s371, %s372
    %p384 = scmp.eq.s32.totalorder %s74, 1
    %p385 = por %p383, %p384
    %p387 = scmp.ne.s32.totalorder %s372, %s386
    %p388 = scmp.eq.s32.totalorder %s74, 0
    %p389 = por %p387, %p388
    %s391 = sadd.s32 %s390, 1
    %p394 = scmp.eq.s32.totalorder %s68, 1
    %p395 = scmp.ne.s32.totalorder %s390, %s392
    %p396 = scmp.eq.s32.totalorder %s68, 0
    %p397 = por %p395, %p396
    %p398 = scmp.ne.s32.totalorder %s390, %s392
    %p399 = scmp.eq.s32.totalorder %s73, 1
    %p400 = por %p398, %p399
    %p401 = scmp.ne.s32.totalorder %s392, %s393
    %p402 = scmp.eq.s32.totalorder %s73, 0
    %p403 = por %p401, %p402
    %p404 = scmp.ne.s32.totalorder %s392, %s393
    %p405 = scmp.eq.s32.totalorder %s74, 1
    %p406 = por %p404, %p405
    %p408 = scmp.ne.s32.totalorder %s393, %s407
    %p409 = scmp.eq.s32.totalorder %s74, 0
    %p410 = por %p408, %p409
    %s412 = sadd.s32 %s411, 1
    %p415 = scmp.eq.s32.totalorder %s68, 1
    %p416 = scmp.ne.s32.totalorder %s411, %s413
    %p417 = scmp.eq.s32.totalorder %s68, 0
    %p418 = por %p416, %p417
    %p419 = scmp.ne.s32.totalorder %s411, %s413
    %p420 = scmp.eq.s32.totalorder %s73, 1
    %p421 = por %p419, %p420
    %p422 = scmp.ne.s32.totalorder %s413, %s414
    %p423 = scmp.eq.s32.totalorder %s73, 0
    %p424 = por %p422, %p423
    %p425 = scmp.ne.s32.totalorder %s413, %s414
    %p426 = scmp.eq.s32.totalorder %s74, 1
    %p427 = por %p425, %p426
    %p429 = scmp.ne.s32.totalorder %s414, %s428
    %p430 = scmp.eq.s32.totalorder %s74, 0
    %p431 = por %p429, %p430
    %s433 = sadd.s32 %s432, 1
    %p436 = scmp.eq.s32.totalorder %s68, 1
    %p437 = scmp.ne.s32.totalorder %s432, %s434
    %p438 = scmp.eq.s32.totalorder %s68, 0
    %p439 = por %p437, %p438
    %p440 = scmp.ne.s32.totalorder %s432, %s434
    %p441 = scmp.eq.s32.totalorder %s73, 1
    %p442 = por %p440, %p441
    %p443 = scmp.ne.s32.totalorder %s434, %s435
    %p444 = scmp.eq.s32.totalorder %s73, 0
    %p445 = por %p443, %p444
    %p446 = scmp.ne.s32.totalorder %s434, %s435
    %p447 = scmp.eq.s32.totalorder %s74, 1
    %p448 = por %p446, %p447
    %p450 = scmp.ne.s32.totalorder %s435, %s449
    %p451 = scmp.eq.s32.totalorder %s74, 0
    %p452 = por %p450, %p451
    %s454 = sadd.s32 %s453, 1
    %p457 = scmp.eq.s32.totalorder %s68, 1
    %p458 = scmp.ne.s32.totalorder %s453, %s455
    %p459 = scmp.eq.s32.totalorder %s68, 0
    %p460 = por %p458, %p459
    %p461 = scmp.ne.s32.totalorder %s453, %s455
    %p462 = scmp.eq.s32.totalorder %s73, 1
    %p463 = por %p461, %p462
    %p464 = scmp.ne.s32.totalorder %s455, %s456
    %p465 = scmp.eq.s32.totalorder %s73, 0
    %p466 = por %p464, %p465
    %p467 = scmp.ne.s32.totalorder %s455, %s456
    %p468 = scmp.eq.s32.totalorder %s74, 1
    %p469 = por %p467, %p468
    %p471 = scmp.ne.s32.totalorder %s456, %s470
    %p472 = scmp.eq.s32.totalorder %s74, 0
    %p473 = por %p471, %p472
    %s475 = sadd.s32 %s474, 1
    %p478 = scmp.eq.s32.totalorder %s68, 1
    %p479 = scmp.ne.s32.totalorder %s474, %s476
    %p480 = scmp.eq.s32.totalorder %s68, 0
    %p481 = por %p479, %p480
    %p482 = scmp.ne.s32.totalorder %s474, %s476
    %p483 = scmp.eq.s32.totalorder %s73, 1
    %p484 = por %p482, %p483
    %p485 = scmp.ne.s32.totalorder %s476, %s477
    %p486 = scmp.eq.s32.totalorder %s73, 0
    %p487 = por %p485, %p486
    %p488 = scmp.ne.s32.totalorder %s476, %s477
    %p489 = scmp.eq.s32.totalorder %s74, 1
    %p490 = por %p488, %p489
    %p492 = scmp.ne.s32.totalorder %s477, %s491
    %p493 = scmp.eq.s32.totalorder %s74, 0
    %p494 = por %p492, %p493
    %s496 = sadd.s32 %s495, 1
    %p499 = scmp.eq.s32.totalorder %s68, 1
    %p500 = scmp.ne.s32.totalorder %s495, %s497
    %p501 = scmp.eq.s32.totalorder %s68, 0
    %p502 = por %p500, %p501
    %p503 = scmp.ne.s32.totalorder %s495, %s497
    %p504 = scmp.eq.s32.totalorder %s73, 1
    %p505 = por %p503, %p504
    %p506 = scmp.ne.s32.totalorder %s497, %s498
    %p507 = scmp.eq.s32.totalorder %s73, 0
    %p508 = por %p506, %p507
    %p509 = scmp.ne.s32.totalorder %s497, %s498
    %p510 = scmp.eq.s32.totalorder %s74, 1
    %p511 = por %p509, %p510
    %p513 = scmp.ne.s32.totalorder %s498, %s512
    %p514 = scmp.eq.s32.totalorder %s74, 0
    %p515 = por %p513, %p514
    %s517 = sadd.s32 %s516, 1
    %p520 = scmp.eq.s32.totalorder %s68, 1
    %p521 = scmp.ne.s32.totalorder %s516, %s518
    %p522 = scmp.eq.s32.totalorder %s68, 0
    %p523 = por %p521, %p522
    %p524 = scmp.ne.s32.totalorder %s516, %s518
    %p525 = scmp.eq.s32.totalorder %s73, 1
    %p526 = por %p524, %p525
    %p527 = scmp.ne.s32.totalorder %s518, %s519
    %p528 = scmp.eq.s32.totalorder %s73, 0
    %p529 = por %p527, %p528
    %p530 = scmp.ne.s32.totalorder %s518, %s519
    %p531 = scmp.eq.s32.totalorder %s74, 1
    %p532 = por %p530, %p531
    %p534 = scmp.ne.s32.totalorder %s519, %s533
    %p535 = scmp.eq.s32.totalorder %s74, 0
    %p536 = por %p534, %p535
    %s538 = sadd.s32 %s537, 1
    %p541 = scmp.eq.s32.totalorder %s68, 1
    %p542 = scmp.ne.s32.totalorder %s537, %s539
    %p543 = scmp.eq.s32.totalorder %s68, 0
    %p544 = por %p542, %p543
    %p545 = scmp.ne.s32.totalorder %s537, %s539
    %p546 = scmp.eq.s32.totalorder %s73, 1
    %p547 = por %p545, %p546
    %p548 = scmp.ne.s32.totalorder %s539, %s540
    %p549 = scmp.eq.s32.totalorder %s73, 0
    %p550 = por %p548, %p549
    %p551 = scmp.ne.s32.totalorder %s539, %s540
    %p552 = scmp.eq.s32.totalorder %s74, 1
    %p553 = por %p551, %p552
    %p555 = scmp.ne.s32.totalorder %s540, %s554
    %p556 = scmp.eq.s32.totalorder %s74, 0
    %p557 = por %p555, %p556
    %s559 = sadd.s32 %s558, 1
    %p562 = scmp.eq.s32.totalorder %s68, 1
    %p563 = scmp.ne.s32.totalorder %s558, %s560
    %p564 = scmp.eq.s32.totalorder %s68, 0
    %p565 = por %p563, %p564
    %p566 = scmp.ne.s32.totalorder %s558, %s560
    %p567 = scmp.eq.s32.totalorder %s73, 1
    %p568 = por %p566, %p567
    %p569 = scmp.ne.s32.totalorder %s560, %s561
    %p570 = scmp.eq.s32.totalorder %s73, 0
    %p571 = por %p569, %p570
    %p572 = scmp.ne.s32.totalorder %s560, %s561
    %p573 = scmp.eq.s32.totalorder %s74, 1
    %p574 = por %p572, %p573
    %p576 = scmp.ne.s32.totalorder %s561, %s575
    %p577 = scmp.eq.s32.totalorder %s74, 0
    %p578 = por %p576, %p577
    %s580 = sadd.s32 %s579, 1
    %p583 = scmp.eq.s32.totalorder %s68, 1
    %p584 = scmp.ne.s32.totalorder %s579, %s581
    %p585 = scmp.eq.s32.totalorder %s68, 0
    %p586 = por %p584, %p585
    %p587 = scmp.ne.s32.totalorder %s579, %s581
    %p588 = scmp.eq.s32.totalorder %s73, 1
    %p589 = por %p587, %p588
    %p590 = scmp.ne.s32.totalorder %s581, %s582
    %p591 = scmp.eq.s32.totalorder %s73, 0
    %p592 = por %p590, %p591
    %p593 = scmp.ne.s32.totalorder %s581, %s582
    %p594 = scmp.eq.s32.totalorder %s74, 1
    %p595 = por %p593, %p594
    %p597 = scmp.ne.s32.totalorder %s582, %s596
    %p598 = scmp.eq.s32.totalorder %s74, 0
    %p599 = por %p597, %p598
    %s601 = sadd.s32 %s600, 1
    %p604 = scmp.eq.s32.totalorder %s68, 1
    %p605 = scmp.ne.s32.totalorder %s600, %s602
    %p606 = scmp.eq.s32.totalorder %s68, 0
    %p607 = por %p605, %p606
    %p608 = scmp.ne.s32.totalorder %s600, %s602
    %p609 = scmp.eq.s32.totalorder %s73, 1
    %p610 = por %p608, %p609
    %p611 = scmp.ne.s32.totalorder %s602, %s603
    %p612 = scmp.eq.s32.totalorder %s73, 0
    %p613 = por %p611, %p612
    %p614 = scmp.ne.s32.totalorder %s602, %s603
    %p615 = scmp.eq.s32.totalorder %s74, 1
    %p616 = por %p614, %p615
    %p618 = scmp.ne.s32.totalorder %s603, %s617
    %p619 = scmp.eq.s32.totalorder %s74, 0
    %p620 = por %p618, %p619
    %s622 = sadd.s32 %s621, 1
    %p625 = scmp.eq.s32.totalorder %s68, 1
    %p626 = scmp.ne.s32.totalorder %s621, %s623
    %p627 = scmp.eq.s32.totalorder %s68, 0
    %p628 = por %p626, %p627
    %p629 = scmp.ne.s32.totalorder %s621, %s623
    %p630 = scmp.eq.s32.totalorder %s73, 1
    %p631 = por %p629, %p630
    %p632 = scmp.ne.s32.totalorder %s623, %s624
    %p633 = scmp.eq.s32.totalorder %s73, 0
    %p634 = por %p632, %p633
    %p635 = scmp.ne.s32.totalorder %s623, %s624
    %p636 = scmp.eq.s32.totalorder %s74, 1
    %p637 = por %p635, %p636
    %p639 = scmp.ne.s32.totalorder %s624, %s638
    %p640 = scmp.eq.s32.totalorder %s74, 0
    %p641 = por %p639, %p640
    %s643 = sadd.s32 %s642, 1
    %p646 = scmp.eq.s32.totalorder %s68, 1
    %p647 = scmp.ne.s32.totalorder %s642, %s644
    %p648 = scmp.eq.s32.totalorder %s68, 0
    %p649 = por %p647, %p648
    %p650 = scmp.ne.s32.totalorder %s642, %s644
    %p651 = scmp.eq.s32.totalorder %s73, 1
    %p652 = por %p650, %p651
    %p653 = scmp.ne.s32.totalorder %s644, %s645
    %p654 = scmp.eq.s32.totalorder %s73, 0
    %p655 = por %p653, %p654
    %p656 = scmp.ne.s32.totalorder %s644, %s645
    %p657 = scmp.eq.s32.totalorder %s74, 1
    %p658 = por %p656, %p657
    %p660 = scmp.ne.s32.totalorder %s645, %s659
    %p661 = scmp.eq.s32.totalorder %s74, 0
    %p662 = por %p660, %p661
    %s664 = sadd.s32 %s663, 1
    %p667 = scmp.eq.s32.totalorder %s68, 1
    %p668 = scmp.ne.s32.totalorder %s663, %s665
    %p669 = scmp.eq.s32.totalorder %s68, 0
    %p670 = por %p668, %p669
    %p671 = scmp.ne.s32.totalorder %s663, %s665
    %p672 = scmp.eq.s32.totalorder %s73, 1
    %p673 = por %p671, %p672
    %p674 = scmp.ne.s32.totalorder %s665, %s666
    %p675 = scmp.eq.s32.totalorder %s73, 0
    %p676 = por %p674, %p675
    %p677 = scmp.ne.s32.totalorder %s665, %s666
    %p678 = scmp.eq.s32.totalorder %s74, 1
    %p679 = por %p677, %p678
    %p681 = scmp.ne.s32.totalorder %s666, %s680
    %p682 = scmp.eq.s32.totalorder %s74, 0
    %p683 = por %p681, %p682
    %s685 = sadd.s32 %s684, 1
    %p688 = scmp.eq.s32.totalorder %s68, 1
    %p689 = scmp.ne.s32.totalorder %s684, %s686
    %p690 = scmp.eq.s32.totalorder %s68, 0
    %p691 = por %p689, %p690
    %p692 = scmp.ne.s32.totalorder %s684, %s686
    %p693 = scmp.eq.s32.totalorder %s73, 1
    %p694 = por %p692, %p693
    %p695 = scmp.ne.s32.totalorder %s686, %s687
    %p696 = scmp.eq.s32.totalorder %s73, 0
    %p697 = por %p695, %p696
    %p698 = scmp.ne.s32.totalorder %s686, %s687
    %p699 = scmp.eq.s32.totalorder %s74, 1
    %p700 = por %p698, %p699
    %p702 = scmp.ne.s32.totalorder %s687, %s701
    %p703 = scmp.eq.s32.totalorder %s74, 0
    %p704 = por %p702, %p703
    %s705 = ssub.s32 %s68, %s75
    %p706 = scmp.eq.s32.totalorder %s705, 0
    %s708 = sadd.s32 %s707, 1
    %s709 = scalar_select %p706, %s707, %s708
    %p712 = pneg %p706
    %p713 = scmp.eq.s32.totalorder %s68, 1
    %p714 = por %p712, %p713
    %p715 = scmp.ne.s32.totalorder %s707, %s710
    %p716 = scmp.eq.s32.totalorder %s68, 0
    %p717 = por %p715, %p716
    %p718 = scmp.ne.s32.totalorder %s707, %s710
    %p719 = scmp.eq.s32.totalorder %s73, 1
    %p720 = por %p718, %p719
    %p721 = scmp.ne.s32.totalorder %s710, %s711
    %p722 = scmp.eq.s32.totalorder %s73, 0
    %p723 = por %p721, %p722
    %p724 = scmp.ne.s32.totalorder %s710, %s711
    %p725 = scmp.eq.s32.totalorder %s74, 1
    %p726 = por %p724, %p725
    %p728 = scmp.ne.s32.totalorder %s711, %s727
    %p729 = scmp.eq.s32.totalorder %s74, 0
    %p730 = por %p728, %p729
    %s731 = ssub.s32 %s68, %s75
    %p732 = scmp.eq.s32.totalorder %s731, 0
    %s734 = sadd.s32 %s733, 1
    %s735 = scalar_select %p732, %s733, %s734
    %p738 = pneg %p732
    %p739 = scmp.eq.s32.totalorder %s68, 1
    %p740 = por %p738, %p739
    %p741 = scmp.ne.s32.totalorder %s733, %s736
    %p742 = scmp.eq.s32.totalorder %s68, 0
    %p743 = por %p741, %p742
    %p744 = scmp.ne.s32.totalorder %s733, %s736
    %p745 = scmp.eq.s32.totalorder %s73, 1
    %p746 = por %p744, %p745
    %p747 = scmp.ne.s32.totalorder %s736, %s737
    %p748 = scmp.eq.s32.totalorder %s73, 0
    %p749 = por %p747, %p748
    %p750 = scmp.ne.s32.totalorder %s736, %s737
    %p751 = scmp.eq.s32.totalorder %s74, 1
    %p752 = por %p750, %p751
    %p754 = scmp.ne.s32.totalorder %s737, %s753
    %p755 = scmp.eq.s32.totalorder %s74, 0
    %p756 = por %p754, %p755
    %p757 = scmp.le.s32.totalorder 1, %s68
    %p758 = scmp.lt.s32.totalorder %s68, 3
    %p759 = pnand %p757, %p758
    %p760 = pneg %p759
    // Predicated region
    $region9: #{custom_seq2seq_forward.3} parent=5 // pred_check
      _
    $region10: #{custom_seq2seq_forward.3} parent=5 // pred_check_branch
      %762 = sbr.rel (%p759) target = $region12
    $region11: #{custom_seq2seq_forward.3} parent=5 // pred_region
      %s763 = ssub.s32 %s68, 1
      // Predicated region
      $region13: #{custom_seq2seq_forward.3} parent=11 // pred_check
        %p764 = pneg %p193
      $region14: #{custom_seq2seq_forward.3} parent=11 // pred_check_branch
        %766 = sbr.rel (%p764) target = $region16
      $region15: #{custom_seq2seq_forward.3} parent=11 // pred_region
        _
      $region16: #{custom_seq2seq_forward.3} parent=11 // pred_fallthru
        _
      // Predicated region
      $region17: #{custom_seq2seq_forward.3} parent=11 // pred_check
        %p767 = pneg %p214
      $region18: #{custom_seq2seq_forward.3} parent=11 // pred_check_branch
        %769 = sbr.rel (%p767) target = $region20
      $region19: #{custom_seq2seq_forward.3} parent=11 // pred_region
        _
      $region20: #{custom_seq2seq_forward.3} parent=11 // pred_fallthru
        _
      // Predicated region
      $region21: #{custom_seq2seq_forward.3} parent=11 // pred_check
        %p770 = pneg %p235
      $region22: #{custom_seq2seq_forward.3} parent=11 // pred_check_branch
        %772 = sbr.rel (%p770) target = $region24
      $region23: #{custom_seq2seq_forward.3} parent=11 // pred_region
        _
      $region24: #{custom_seq2seq_forward.3} parent=11 // pred_fallthru
        _
      // Predicated region
      $region25: #{custom_seq2seq_forward.3} parent=11 // pred_check
        %p773 = pneg %p256
      $region26: #{custom_seq2seq_forward.3} parent=11 // pred_check_branch
        %775 = sbr.rel (%p773) target = $region28
      $region27: #{custom_seq2seq_forward.3} parent=11 // pred_region
        _
      $region28: #{custom_seq2seq_forward.3} parent=11 // pred_fallthru
        _
      // Predicated region
      $region29: #{custom_seq2seq_forward.3} parent=11 // pred_check
        %p776 = pneg %p277
      $region30: #{custom_seq2seq_forward.3} parent=11 // pred_check_branch
        %778 = sbr.rel (%p776) target = $region32
      $region31: #{custom_seq2seq_forward.3} parent=11 // pred_region
        _
      $region32: #{custom_seq2seq_forward.3} parent=11 // pred_fallthru
        _
      // Predicated region
      $region33: #{custom_seq2seq_forward.3} parent=11 // pred_check
        %p779 = pneg %p298
      $region34: #{custom_seq2seq_forward.3} parent=11 // pred_check_branch
        %781 = sbr.rel (%p779) target = $region36
      $region35: #{custom_seq2seq_forward.3} parent=11 // pred_region
        _
      $region36: #{custom_seq2seq_forward.3} parent=11 // pred_fallthru
        _
      // Predicated region
      $region37: #{custom_seq2seq_forward.3} parent=11 // pred_check
        %p782 = pneg %p319
      $region38: #{custom_seq2seq_forward.3} parent=11 // pred_check_branch
        %784 = sbr.rel (%p782) target = $region40
      $region39: #{custom_seq2seq_forward.3} parent=11 // pred_region
        _
      $region40: #{custom_seq2seq_forward.3} parent=11 // pred_fallthru
        _
      // Predicated region
      $region41: #{custom_seq2seq_forward.3} parent=11 // pred_check
        %p785 = pneg %p340
      $region42: #{custom_seq2seq_forward.3} parent=11 // pred_check_branch
        %787 = sbr.rel (%p785) target = $region44
      $region43: #{custom_seq2seq_forward.3} parent=11 // pred_region
        _
      $region44: #{custom_seq2seq_forward.3} parent=11 // pred_fallthru
        _
      // Predicated region
      $region45: #{custom_seq2seq_forward.3} parent=11 // pred_check
        %p788 = pneg %p361
      $region46: #{custom_seq2seq_forward.3} parent=11 // pred_check_branch
        %790 = sbr.rel (%p788) target = $region48
      $region47: #{custom_seq2seq_forward.3} parent=11 // pred_region
        _
      $region48: #{custom_seq2seq_forward.3} parent=11 // pred_fallthru
        _
      // Predicated region
      $region49: #{custom_seq2seq_forward.3} parent=11 // pred_check
        %p791 = pneg %p382
      $region50: #{custom_seq2seq_forward.3} parent=11 // pred_check_branch
        %793 = sbr.rel (%p791) target = $region52
      $region51: #{custom_seq2seq_forward.3} parent=11 // pred_region
        _
      $region52: #{custom_seq2seq_forward.3} parent=11 // pred_fallthru
        _
      // Predicated region
      $region53: #{custom_seq2seq_forward.3} parent=11 // pred_check
        %p794 = pneg %p403
      $region54: #{custom_seq2seq_forward.3} parent=11 // pred_check_branch
        %796 = sbr.rel (%p794) target = $region56
      $region55: #{custom_seq2seq_forward.3} parent=11 // pred_region
        _
      $region56: #{custom_seq2seq_forward.3} parent=11 // pred_fallthru
        _
      // Predicated region
      $region57: #{custom_seq2seq_forward.3} parent=11 // pred_check
        %p797 = pneg %p424
      $region58: #{custom_seq2seq_forward.3} parent=11 // pred_check_branch
        %799 = sbr.rel (%p797) target = $region60
      $region59: #{custom_seq2seq_forward.3} parent=11 // pred_region
        _
      $region60: #{custom_seq2seq_forward.3} parent=11 // pred_fallthru
        _
      // Predicated region
      $region61: #{custom_seq2seq_forward.3} parent=11 // pred_check
        %p800 = pneg %p445
      $region62: #{custom_seq2seq_forward.3} parent=11 // pred_check_branch
        %802 = sbr.rel (%p800) target = $region64
      $region63: #{custom_seq2seq_forward.3} parent=11 // pred_region
        _
      $region64: #{custom_seq2seq_forward.3} parent=11 // pred_fallthru
        _
      // Predicated region
      $region65: #{custom_seq2seq_forward.3} parent=11 // pred_check
        %p803 = pneg %p466
      $region66: #{custom_seq2seq_forward.3} parent=11 // pred_check_branch
        %805 = sbr.rel (%p803) target = $region68
      $region67: #{custom_seq2seq_forward.3} parent=11 // pred_region
        _
      $region68: #{custom_seq2seq_forward.3} parent=11 // pred_fallthru
        _
      // Predicated region
      $region69: #{custom_seq2seq_forward.3} parent=11 // pred_check
        %p806 = pneg %p487
      $region70: #{custom_seq2seq_forward.3} parent=11 // pred_check_branch
        %808 = sbr.rel (%p806) target = $region72
      $region71: #{custom_seq2seq_forward.3} parent=11 // pred_region
        _
      $region72: #{custom_seq2seq_forward.3} parent=11 // pred_fallthru
        _
      // Predicated region
      $region73: #{custom_seq2seq_forward.3} parent=11 // pred_check
        %p809 = pneg %p508
      $region74: #{custom_seq2seq_forward.3} parent=11 // pred_check_branch
        %811 = sbr.rel (%p809) target = $region76
      $region75: #{custom_seq2seq_forward.3} parent=11 // pred_region
        _
      $region76: #{custom_seq2seq_forward.3} parent=11 // pred_fallthru
        _
      // Predicated region
      $region77: #{custom_seq2seq_forward.3} parent=11 // pred_check
        %p812 = pneg %p529
      $region78: #{custom_seq2seq_forward.3} parent=11 // pred_check_branch
        %814 = sbr.rel (%p812) target = $region80
      $region79: #{custom_seq2seq_forward.3} parent=11 // pred_region
        _
      $region80: #{custom_seq2seq_forward.3} parent=11 // pred_fallthru
        _
      // Predicated region
      $region81: #{custom_seq2seq_forward.3} parent=11 // pred_check
        %p815 = pneg %p550
      $region82: #{custom_seq2seq_forward.3} parent=11 // pred_check_branch
        %817 = sbr.rel (%p815) target = $region84
      $region83: #{custom_seq2seq_forward.3} parent=11 // pred_region
        _
      $region84: #{custom_seq2seq_forward.3} parent=11 // pred_fallthru
        _
      // Predicated region
      $region85: #{custom_seq2seq_forward.3} parent=11 // pred_check
        %p818 = pneg %p571
      $region86: #{custom_seq2seq_forward.3} parent=11 // pred_check_branch
        %820 = sbr.rel (%p818) target = $region88
      $region87: #{custom_seq2seq_forward.3} parent=11 // pred_region
        _
      $region88: #{custom_seq2seq_forward.3} parent=11 // pred_fallthru
        _
      // Predicated region
      $region89: #{custom_seq2seq_forward.3} parent=11 // pred_check
        %p821 = pneg %p592
      $region90: #{custom_seq2seq_forward.3} parent=11 // pred_check_branch
        %823 = sbr.rel (%p821) target = $region92
      $region91: #{custom_seq2seq_forward.3} parent=11 // pred_region
        _
      $region92: #{custom_seq2seq_forward.3} parent=11 // pred_fallthru
        _
      // Predicated region
      $region93: #{custom_seq2seq_forward.3} parent=11 // pred_check
        %p824 = pneg %p613
      $region94: #{custom_seq2seq_forward.3} parent=11 // pred_check_branch
        %826 = sbr.rel (%p824) target = $region96
      $region95: #{custom_seq2seq_forward.3} parent=11 // pred_region
        _
      $region96: #{custom_seq2seq_forward.3} parent=11 // pred_fallthru
        _
      // Predicated region
      $region97: #{custom_seq2seq_forward.3} parent=11 // pred_check
        %p827 = pneg %p634
      $region98: #{custom_seq2seq_forward.3} parent=11 // pred_check_branch
        %829 = sbr.rel (%p827) target = $region100
      $region99: #{custom_seq2seq_forward.3} parent=11 // pred_region
        _
      $region100: #{custom_seq2seq_forward.3} parent=11 // pred_fallthru
        _
      // Predicated region
      $region101: #{custom_seq2seq_forward.3} parent=11 // pred_check
        %p830 = pneg %p655
      $region102: #{custom_seq2seq_forward.3} parent=11 // pred_check_branch
        %832 = sbr.rel (%p830) target = $region104
      $region103: #{custom_seq2seq_forward.3} parent=11 // pred_region
        _
      $region104: #{custom_seq2seq_forward.3} parent=11 // pred_fallthru
        _
      // Predicated region
      $region105: #{custom_seq2seq_forward.3} parent=11 // pred_check
        %p833 = pneg %p676
      $region106: #{custom_seq2seq_forward.3} parent=11 // pred_check_branch
        %835 = sbr.rel (%p833) target = $region108
      $region107: #{custom_seq2seq_forward.3} parent=11 // pred_region
        _
      $region108: #{custom_seq2seq_forward.3} parent=11 // pred_fallthru
        _
      // Predicated region
      $region109: #{custom_seq2seq_forward.3} parent=11 // pred_check
        %p836 = pneg %p697
      $region110: #{custom_seq2seq_forward.3} parent=11 // pred_check_branch
        %838 = sbr.rel (%p836) target = $region112
      $region111: #{custom_seq2seq_forward.3} parent=11 // pred_region
        _
      $region112: #{custom_seq2seq_forward.3} parent=11 // pred_fallthru
        _
    $region12: #{custom_seq2seq_forward.3} parent=5 // pred_fallthru
      _
    %p839 = scmp.lt.s32.totalorder %s68, 2
    // Predicated region
    $region113: #{custom_seq2seq_forward.3} parent=5 // pred_check
      %p840 = pneg %p839
    $region114: #{custom_seq2seq_forward.3} parent=5 // pred_check_branch
      %842 = sbr.rel (%p840) target = $region116
    $region115: #{custom_seq2seq_forward.3} parent=5 // pred_region
      // Predicated region
      $region117: #{custom_seq2seq_forward.3} parent=115 // pred_check
        %p843 = pneg %p88
      $region118: #{custom_seq2seq_forward.3} parent=115 // pred_check_branch
        %845 = sbr.rel (%p843) target = $region120
      $region119: #{custom_seq2seq_forward.3} parent=115 // pred_region
        %p846 = scmp.lt.s32.totalorder %s68, 1
        %s847 = scalar_select %p846, %s68, 1
        %s848 = smul.addr %s847, 8
        %s849 = scalar_lea.vmem %s1, %s848
      $region120: #{custom_seq2seq_forward.3} parent=115 // pred_fallthru
        _
      // Predicated region
      $region121: #{custom_seq2seq_forward.3} parent=115 // pred_check
        %p850 = pneg %p114
      $region122: #{custom_seq2seq_forward.3} parent=115 // pred_check_branch
        %852 = sbr.rel (%p850) target = $region124
      $region123: #{custom_seq2seq_forward.3} parent=115 // pred_region
        %p853 = scmp.lt.s32.totalorder %s68, 1
        %s854 = scalar_select %p853, %s68, 1
        %s855 = scalar_lea.vmem %s3, %s854
      $region124: #{custom_seq2seq_forward.3} parent=115 // pred_fallthru
        _
      // Predicated region
      $region125: #{custom_seq2seq_forward.3} parent=115 // pred_check
        %p856 = pneg %p140
      $region126: #{custom_seq2seq_forward.3} parent=115 // pred_check_branch
        %858 = sbr.rel (%p856) target = $region128
      $region127: #{custom_seq2seq_forward.3} parent=115 // pred_region
        %p859 = scmp.lt.s32.totalorder %s68, 1
        %s860 = scalar_select %p859, %s68, 1
        %s861 = scalar_lea.vmem %s5, %s860
      $region128: #{custom_seq2seq_forward.3} parent=115 // pred_fallthru
        _
      // Predicated region
      $region129: #{custom_seq2seq_forward.3} parent=115 // pred_check
        %p862 = pneg %p166
      $region130: #{custom_seq2seq_forward.3} parent=115 // pred_check_branch
        %864 = sbr.rel (%p862) target = $region132
      $region131: #{custom_seq2seq_forward.3} parent=115 // pred_region
        %p865 = scmp.lt.s32.totalorder %s68, 1
        %s866 = scalar_select %p865, %s68, 1
        %s867 = smul.addr %s866, 4
        %s868 = scalar_lea.vmem %s7, %s867
      $region132: #{custom_seq2seq_forward.3} parent=115 // pred_fallthru
        _
    $region116: #{custom_seq2seq_forward.3} parent=5 // pred_fallthru
      _
    %p869 = scmp.le.s32.totalorder 1, %s68
    %p870 = scmp.lt.s32.totalorder %s68, 3
    %p871 = pnand %p869, %p870
    %p872 = pneg %p871
    // Predicated region
    $region133: #{custom_seq2seq_forward.3} parent=5 // pred_check
      _
    $region134: #{custom_seq2seq_forward.3} parent=5 // pred_check_branch
      %874 = sbr.rel (%p871) target = $region136
    $region135: #{custom_seq2seq_forward.3} parent=5 // pred_region
      %s875 = ssub.s32 %s68, 1
      %p876 = scmp.lt.s32.totalorder %s73, 1
      %s877 = scalar_select %p876, %s73, 1
      %s878 = smul.addr %s877, 8
      %s879 = scalar_lea.vmem %s1, %s878
      %p880 = pneg %p94
      %p881 = pneg %p91
      %p882 = scmp.lt.s32.totalorder %s73, 1
      %s883 = scalar_select %p882, %s73, 1
      %s884 = scalar_lea.vmem %s3, %s883
      %p885 = pneg %p120
      %p886 = pneg %p117
      %p887 = scmp.lt.s32.totalorder %s73, 1
      %s888 = scalar_select %p887, %s73, 1
      %s889 = scalar_lea.vmem %s5, %s888
      %p890 = pneg %p146
      %p891 = pneg %p143
      %p892 = scmp.lt.s32.totalorder %s73, 1
      %s893 = scalar_select %p892, %s73, 1
      %s894 = smul.addr %s893, 4
      %s895 = scalar_lea.vmem %s7, %s894
      %p896 = pneg %p172
      %p897 = pneg %p169
      %p898 = pneg %p193
      %p899 = pneg %p190
      %p900 = pneg %p214
      %p901 = pneg %p211
      %p902 = pneg %p235
      %p903 = pneg %p232
      %p904 = pneg %p256
      %p905 = pneg %p253
      %p906 = pneg %p277
      %p907 = pneg %p274
      %p908 = pneg %p298
      %p909 = pneg %p295
      %p910 = pneg %p319
      %p911 = pneg %p316
      %p912 = pneg %p340
      %p913 = pneg %p337
      %p914 = pneg %p361
      %p915 = pneg %p358
      %p916 = pneg %p382
      %p917 = pneg %p379
      %p918 = pneg %p403
      %p919 = pneg %p400
      %p920 = pneg %p424
      %p921 = pneg %p421
      %p922 = pneg %p445
      %p923 = pneg %p442
      %p924 = pneg %p466
      %p925 = pneg %p463
      %p926 = pneg %p487
      %p927 = pneg %p484
      %p928 = pneg %p508
      %p929 = pneg %p505
      %p930 = pneg %p529
      %p931 = pneg %p526
      %p932 = pneg %p550
      %p933 = pneg %p547
      %p934 = pneg %p571
      %p935 = pneg %p568
      %p936 = pneg %p592
      %p937 = pneg %p589
      %p938 = pneg %p613
      %p939 = pneg %p610
      %p940 = pneg %p634
      %p941 = pneg %p631
      %p942 = pneg %p655
      %p943 = pneg %p652
      %p944 = pneg %p676
      %p945 = pneg %p673
      %p946 = pneg %p697
      %p947 = pneg %p694
      %p948 = pneg %p723
      %p949 = pneg %p720
      %p950 = scmp.lt.s32.totalorder %s73, 1
      %s951 = scalar_select %p950, %s73, 1
      %s952 = smul.addr %s951, 8
      %s953 = scalar_lea.vmem %s59, %s952
      %p954 = pneg %p749
      %p955 = pneg %p746
      %p956 = scmp.lt.s32.totalorder %s73, 1
      %s957 = scalar_select %p956, %s73, 1
      %s958 = scalar_lea.vmem %s61, %s957
      %p959 = scmp.lt.s32.totalorder %s73, 1
      %s960 = scalar_select %p959, %s73, 1
      %s961 = smul.addr %s960, 8
      %s962 = scalar_lea.vmem %s1, %s961
      %p963 = scmp.lt.s32.totalorder %s73, 1
      %s964 = scalar_select %p963, %s73, 1
      %s965 = scalar_lea.vmem %s3, %s964
      %p966 = scmp.lt.s32.totalorder %s73, 1
      %s967 = scalar_select %p966, %s73, 1
      %s968 = scalar_lea.vmem %s5, %s967
      %p969 = scmp.lt.s32.totalorder %s73, 1
      %s970 = scalar_select %p969, %s73, 1
      %s971 = smul.addr %s970, 4
      %s972 = scalar_lea.vmem %s7, %s971
      %p973 = scmp.lt.s32.totalorder %s73, 1
      %s974 = scalar_select %p973, %s73, 1
      %s975 = smul.addr %s974, 8
      %s976 = scalar_lea.vmem %s59, %s975
      %p977 = scmp.lt.s32.totalorder %s73, 1
      %s978 = scalar_select %p977, %s73, 1
      %s979 = scalar_lea.vmem %s61, %s978
      %v981 = vld [vmem:[%s962] sm:$0xff]
      %v982 = vld [vmem:[%s965] sm:$0x1]
      %v983 = vld [vmem:[%s968] sm:$0x1]
      %v984 = vld [vmem:[%s972] sm:$0xf]
      %vm985 = vcmp.gt.s32.totalorder %v981, 0
      %v986 = vld [vmem:[%s9 + $0x1] sm:$0x1]
      %v987 = vld [vmem:[%s9] sm:$0x1]
      %v988 = vsel %vm985, 1, 0
      %989 = vset.pattern.permute.xlu0 0
      %990 = vperm.xlu0 %989, %v988
      %v991 = vpop.permute.xlu0 %990
      %vm992 = vcmp.eq.s32.totalorder %v991, 1
      %v993 = vlaneseq
      %v994 = vshrl.u32 %v993, 7
      %v995 = vsub.s32 0, %v994
      %v996 = vrot.slane %v986, %v995
      %v997 = vlaneseq
      %v998 = vshrl.u32 %v997, 7
      %v999 = vsub.s32 0, %v998
      %v1000 = vrot.slane %v987, %v999
      %v1001 = vsel %vm992, %v996, %v1000
      %v1002 = vmul.f32 %v1001, 5.656854
      %v1003 = vld [vmem:[%s11] sm:$0xff]
      %v1004 = vadd.f32 %v1002, %v1003
      %v1005 = vpack.c.bf16 %v1004, %v1004
      %v1006 = vld [vmem:[%s15] sm:$0xf]
      %v1007 = vld [vmem:[%s15 + $0x4] sm:$0xf]
      %v1008 = vld [vmem:[%s15 + $0x8] sm:$0xf]
      %v1009 = vld [vmem:[%s15 + $0xc] sm:$0xf]
      %v1010 = vld [vmem:[%s17] sm:$0x1]
      %v1012 = vlaneseq
      %v1013 = vshrl.u32 %v1012, 7
      %v1014 = vsub.s32 0, %v1013
      %v1015 = vrot.slane %v1010, %v1014
      %v1021 = vunpack.c.l.b16 %v1006
      %v1022 = vunpack.c.l.b16 %v1007
      %v1023 = vunpack.c.l.b16 %v1008
      %v1024 = vunpack.c.l.b16 %v1009
      %v1025 = vpack.c.b16 %v1022, %v1021
      %v1026 = vpack.c.b16 %v1024, %v1023
      %vm1029 = vcmask 261120
      %v1031 = vsel %vm1029, %v1005, 0
      %1033 = vmatprep.subr.bf16.mxu0 0
      %1034 = vmatpush1.bf16.msra.mxu0 %v1025
      %1035 = vmatprep.subr.bf16.mxu0 0
      %1036 = vmatpush1.bf16.msra.mxu0 %v1026
      %1037 = vmatprep.subr.bf16.mxu0 0
      %1038 = vmatpush1.bf16.msra.mxu0 0
      %1039 = vmatprep.subr.bf16.mxu0 0
      %1040 = vmatpush1.bf16.msra.mxu0 0
      %1041 = vmatprep.subr.bf16.mxu0 0
      %1042 = vmatpush1.bf16.msra.mxu0 0
      %1043 = vmatprep.subr.bf16.mxu0 0
      %1044 = vmatpush1.bf16.msra.mxu0 0
      %1045 = vmatprep.subr.bf16.mxu0 0
      %1046 = vmatpush1.bf16.msra.mxu0 0
      %1047 = vmatprep.subr.bf16.mxu0 0
      %1048 = vmatpush1.bf16.msra.mxu0 0
      %1049 = vmatprep.subr.bf16.mxu0 0
      %1050 = vmatpush1.bf16.msra.mxu0 0
      %1051 = vmatprep.subr.bf16.mxu0 0
      %1052 = vmatpush1.bf16.msra.mxu0 0
      %1053 = vmatprep.subr.bf16.mxu0 0
      %1054 = vmatpush1.bf16.msra.mxu0 0
      %1055 = vmatprep.subr.bf16.mxu0 0
      %1056 = vmatpush1.bf16.msra.mxu0 0
      %1057 = vmatprep.subr.bf16.mxu0 0
      %1058 = vmatpush1.bf16.msra.mxu0 0
      %1059 = vmatprep.subr.bf16.mxu0 0
      %1060 = vmatpush1.bf16.msra.mxu0 0
      %1061 = vmatprep.subr.bf16.mxu0 0
      %1062 = vmatpush1.bf16.msra.mxu0 0
      %1063 = vmatprep.subr.bf16.mxu0 0
      %1064 = vmatpush1.bf16.msra.mxu0 0
      %1065 = vmatprep.mubr.bf16.mxu0 0
      %1066 = vmatmul.mubr.bf16.gmra.mrb[0].mxu0 %v1031
      %v1067 = vpop.f32.mrb[0].mxu0
      %v1068 = vadd.f32 %v1015, %v1067
      %v1069 = vpop.f32.mrb[0].mxu0
      %v1070 = vpop.f32.mrb[0].mxu0
      %v1071 = vpop.f32.mrb[0].mxu0
      %1072 = vdwg.mxu0
      %v1073 = vmul.f32 %v1068, 0.35355338
      %v1074 = vsub.f32 %v982, 1.0
      %v1075 = vmul.f32 %v1074, 1e+30
      %v1076 = vpack.c.bf16 %v1073, %v1073
      %v1077 = vpack.c.bf16 %v1068, %v1068
      %v1079 = vlaneseq
      %v1080 = vshrl.u32 %v1079, 7
      %v1081 = vsub.s32 0, %v1080
      %v1082 = vrot.slane %v1075, %v1081
      %1085 = vrot.lane.b32.xlu0 %v1077, 96
      %v1086 = vpop.permute.xlu0 %1085
      %vm1087 = vcmask 64512
      %v1089 = vsel %vm1087, %v1076, 0
      %v1092 = vsel %vm1087, %v1086, 0
      %1094 = vmatprep.subr.bf16.mxu0 0
      %1095 = vmatpush1.bf16.xpose.msra.mxu0 %v1092
      %1096 = vmatprep.subr.bf16.mxu0 0
      %1097 = vmatpush1.bf16.xpose.msra.mxu0 0
      %1098 = vmatprep.subr.bf16.mxu0 0
      %1099 = vmatpush1.bf16.xpose.msra.mxu0 0
      %1100 = vmatprep.subr.bf16.mxu0 0
      %1101 = vmatpush1.bf16.xpose.msra.mxu0 0
      %1102 = vmatprep.subr.bf16.mxu0 0
      %1103 = vmatpush1.bf16.xpose.msra.mxu0 0
      %1104 = vmatprep.subr.bf16.mxu0 0
      %1105 = vmatpush1.bf16.xpose.msra.mxu0 0
      %1106 = vmatprep.subr.bf16.mxu0 0
      %1107 = vmatpush1.bf16.xpose.msra.mxu0 0
      %1108 = vmatprep.subr.bf16.mxu0 0
      %1109 = vmatpush1.bf16.xpose.msra.mxu0 0
      %1110 = vmatprep.subr.bf16.mxu0 0
      %1111 = vmatpush1.bf16.xpose.msra.mxu0 0
      %1112 = vmatprep.subr.bf16.mxu0 0
      %1113 = vmatpush1.bf16.xpose.msra.mxu0 0
      %1114 = vmatprep.subr.bf16.mxu0 0
      %1115 = vmatpush1.bf16.xpose.msra.mxu0 0
      %1116 = vmatprep.subr.bf16.mxu0 0
      %1117 = vmatpush1.bf16.xpose.msra.mxu0 0
      %1118 = vmatprep.subr.bf16.mxu0 0
      %1119 = vmatpush1.bf16.xpose.msra.mxu0 0
      %1120 = vmatprep.subr.bf16.mxu0 0
      %1121 = vmatpush1.bf16.xpose.msra.mxu0 0
      %1122 = vmatprep.subr.bf16.mxu0 0
      %1123 = vmatpush1.bf16.xpose.msra.mxu0 0
      %1124 = vmatprep.subr.bf16.mxu0 0
      %1125 = vmatpush1.bf16.xpose.msra.mxu0 0
      %1126 = vmatprep.mubr.bf16.mxu0 0
      %1127 = vmatmul.mubr.bf16.gmra.mrb[0].mxu0 %v1089
      %v1128 = vpop.f32.mrb[0].mxu0
      %v1129 = vadd.f32 %v1082, %v1128
      %v1130 = vpop.f32.mrb[0].mxu0
      %v1131 = vpop.f32.mrb[0].mxu0
      %v1132 = vpop.f32.mrb[0].mxu0
      %1133 = vdwg.mxu0
      %v1134 = vsel %vm1087, %v1129, -inf
      %1135 = vmax.xlane.f32.xlu0 %v1134
      %v1136 = vpop.xlane.xlu0 %1135
      %v1137 = vsub.f32 %v1129, %v1136
      %v1138 = vmul.f32 %v1137, 1.442695
      %v1139 = vpow.pop %v1138
      %v1140 = vsel %vm1087, %v1139, 0.0
      %1141 = vadd.xlane.f32.xlu0 %v1140
      %v1142 = vpop.xlane.xlu0 %1141
      %v1143 = vrcp.pop %v1142
      %v1144 = vmul.f32 %v1139, %v1143
      %v1145 = vpack.c.bf16 %v1144, %v1144
      %1146 = vrot.lane.b32.xlu0 %v1077, 64
      %v1147 = vpop.permute.xlu0 %1146
      %v1149 = vsel %vm1087, %v1145, 0
      %vm1151 = vcmask 1043456
      %v1153 = vsel %vm1151, %v1147, 0
      %1155 = vmatprep.subr.bf16.mxu0 0
      %1156 = vmatpush1.bf16.msra.mxu0 %v1153
      %1157 = vmatprep.subr.bf16.mxu0 0
      %1158 = vmatpush1.bf16.msra.mxu0 0
      %1159 = vmatprep.subr.bf16.mxu0 0
      %1160 = vmatpush1.bf16.msra.mxu0 0
      %1161 = vmatprep.subr.bf16.mxu0 0
      %1162 = vmatpush1.bf16.msra.mxu0 0
      %1163 = vmatprep.subr.bf16.mxu0 0
      %1164 = vmatpush1.bf16.msra.mxu0 0
      %1165 = vmatprep.subr.bf16.mxu0 0
      %1166 = vmatpush1.bf16.msra.mxu0 0
      %1167 = vmatprep.subr.bf16.mxu0 0
      %1168 = vmatpush1.bf16.msra.mxu0 0
      %1169 = vmatprep.subr.bf16.mxu0 0
      %1170 = vmatpush1.bf16.msra.mxu0 0
      %1171 = vmatprep.subr.bf16.mxu0 0
      %1172 = vmatpush1.bf16.msra.mxu0 0
      %1173 = vmatprep.subr.bf16.mxu0 0
      %1174 = vmatpush1.bf16.msra.mxu0 0
      %1175 = vmatprep.subr.bf16.mxu0 0
      %1176 = vmatpush1.bf16.msra.mxu0 0
      %1177 = vmatprep.subr.bf16.mxu0 0
      %1178 = vmatpush1.bf16.msra.mxu0 0
      %1179 = vmatprep.subr.bf16.mxu0 0
      %1180 = vmatpush1.bf16.msra.mxu0 0
      %1181 = vmatprep.subr.bf16.mxu0 0
      %1182 = vmatpush1.bf16.msra.mxu0 0
      %1183 = vmatprep.subr.bf16.mxu0 0
      %1184 = vmatpush1.bf16.msra.mxu0 0
      %1185 = vmatprep.subr.bf16.mxu0 0
      %1186 = vmatpush1.bf16.msra.mxu0 0
      %1187 = vmatprep.mubr.bf16.mxu0 0
      %1188 = vmatmul.mubr.bf16.gmra.mrb[0].mxu0 %v1149
      %v1189 = vpop.f32.mrb[0].mxu0
      %v1190 = vadd.f32 0.0, %v1189
      %v1191 = vpop.f32.mrb[0].mxu0
      %v1192 = vpop.f32.mrb[0].mxu0
      %v1193 = vpop.f32.mrb[0].mxu0
      %1194 = vdwg.mxu0
      %v1195 = vpack.c.bf16 %v1190, %v1190
      %1197 = vrot.lane.b32.xlu0 %v1076, 120
      %v1198 = vpop.permute.xlu0 %1197
      %1199 = vrot.lane.b32.xlu0 %v1077, 88
      %v1200 = vpop.permute.xlu0 %1199
      %v1202 = vsel %vm1087, %v1198, 0
      %v1205 = vsel %vm1087, %v1200, 0
      %1207 = vmatprep.subr.bf16.mxu0 0
      %1208 = vmatpush1.bf16.xpose.msra.mxu0 %v1205
      %1209 = vmatprep.subr.bf16.mxu0 0
      %1210 = vmatpush1.bf16.xpose.msra.mxu0 0
      %1211 = vmatprep.subr.bf16.mxu0 0
      %1212 = vmatpush1.bf16.xpose.msra.mxu0 0
      %1213 = vmatprep.subr.bf16.mxu0 0
      %1214 = vmatpush1.bf16.xpose.msra.mxu0 0
      %1215 = vmatprep.subr.bf16.mxu0 0
      %1216 = vmatpush1.bf16.xpose.msra.mxu0 0
      %1217 = vmatprep.subr.bf16.mxu0 0
      %1218 = vmatpush1.bf16.xpose.msra.mxu0 0
      %1219 = vmatprep.subr.bf16.mxu0 0
      %1220 = vmatpush1.bf16.xpose.msra.mxu0 0
      %1221 = vmatprep.subr.bf16.mxu0 0
      %1222 = vmatpush1.bf16.xpose.msra.mxu0 0
      %1223 = vmatprep.subr.bf16.mxu0 0
      %1224 = vmatpush1.bf16.xpose.msra.mxu0 0
      %1225 = vmatprep.subr.bf16.mxu0 0
      %1226 = vmatpush1.bf16.xpose.msra.mxu0 0
      %1227 = vmatprep.subr.bf16.mxu0 0
      %1228 = vmatpush1.bf16.xpose.msra.mxu0 0
      %1229 = vmatprep.subr.bf16.mxu0 0
      %1230 = vmatpush1.bf16.xpose.msra.mxu0 0
      %1231 = vmatprep.subr.bf16.mxu0 0
      %1232 = vmatpush1.bf16.xpose.msra.mxu0 0
      %1233 = vmatprep.subr.bf16.mxu0 0
      %1234 = vmatpush1.bf16.xpose.msra.mxu0 0
      %1235 = vmatprep.subr.bf16.mxu0 0
      %1236 = vmatpush1.bf16.xpose.msra.mxu0 0
      %1237 = vmatprep.subr.bf16.mxu0 0
      %1238 = vmatpush1.bf16.xpose.msra.mxu0 0
      %1239 = vmatprep.mubr.bf16.mxu0 0
      %1240 = vmatmul.mubr.bf16.gmra.mrb[0].mxu0 %v1202
      %v1241 = vpop.f32.mrb[0].mxu0
      %v1242 = vadd.f32 %v1082, %v1241
      %v1243 = vpop.f32.mrb[0].mxu0
      %v1244 = vpop.f32.mrb[0].mxu0
      %v1245 = vpop.f32.mrb[0].mxu0
      %1246 = vdwg.mxu0
      %v1247 = vsel %vm1087, %v1242, -inf
      %1248 = vmax.xlane.f32.xlu0 %v1247
      %v1249 = vpop.xlane.xlu0 %1248
      %v1250 = vsub.f32 %v1242, %v1249
      %v1251 = vmul.f32 %v1250, 1.442695
      %v1252 = vpow.pop %v1251
      %v1253 = vsel %vm1087, %v1252, 0.0
      %1254 = vadd.xlane.f32.xlu0 %v1253
      %v1255 = vpop.xlane.xlu0 %1254
      %v1256 = vrcp.pop %v1255
      %v1257 = vmul.f32 %v1252, %v1256
      %v1258 = vpack.c.bf16 %v1257, %v1257
      %1259 = vrot.lane.b32.xlu0 %v1077, 56
      %v1260 = vpop.permute.xlu0 %1259
      %v1262 = vsel %vm1087, %v1258, 0
      %v1265 = vsel %vm1151, %v1260, 0
      %1267 = vmatprep.subr.bf16.mxu0 0
      %1268 = vmatpush1.bf16.msra.mxu0 %v1265
      %1269 = vmatprep.subr.bf16.mxu0 0
      %1270 = vmatpush1.bf16.msra.mxu0 0
      %1271 = vmatprep.subr.bf16.mxu0 0
      %1272 = vmatpush1.bf16.msra.mxu0 0
      %1273 = vmatprep.subr.bf16.mxu0 0
      %1274 = vmatpush1.bf16.msra.mxu0 0
      %1275 = vmatprep.subr.bf16.mxu0 0
      %1276 = vmatpush1.bf16.msra.mxu0 0
      %1277 = vmatprep.subr.bf16.mxu0 0
      %1278 = vmatpush1.bf16.msra.mxu0 0
      %1279 = vmatprep.subr.bf16.mxu0 0
      %1280 = vmatpush1.bf16.msra.mxu0 0
      %1281 = vmatprep.subr.bf16.mxu0 0
      %1282 = vmatpush1.bf16.msra.mxu0 0
      %1283 = vmatprep.subr.bf16.mxu0 0
      %1284 = vmatpush1.bf16.msra.mxu0 0
      %1285 = vmatprep.subr.bf16.mxu0 0
      %1286 = vmatpush1.bf16.msra.mxu0 0
      %1287 = vmatprep.subr.bf16.mxu0 0
      %1288 = vmatpush1.bf16.msra.mxu0 0
      %1289 = vmatprep.subr.bf16.mxu0 0
      %1290 = vmatpush1.bf16.msra.mxu0 0
      %1291 = vmatprep.subr.bf16.mxu0 0
      %1292 = vmatpush1.bf16.msra.mxu0 0
      %1293 = vmatprep.subr.bf16.mxu0 0
      %1294 = vmatpush1.bf16.msra.mxu0 0
      %1295 = vmatprep.subr.bf16.mxu0 0
      %1296 = vmatpush1.bf16.msra.mxu0 0
      %1297 = vmatprep.subr.bf16.mxu0 0
      %1298 = vmatpush1.bf16.msra.mxu0 0
      %1299 = vmatprep.mubr.bf16.mxu0 0
      %1300 = vmatmul.mubr.bf16.gmra.mrb[0].mxu0 %v1262
      %v1301 = vpop.f32.mrb[0].mxu0
      %v1302 = vadd.f32 0.0, %v1301
      %v1303 = vpop.f32.mrb[0].mxu0
      %v1304 = vpop.f32.mrb[0].mxu0
      %v1305 = vpop.f32.mrb[0].mxu0
      %1306 = vdwg.mxu0
      %v1307 = vpack.c.bf16 %v1302, %v1302
      %1308 = vrot.lane.b32.xlu0 %v1076, 112
      %v1309 = vpop.permute.xlu0 %1308
      %1310 = vrot.lane.b32.xlu0 %v1077, 80
      %v1311 = vpop.permute.xlu0 %1310
      %v1313 = vsel %vm1087, %v1309, 0
      %v1316 = vsel %vm1087, %v1311, 0
      %1318 = vmatprep.subr.bf16.mxu0 0
      %1319 = vmatpush1.bf16.xpose.msra.mxu0 %v1316
      %1320 = vmatprep.subr.bf16.mxu0 0
      %1321 = vmatpush1.bf16.xpose.msra.mxu0 0
      %1322 = vmatprep.subr.bf16.mxu0 0
      %1323 = vmatpush1.bf16.xpose.msra.mxu0 0
      %1324 = vmatprep.subr.bf16.mxu0 0
      %1325 = vmatpush1.bf16.xpose.msra.mxu0 0
      %1326 = vmatprep.subr.bf16.mxu0 0
      %1327 = vmatpush1.bf16.xpose.msra.mxu0 0
      %1328 = vmatprep.subr.bf16.mxu0 0
      %1329 = vmatpush1.bf16.xpose.msra.mxu0 0
      %1330 = vmatprep.subr.bf16.mxu0 0
      %1331 = vmatpush1.bf16.xpose.msra.mxu0 0
      %1332 = vmatprep.subr.bf16.mxu0 0
      %1333 = vmatpush1.bf16.xpose.msra.mxu0 0
      %1334 = vmatprep.subr.bf16.mxu0 0
      %1335 = vmatpush1.bf16.xpose.msra.mxu0 0
      %1336 = vmatprep.subr.bf16.mxu0 0
      %1337 = vmatpush1.bf16.xpose.msra.mxu0 0
      %1338 = vmatprep.subr.bf16.mxu0 0
      %1339 = vmatpush1.bf16.xpose.msra.mxu0 0
      %1340 = vmatprep.subr.bf16.mxu0 0
      %1341 = vmatpush1.bf16.xpose.msra.mxu0 0
      %1342 = vmatprep.subr.bf16.mxu0 0
      %1343 = vmatpush1.bf16.xpose.msra.mxu0 0
      %1344 = vmatprep.subr.bf16.mxu0 0
      %1345 = vmatpush1.bf16.xpose.msra.mxu0 0
      %1346 = vmatprep.subr.bf16.mxu0 0
      %1347 = vmatpush1.bf16.xpose.msra.mxu0 0
      %1348 = vmatprep.subr.bf16.mxu0 0
      %1349 = vmatpush1.bf16.xpose.msra.mxu0 0
      %1350 = vmatprep.mubr.bf16.mxu0 0
      %1351 = vmatmul.mubr.bf16.gmra.mrb[0].mxu0 %v1313
      %v1352 = vpop.f32.mrb[0].mxu0
      %v1353 = vadd.f32 %v1082, %v1352
      %v1354 = vpop.f32.mrb[0].mxu0
      %v1355 = vpop.f32.mrb[0].mxu0
      %v1356 = vpop.f32.mrb[0].mxu0
      %1357 = vdwg.mxu0
      %v1358 = vsel %vm1087, %v1353, -inf
      %1359 = vmax.xlane.f32.xlu0 %v1358
      %v1360 = vpop.xlane.xlu0 %1359
      %v1361 = vsub.f32 %v1353, %v1360
      %v1362 = vmul.f32 %v1361, 1.442695
      %v1363 = vpow.pop %v1362
      %v1364 = vsel %vm1087, %v1363, 0.0
      %1365 = vadd.xlane.f32.xlu0 %v1364
      %v1366 = vpop.xlane.xlu0 %1365
      %v1367 = vrcp.pop %v1366
      %v1368 = vmul.f32 %v1363, %v1367
      %v1369 = vpack.c.bf16 %v1368, %v1368
      %1370 = vrot.lane.b32.xlu0 %v1077, 48
      %v1371 = vpop.permute.xlu0 %1370
      %v1373 = vsel %vm1087, %v1369, 0
      %v1376 = vsel %vm1151, %v1371, 0
      %1378 = vmatprep.subr.bf16.mxu0 0
      %1379 = vmatpush1.bf16.msra.mxu0 %v1376
      %1380 = vmatprep.subr.bf16.mxu0 0
      %1381 = vmatpush1.bf16.msra.mxu0 0
      %1382 = vmatprep.subr.bf16.mxu0 0
      %1383 = vmatpush1.bf16.msra.mxu0 0
      %1384 = vmatprep.subr.bf16.mxu0 0
      %1385 = vmatpush1.bf16.msra.mxu0 0
      %1386 = vmatprep.subr.bf16.mxu0 0
      %1387 = vmatpush1.bf16.msra.mxu0 0
      %1388 = vmatprep.subr.bf16.mxu0 0
      %1389 = vmatpush1.bf16.msra.mxu0 0
      %1390 = vmatprep.subr.bf16.mxu0 0
      %1391 = vmatpush1.bf16.msra.mxu0 0
      %1392 = vmatprep.subr.bf16.mxu0 0
      %1393 = vmatpush1.bf16.msra.mxu0 0
      %1394 = vmatprep.subr.bf16.mxu0 0
      %1395 = vmatpush1.bf16.msra.mxu0 0
      %1396 = vmatprep.subr.bf16.mxu0 0
      %1397 = vmatpush1.bf16.msra.mxu0 0
      %1398 = vmatprep.subr.bf16.mxu0 0
      %1399 = vmatpush1.bf16.msra.mxu0 0
      %1400 = vmatprep.subr.bf16.mxu0 0
      %1401 = vmatpush1.bf16.msra.mxu0 0
      %1402 = vmatprep.subr.bf16.mxu0 0
      %1403 = vmatpush1.bf16.msra.mxu0 0
      %1404 = vmatprep.subr.bf16.mxu0 0
      %1405 = vmatpush1.bf16.msra.mxu0 0
      %1406 = vmatprep.subr.bf16.mxu0 0
      %1407 = vmatpush1.bf16.msra.mxu0 0
      %1408 = vmatprep.subr.bf16.mxu0 0
      %1409 = vmatpush1.bf16.msra.mxu0 0
      %1410 = vmatprep.mubr.bf16.mxu0 0
      %1411 = vmatmul.mubr.bf16.gmra.mrb[0].mxu0 %v1373
      %v1412 = vpop.f32.mrb[0].mxu0
      %v1413 = vadd.f32 0.0, %v1412
      %v1414 = vpop.f32.mrb[0].mxu0
      %v1415 = vpop.f32.mrb[0].mxu0
      %v1416 = vpop.f32.mrb[0].mxu0
      %1417 = vdwg.mxu0
      %v1418 = vpack.c.bf16 %v1413, %v1413
      %1419 = vrot.lane.b32.xlu0 %v1076, 104
      %v1420 = vpop.permute.xlu0 %1419
      %1421 = vrot.lane.b32.xlu0 %v1077, 72
      %v1422 = vpop.permute.xlu0 %1421
      %v1424 = vsel %vm1087, %v1420, 0
      %v1427 = vsel %vm1087, %v1422, 0
      %1429 = vmatprep.subr.bf16.mxu0 0
      %1430 = vmatpush1.bf16.xpose.msra.mxu0 %v1427
      %1431 = vmatprep.subr.bf16.mxu0 0
      %1432 = vmatpush1.bf16.xpose.msra.mxu0 0
      %1433 = vmatprep.subr.bf16.mxu0 0
      %1434 = vmatpush1.bf16.xpose.msra.mxu0 0
      %1435 = vmatprep.subr.bf16.mxu0 0
      %1436 = vmatpush1.bf16.xpose.msra.mxu0 0
      %1437 = vmatprep.subr.bf16.mxu0 0
      %1438 = vmatpush1.bf16.xpose.msra.mxu0 0
      %1439 = vmatprep.subr.bf16.mxu0 0
      %1440 = vmatpush1.bf16.xpose.msra.mxu0 0
      %1441 = vmatprep.subr.bf16.mxu0 0
      %1442 = vmatpush1.bf16.xpose.msra.mxu0 0
      %1443 = vmatprep.subr.bf16.mxu0 0
      %1444 = vmatpush1.bf16.xpose.msra.mxu0 0
      %1445 = vmatprep.subr.bf16.mxu0 0
      %1446 = vmatpush1.bf16.xpose.msra.mxu0 0
      %1447 = vmatprep.subr.bf16.mxu0 0
      %1448 = vmatpush1.bf16.xpose.msra.mxu0 0
      %1449 = vmatprep.subr.bf16.mxu0 0
      %1450 = vmatpush1.bf16.xpose.msra.mxu0 0
      %1451 = vmatprep.subr.bf16.mxu0 0
      %1452 = vmatpush1.bf16.xpose.msra.mxu0 0
      %1453 = vmatprep.subr.bf16.mxu0 0
      %1454 = vmatpush1.bf16.xpose.msra.mxu0 0
      %1455 = vmatprep.subr.bf16.mxu0 0
      %1456 = vmatpush1.bf16.xpose.msra.mxu0 0
      %1457 = vmatprep.subr.bf16.mxu0 0
      %1458 = vmatpush1.bf16.xpose.msra.mxu0 0
      %1459 = vmatprep.subr.bf16.mxu0 0
      %1460 = vmatpush1.bf16.xpose.msra.mxu0 0
      %1461 = vmatprep.mubr.bf16.mxu0 0
      %1462 = vmatmul.mubr.bf16.gmra.mrb[0].mxu0 %v1424
      %v1463 = vpop.f32.mrb[0].mxu0
      %v1464 = vadd.f32 %v1082, %v1463
      %v1465 = vpop.f32.mrb[0].mxu0
      %v1466 = vpop.f32.mrb[0].mxu0
      %v1467 = vpop.f32.mrb[0].mxu0
      %1468 = vdwg.mxu0
      %v1469 = vsel %vm1087, %v1464, -inf
      %1470 = vmax.xlane.f32.xlu0 %v1469
      %v1471 = vpop.xlane.xlu0 %1470
      %v1472 = vsub.f32 %v1464, %v1471
      %v1473 = vmul.f32 %v1472, 1.442695
      %v1474 = vpow.pop %v1473
      %v1475 = vsel %vm1087, %v1474, 0.0
      %1476 = vadd.xlane.f32.xlu0 %v1475
      %v1477 = vpop.xlane.xlu0 %1476
      %v1478 = vrcp.pop %v1477
      %v1479 = vmul.f32 %v1474, %v1478
      %v1480 = vpack.c.bf16 %v1479, %v1479
      %1481 = vrot.lane.b32.xlu0 %v1077, 40
      %v1482 = vpop.permute.xlu0 %1481
      %v1484 = vsel %vm1087, %v1480, 0
      %v1487 = vsel %vm1151, %v1482, 0
      %1489 = vmatprep.subr.bf16.mxu0 0
      %1490 = vmatpush1.bf16.msra.mxu0 %v1487
      %1491 = vmatprep.subr.bf16.mxu0 0
      %1492 = vmatpush1.bf16.msra.mxu0 0
      %1493 = vmatprep.subr.bf16.mxu0 0
      %1494 = vmatpush1.bf16.msra.mxu0 0
      %1495 = vmatprep.subr.bf16.mxu0 0
      %1496 = vmatpush1.bf16.msra.mxu0 0
      %1497 = vmatprep.subr.bf16.mxu0 0
      %1498 = vmatpush1.bf16.msra.mxu0 0
      %1499 = vmatprep.subr.bf16.mxu0 0
      %1500 = vmatpush1.bf16.msra.mxu0 0
      %1501 = vmatprep.subr.bf16.mxu0 0
      %1502 = vmatpush1.bf16.msra.mxu0 0
      %1503 = vmatprep.subr.bf16.mxu0 0
      %1504 = vmatpush1.bf16.msra.mxu0 0
      %1505 = vmatprep.subr.bf16.mxu0 0
      %1506 = vmatpush1.bf16.msra.mxu0 0
      %1507 = vmatprep.subr.bf16.mxu0 0
      %1508 = vmatpush1.bf16.msra.mxu0 0
      %1509 = vmatprep.subr.bf16.mxu0 0
      %1510 = vmatpush1.bf16.msra.mxu0 0
      %1511 = vmatprep.subr.bf16.mxu0 0
      %1512 = vmatpush1.bf16.msra.mxu0 0
      %1513 = vmatprep.subr.bf16.mxu0 0
      %1514 = vmatpush1.bf16.msra.mxu0 0
      %1515 = vmatprep.subr.bf16.mxu0 0
      %1516 = vmatpush1.bf16.msra.mxu0 0
      %1517 = vmatprep.subr.bf16.mxu0 0
      %1518 = vmatpush1.bf16.msra.mxu0 0
      %1519 = vmatprep.subr.bf16.mxu0 0
      %1520 = vmatpush1.bf16.msra.mxu0 0
      %1521 = vmatprep.mubr.bf16.mxu0 0
      %1522 = vmatmul.mubr.bf16.gmra.mrb[0].mxu0 %v1484
      %v1523 = vpop.f32.mrb[0].mxu0
      %v1524 = vadd.f32 0.0, %v1523
      %v1525 = vpop.f32.mrb[0].mxu0
      %v1526 = vpop.f32.mrb[0].mxu0
      %v1527 = vpop.f32.mrb[0].mxu0
      %1528 = vdwg.mxu0
      %v1529 = vpack.c.bf16 %v1524, %v1524
      %1531 = vrot.lane.b32.xlu0 %v1307, 8
      %v1532 = vpop.permute.xlu0 %1531
      %1534 = vrot.lane.b32.xlu0 %v1418, 16
      %v1535 = vpop.permute.xlu0 %1534
      %1537 = vrot.lane.b32.xlu0 %v1529, 24
      %v1538 = vpop.permute.xlu0 %1537
      %v1541 = vsel %vm1087, %v1195, %v1532
      %vm1542 = vcmask 130048
      %v1544 = vsel %vm1542, %v1541, %v1535
      %vm1545 = vcmask 195584
      %v1547 = vsel %vm1545, %v1544, %v1538
      %v1548 = vld [vmem:[%s19] sm:$0xf]
      %v1549 = vld [vmem:[%s19 + $0x4] sm:$0xf]
      %v1550 = vld [vmem:[%s19 + $0x8] sm:$0xf]
      %v1551 = vld [vmem:[%s19 + $0xc] sm:$0xf]
      %v1552 = vld [vmem:[%s21] sm:$0x1]
      %v1554 = vlaneseq
      %v1555 = vshrl.u32 %v1554, 7
      %v1556 = vsub.s32 0, %v1555
      %v1557 = vrot.slane %v1552, %v1556
      %v1563 = vunpack.c.l.b16 %v1548
      %v1564 = vunpack.c.l.b16 %v1549
      %v1565 = vunpack.c.l.b16 %v1550
      %v1566 = vunpack.c.l.b16 %v1551
      %v1567 = vpack.c.b16 %v1564, %v1563
      %v1568 = vpack.c.b16 %v1566, %v1565
      %v1571 = vsel %vm1029, %v1547, 0
      %1573 = vmatprep.subr.bf16.mxu0 0
      %1574 = vmatpush1.bf16.msra.mxu0 %v1567
      %1575 = vmatprep.subr.bf16.mxu0 0
      %1576 = vmatpush1.bf16.msra.mxu0 %v1568
      %1577 = vmatprep.subr.bf16.mxu0 0
      %1578 = vmatpush1.bf16.msra.mxu0 0
      %1579 = vmatprep.subr.bf16.mxu0 0
      %1580 = vmatpush1.bf16.msra.mxu0 0
      %1581 = vmatprep.subr.bf16.mxu0 0
      %1582 = vmatpush1.bf16.msra.mxu0 0
      %1583 = vmatprep.subr.bf16.mxu0 0
      %1584 = vmatpush1.bf16.msra.mxu0 0
      %1585 = vmatprep.subr.bf16.mxu0 0
      %1586 = vmatpush1.bf16.msra.mxu0 0
      %1587 = vmatprep.subr.bf16.mxu0 0
      %1588 = vmatpush1.bf16.msra.mxu0 0
      %1589 = vmatprep.subr.bf16.mxu0 0
      %1590 = vmatpush1.bf16.msra.mxu0 0
      %1591 = vmatprep.subr.bf16.mxu0 0
      %1592 = vmatpush1.bf16.msra.mxu0 0
      %1593 = vmatprep.subr.bf16.mxu0 0
      %1594 = vmatpush1.bf16.msra.mxu0 0
      %1595 = vmatprep.subr.bf16.mxu0 0
      %1596 = vmatpush1.bf16.msra.mxu0 0
      %1597 = vmatprep.subr.bf16.mxu0 0
      %1598 = vmatpush1.bf16.msra.mxu0 0
      %1599 = vmatprep.subr.bf16.mxu0 0
      %1600 = vmatpush1.bf16.msra.mxu0 0
      %1601 = vmatprep.subr.bf16.mxu0 0
      %1602 = vmatpush1.bf16.msra.mxu0 0
      %1603 = vmatprep.subr.bf16.mxu0 0
      %1604 = vmatpush1.bf16.msra.mxu0 0
      %1605 = vmatprep.mubr.bf16.mxu0 0
      %1606 = vmatmul.mubr.bf16.gmra.mrb[0].mxu0 %v1571
      %v1607 = vpop.f32.mrb[0].mxu0
      %v1608 = vadd.f32 %v1557, %v1607
      %v1609 = vpop.f32.mrb[0].mxu0
      %v1610 = vpop.f32.mrb[0].mxu0
      %v1611 = vpop.f32.mrb[0].mxu0
      %1612 = vdwg.mxu0
      %v1613 = vadd.f32 %v1004, %v1608
      %v1614 = vsel %vm1029, %v1613, 0.0
      %1615 = vadd.xlane.f32.xlu0 %v1614
      %v1616 = vpop.xlane.xlu0 %1615
      %v1617 = vrcp.pop 32.0
      %v1618 = vmul.f32 %v1616, %v1617
      %v1619 = vsub.f32 %v1613, %v1618
      %v1620 = vmul.f32 %v1619, %v1619
      %v1621 = vsel %vm1029, %v1620, 0.0
      %1622 = vadd.xlane.f32.xlu0 %v1621
      %v1623 = vpop.xlane.xlu0 %1622
      %v1624 = vmul.f32 %v1623, %v1617
      %v1625 = vadd.f32 %v1624, 1e-05
      %v1626 = vrsqrt.pop %v1625
      %v1627 = vmul.f32 %v1619, %v1626
      %v1628 = vld [vmem:[%s35] sm:$0x1]
      %v1630 = vlaneseq
      %v1631 = vshrl.u32 %v1630, 7
      %v1632 = vsub.s32 0, %v1631
      %v1633 = vrot.slane %v1628, %v1632
      %v1635 = vmul.f32 %v1627, %v1633
      %v1636 = vld [vmem:[%s37] sm:$0x1]
      %v1638 = vlaneseq
      %v1639 = vshrl.u32 %v1638, 7
      %v1640 = vsub.s32 0, %v1639
      %v1641 = vrot.slane %v1636, %v1640
      %v1643 = vadd.f32 %v1635, %v1641
      %v1644 = vpack.c.bf16 %v1643, %v1643
      %v1645 = vld [vmem:[%s23] sm:$0xf]
      %v1646 = vld [vmem:[%s23 + $0x4] sm:$0xf]
      %v1647 = vld [vmem:[%s23 + $0x8] sm:$0xf]
      %v1648 = vld [vmem:[%s23 + $0xc] sm:$0xf]
      %v1649 = vld [vmem:[%s25] sm:$0x1]
      %v1651 = vlaneseq
      %v1652 = vshrl.u32 %v1651, 7
      %v1653 = vsub.s32 0, %v1652
      %v1654 = vrot.slane %v1649, %v1653
      %v1660 = vunpack.c.l.b16 %v1645
      %v1661 = vunpack.c.l.b16 %v1646
      %v1662 = vunpack.c.l.b16 %v1647
      %v1663 = vunpack.c.l.b16 %v1648
      %v1664 = vpack.c.b16 %v1661, %v1660
      %v1665 = vpack.c.b16 %v1663, %v1662
      %v1669 = vsel %vm1029, %v1644, 0
      %1671 = vmatprep.subr.bf16.mxu0 0
      %1672 = vmatpush1.bf16.msra.mxu0 %v1664
      %1673 = vmatprep.subr.bf16.mxu0 0
      %1674 = vmatpush1.bf16.msra.mxu0 %v1665
      %1675 = vmatprep.subr.bf16.mxu0 0
      %1676 = vmatpush1.bf16.msra.mxu0 0
      %1677 = vmatprep.subr.bf16.mxu0 0
      %1678 = vmatpush1.bf16.msra.mxu0 0
      %1679 = vmatprep.subr.bf16.mxu0 0
      %1680 = vmatpush1.bf16.msra.mxu0 0
      %1681 = vmatprep.subr.bf16.mxu0 0
      %1682 = vmatpush1.bf16.msra.mxu0 0
      %1683 = vmatprep.subr.bf16.mxu0 0
      %1684 = vmatpush1.bf16.msra.mxu0 0
      %1685 = vmatprep.subr.bf16.mxu0 0
      %1686 = vmatpush1.bf16.msra.mxu0 0
      %1687 = vmatprep.subr.bf16.mxu0 0
      %1688 = vmatpush1.bf16.msra.mxu0 0
      %1689 = vmatprep.subr.bf16.mxu0 0
      %1690 = vmatpush1.bf16.msra.mxu0 0
      %1691 = vmatprep.subr.bf16.mxu0 0
      %1692 = vmatpush1.bf16.msra.mxu0 0
      %1693 = vmatprep.subr.bf16.mxu0 0
      %1694 = vmatpush1.bf16.msra.mxu0 0
      %1695 = vmatprep.subr.bf16.mxu0 0
      %1696 = vmatpush1.bf16.msra.mxu0 0
      %1697 = vmatprep.subr.bf16.mxu0 0
      %1698 = vmatpush1.bf16.msra.mxu0 0
      %1699 = vmatprep.subr.bf16.mxu0 0
      %1700 = vmatpush1.bf16.msra.mxu0 0
      %1701 = vmatprep.subr.bf16.mxu0 0
      %1702 = vmatpush1.bf16.msra.mxu0 0
      %1703 = vmatprep.mubr.bf16.mxu0 0
      %1704 = vmatmul.mubr.bf16.gmra.mrb[0].mxu0 %v1669
      %v1705 = vpop.f32.mrb[0].mxu0
      %v1706 = vadd.f32 %v1654, %v1705
      %v1707 = vpop.f32.mrb[0].mxu0
      %v1708 = vpop.f32.mrb[0].mxu0
      %v1709 = vpop.f32.mrb[0].mxu0
      %1710 = vdwg.mxu0
      %v1711 = vmul.f32 %v1706, 0.35355338
      %v1712 = vld [vmem:[%s27] sm:$0xf]
      %v1713 = vld [vmem:[%s27 + $0x4] sm:$0xf]
      %v1714 = vld [vmem:[%s27 + $0x8] sm:$0xf]
      %v1715 = vld [vmem:[%s27 + $0xc] sm:$0xf]
      %v1716 = vld [vmem:[%s29] sm:$0x1]
      %v1718 = vlaneseq
      %v1719 = vshrl.u32 %v1718, 7
      %v1720 = vsub.s32 0, %v1719
      %v1721 = vrot.slane %v1716, %v1720
      %v1727 = vunpack.c.l.b16 %v1712
      %v1728 = vunpack.c.l.b16 %v1713
      %v1729 = vunpack.c.l.b16 %v1714
      %v1730 = vunpack.c.l.b16 %v1715
      %v1731 = vpack.c.b16 %v1728, %v1727
      %v1732 = vpack.c.b16 %v1730, %v1729
      %v1736 = vsel %vm1029, %v984, 0
      %1738 = vmatprep.subr.bf16.mxu0 0
      %1739 = vmatpush1.bf16.msra.mxu0 %v1731
      %1740 = vmatprep.subr.bf16.mxu0 0
      %1741 = vmatpush1.bf16.msra.mxu0 %v1732
      %1742 = vmatprep.subr.bf16.mxu0 0
      %1743 = vmatpush1.bf16.msra.mxu0 0
      %1744 = vmatprep.subr.bf16.mxu0 0
      %1745 = vmatpush1.bf16.msra.mxu0 0
      %1746 = vmatprep.subr.bf16.mxu0 0
      %1747 = vmatpush1.bf16.msra.mxu0 0
      %1748 = vmatprep.subr.bf16.mxu0 0
      %1749 = vmatpush1.bf16.msra.mxu0 0
      %1750 = vmatprep.subr.bf16.mxu0 0
      %1751 = vmatpush1.bf16.msra.mxu0 0
      %1752 = vmatprep.subr.bf16.mxu0 0
      %1753 = vmatpush1.bf16.msra.mxu0 0
      %1754 = vmatprep.subr.bf16.mxu0 0
      %1755 = vmatpush1.bf16.msra.mxu0 0
      %1756 = vmatprep.subr.bf16.mxu0 0
      %1757 = vmatpush1.bf16.msra.mxu0 0
      %1758 = vmatprep.subr.bf16.mxu0 0
      %1759 = vmatpush1.bf16.msra.mxu0 0
      %1760 = vmatprep.subr.bf16.mxu0 0
      %1761 = vmatpush1.bf16.msra.mxu0 0
      %1762 = vmatprep.subr.bf16.mxu0 0
      %1763 = vmatpush1.bf16.msra.mxu0 0
      %1764 = vmatprep.subr.bf16.mxu0 0
      %1765 = vmatpush1.bf16.msra.mxu0 0
      %1766 = vmatprep.subr.bf16.mxu0 0
      %1767 = vmatpush1.bf16.msra.mxu0 0
      %1768 = vmatprep.subr.bf16.mxu0 0
      %1769 = vmatpush1.bf16.msra.mxu0 0
      %1770 = vmatprep.mubr.bf16.mxu0 0
      %1771 = vmatmul.mubr.bf16.gmra.mrb[0].mxu0 %v1736
      %v1772 = vpop.f32.mrb[0].mxu0
      %v1773 = vadd.f32 %v1721, %v1772
      %v1774 = vpop.f32.mrb[0].mxu0
      %v1775 = vpop.f32.mrb[0].mxu0
      %v1776 = vpop.f32.mrb[0].mxu0
      %1777 = vdwg.mxu0
      %v1778 = vsub.f32 %v983, 1.0
      %v1779 = vmul.f32 %v1778, 1e+30
      %v1780 = vpack.c.bf16 %v1711, %v1711
      %v1781 = vpack.c.bf16 %v1773, %v1773
      %v1783 = vlaneseq
      %v1784 = vshrl.u32 %v1783, 7
      %v1785 = vsub.s32 0, %v1784
      %v1786 = vrot.slane %v1779, %v1785
      %v1789 = vsel %vm1087, %v1780, 0
      %v1792 = vsel %vm1087, %v1781, 0
      %1794 = vmatprep.subr.bf16.mxu0 0
      %1795 = vmatpush1.bf16.xpose.msra.mxu0 %v1792
      %1796 = vmatprep.subr.bf16.mxu0 0
      %1797 = vmatpush1.bf16.xpose.msra.mxu0 0
      %1798 = vmatprep.subr.bf16.mxu0 0
      %1799 = vmatpush1.bf16.xpose.msra.mxu0 0
      %1800 = vmatprep.subr.bf16.mxu0 0
      %1801 = vmatpush1.bf16.xpose.msra.mxu0 0
      %1802 = vmatprep.subr.bf16.mxu0 0
      %1803 = vmatpush1.bf16.xpose.msra.mxu0 0
      %1804 = vmatprep.subr.bf16.mxu0 0
      %1805 = vmatpush1.bf16.xpose.msra.mxu0 0
      %1806 = vmatprep.subr.bf16.mxu0 0
      %1807 = vmatpush1.bf16.xpose.msra.mxu0 0
      %1808 = vmatprep.subr.bf16.mxu0 0
      %1809 = vmatpush1.bf16.xpose.msra.mxu0 0
      %1810 = vmatprep.subr.bf16.mxu0 0
      %1811 = vmatpush1.bf16.xpose.msra.mxu0 0
      %1812 = vmatprep.subr.bf16.mxu0 0
      %1813 = vmatpush1.bf16.xpose.msra.mxu0 0
      %1814 = vmatprep.subr.bf16.mxu0 0
      %1815 = vmatpush1.bf16.xpose.msra.mxu0 0
      %1816 = vmatprep.subr.bf16.mxu0 0
      %1817 = vmatpush1.bf16.xpose.msra.mxu0 0
      %1818 = vmatprep.subr.bf16.mxu0 0
      %1819 = vmatpush1.bf16.xpose.msra.mxu0 0
      %1820 = vmatprep.subr.bf16.mxu0 0
      %1821 = vmatpush1.bf16.xpose.msra.mxu0 0
      %1822 = vmatprep.subr.bf16.mxu0 0
      %1823 = vmatpush1.bf16.xpose.msra.mxu0 0
      %1824 = vmatprep.subr.bf16.mxu0 0
      %1825 = vmatpush1.bf16.xpose.msra.mxu0 0
      %1826 = vmatprep.mubr.bf16.mxu0 0
      %1827 = vmatmul.mubr.bf16.gmra.mrb[0].mxu0 %v1789
      %v1828 = vpop.f32.mrb[0].mxu0
      %v1829 = vadd.f32 %v1786, %v1828
      %v1830 = vpop.f32.mrb[0].mxu0
      %v1831 = vpop.f32.mrb[0].mxu0
      %v1832 = vpop.f32.mrb[0].mxu0
      %1833 = vdwg.mxu0
      %v1834 = vsel %vm1087, %v1829, -inf
      %1835 = vmax.xlane.f32.xlu0 %v1834
      %v1836 = vpop.xlane.xlu0 %1835
      %v1837 = vsub.f32 %v1829, %v1836
      %v1838 = vmul.f32 %v1837, 1.442695
      %v1839 = vpow.pop %v1838
      %v1840 = vsel %vm1087, %v1839, 0.0
      %1841 = vadd.xlane.f32.xlu0 %v1840
      %v1842 = vpop.xlane.xlu0 %1841
      %v1843 = vrcp.pop %v1842
      %v1844 = vmul.f32 %v1839, %v1843
      %v1845 = vpack.c.bf16 %v1844, %v1844
      %1847 = vrot.lane.b32.xlu0 %v1781, 96
      %v1848 = vpop.permute.xlu0 %1847
      %v1850 = vsel %vm1087, %v1845, 0
      %v1853 = vsel %vm1151, %v1848, 0
      %1855 = vmatprep.subr.bf16.mxu0 0
      %1856 = vmatpush1.bf16.msra.mxu0 %v1853
      %1857 = vmatprep.subr.bf16.mxu0 0
      %1858 = vmatpush1.bf16.msra.mxu0 0
      %1859 = vmatprep.subr.bf16.mxu0 0
      %1860 = vmatpush1.bf16.msra.mxu0 0
      %1861 = vmatprep.subr.bf16.mxu0 0
      %1862 = vmatpush1.bf16.msra.mxu0 0
      %1863 = vmatprep.subr.bf16.mxu0 0
      %1864 = vmatpush1.bf16.msra.mxu0 0
      %1865 = vmatprep.subr.bf16.mxu0 0
      %1866 = vmatpush1.bf16.msra.mxu0 0
      %1867 = vmatprep.subr.bf16.mxu0 0
      %1868 = vmatpush1.bf16.msra.mxu0 0
      %1869 = vmatprep.subr.bf16.mxu0 0
      %1870 = vmatpush1.bf16.msra.mxu0 0
      %1871 = vmatprep.subr.bf16.mxu0 0
      %1872 = vmatpush1.bf16.msra.mxu0 0
      %1873 = vmatprep.subr.bf16.mxu0 0
      %1874 = vmatpush1.bf16.msra.mxu0 0
      %1875 = vmatprep.subr.bf16.mxu0 0
      %1876 = vmatpush1.bf16.msra.mxu0 0
      %1877 = vmatprep.subr.bf16.mxu0 0
      %1878 = vmatpush1.bf16.msra.mxu0 0
      %1879 = vmatprep.subr.bf16.mxu0 0
      %1880 = vmatpush1.bf16.msra.mxu0 0
      %1881 = vmatprep.subr.bf16.mxu0 0
      %1882 = vmatpush1.bf16.msra.mxu0 0
      %1883 = vmatprep.subr.bf16.mxu0 0
      %1884 = vmatpush1.bf16.msra.mxu0 0
      %1885 = vmatprep.subr.bf16.mxu0 0
      %1886 = vmatpush1.bf16.msra.mxu0 0
      %1887 = vmatprep.mubr.bf16.mxu0 0
      %1888 = vmatmul.mubr.bf16.gmra.mrb[0].mxu0 %v1850
      %v1889 = vpop.f32.mrb[0].mxu0
      %v1890 = vadd.f32 0.0, %v1889
      %v1891 = vpop.f32.mrb[0].mxu0
      %v1892 = vpop.f32.mrb[0].mxu0
      %v1893 = vpop.f32.mrb[0].mxu0
      %1894 = vdwg.mxu0
      %v1895 = vpack.c.bf16 %v1890, %v1890
      %1897 = vrot.lane.b32.xlu0 %v1780, 120
      %v1898 = vpop.permute.xlu0 %1897
      %1899 = vrot.lane.b32.xlu0 %v1781, 120
      %v1900 = vpop.permute.xlu0 %1899
      %v1902 = vsel %vm1087, %v1898, 0
      %v1905 = vsel %vm1087, %v1900, 0
      %1907 = vmatprep.subr.bf16.mxu0 0
      %1908 = vmatpush1.bf16.xpose.msra.mxu0 %v1905
      %1909 = vmatprep.subr.bf16.mxu0 0
      %1910 = vmatpush1.bf16.xpose.msra.mxu0 0
      %1911 = vmatprep.subr.bf16.mxu0 0
      %1912 = vmatpush1.bf16.xpose.msra.mxu0 0
      %1913 = vmatprep.subr.bf16.mxu0 0
      %1914 = vmatpush1.bf16.xpose.msra.mxu0 0
      %1915 = vmatprep.subr.bf16.mxu0 0
      %1916 = vmatpush1.bf16.xpose.msra.mxu0 0
      %1917 = vmatprep.subr.bf16.mxu0 0
      %1918 = vmatpush1.bf16.xpose.msra.mxu0 0
      %1919 = vmatprep.subr.bf16.mxu0 0
      %1920 = vmatpush1.bf16.xpose.msra.mxu0 0
      %1921 = vmatprep.subr.bf16.mxu0 0
      %1922 = vmatpush1.bf16.xpose.msra.mxu0 0
      %1923 = vmatprep.subr.bf16.mxu0 0
      %1924 = vmatpush1.bf16.xpose.msra.mxu0 0
      %1925 = vmatprep.subr.bf16.mxu0 0
      %1926 = vmatpush1.bf16.xpose.msra.mxu0 0
      %1927 = vmatprep.subr.bf16.mxu0 0
      %1928 = vmatpush1.bf16.xpose.msra.mxu0 0
      %1929 = vmatprep.subr.bf16.mxu0 0
      %1930 = vmatpush1.bf16.xpose.msra.mxu0 0
      %1931 = vmatprep.subr.bf16.mxu0 0
      %1932 = vmatpush1.bf16.xpose.msra.mxu0 0
      %1933 = vmatprep.subr.bf16.mxu0 0
      %1934 = vmatpush1.bf16.xpose.msra.mxu0 0
      %1935 = vmatprep.subr.bf16.mxu0 0
      %1936 = vmatpush1.bf16.xpose.msra.mxu0 0
      %1937 = vmatprep.subr.bf16.mxu0 0
      %1938 = vmatpush1.bf16.xpose.msra.mxu0 0
      %1939 = vmatprep.mubr.bf16.mxu0 0
      %1940 = vmatmul.mubr.bf16.gmra.mrb[0].mxu0 %v1902
      %v1941 = vpop.f32.mrb[0].mxu0
      %v1942 = vadd.f32 %v1786, %v1941
      %v1943 = vpop.f32.mrb[0].mxu0
      %v1944 = vpop.f32.mrb[0].mxu0
      %v1945 = vpop.f32.mrb[0].mxu0
      %1946 = vdwg.mxu0
      %v1947 = vsel %vm1087, %v1942, -inf
      %1948 = vmax.xlane.f32.xlu0 %v1947
      %v1949 = vpop.xlane.xlu0 %1948
      %v1950 = vsub.f32 %v1942, %v1949
      %v1951 = vmul.f32 %v1950, 1.442695
      %v1952 = vpow.pop %v1951
      %v1953 = vsel %vm1087, %v1952, 0.0
      %1954 = vadd.xlane.f32.xlu0 %v1953
      %v1955 = vpop.xlane.xlu0 %1954
      %v1956 = vrcp.pop %v1955
      %v1957 = vmul.f32 %v1952, %v1956
      %v1958 = vpack.c.bf16 %v1957, %v1957
      %1959 = vrot.lane.b32.xlu0 %v1781, 88
      %v1960 = vpop.permute.xlu0 %1959
      %v1962 = vsel %vm1087, %v1958, 0
      %v1965 = vsel %vm1151, %v1960, 0
      %1967 = vmatprep.subr.bf16.mxu0 0
      %1968 = vmatpush1.bf16.msra.mxu0 %v1965
      %1969 = vmatprep.subr.bf16.mxu0 0
      %1970 = vmatpush1.bf16.msra.mxu0 0
      %1971 = vmatprep.subr.bf16.mxu0 0
      %1972 = vmatpush1.bf16.msra.mxu0 0
      %1973 = vmatprep.subr.bf16.mxu0 0
      %1974 = vmatpush1.bf16.msra.mxu0 0
      %1975 = vmatprep.subr.bf16.mxu0 0
      %1976 = vmatpush1.bf16.msra.mxu0 0
      %1977 = vmatprep.subr.bf16.mxu0 0
      %1978 = vmatpush1.bf16.msra.mxu0 0
      %1979 = vmatprep.subr.bf16.mxu0 0
      %1980 = vmatpush1.bf16.msra.mxu0 0
      %1981 = vmatprep.subr.bf16.mxu0 0
      %1982 = vmatpush1.bf16.msra.mxu0 0
      %1983 = vmatprep.subr.bf16.mxu0 0
      %1984 = vmatpush1.bf16.msra.mxu0 0
      %1985 = vmatprep.subr.bf16.mxu0 0
      %1986 = vmatpush1.bf16.msra.mxu0 0
      %1987 = vmatprep.subr.bf16.mxu0 0
      %1988 = vmatpush1.bf16.msra.mxu0 0
      %1989 = vmatprep.subr.bf16.mxu0 0
      %1990 = vmatpush1.bf16.msra.mxu0 0
      %1991 = vmatprep.subr.bf16.mxu0 0
      %1992 = vmatpush1.bf16.msra.mxu0 0
      %1993 = vmatprep.subr.bf16.mxu0 0
      %1994 = vmatpush1.bf16.msra.mxu0 0
      %1995 = vmatprep.subr.bf16.mxu0 0
      %1996 = vmatpush1.bf16.msra.mxu0 0
      %1997 = vmatprep.subr.bf16.mxu0 0
      %1998 = vmatpush1.bf16.msra.mxu0 0
      %1999 = vmatprep.mubr.bf16.mxu0 0
      %2000 = vmatmul.mubr.bf16.gmra.mrb[0].mxu0 %v1962
      %v2001 = vpop.f32.mrb[0].mxu0
      %v2002 = vadd.f32 0.0, %v2001
      %v2003 = vpop.f32.mrb[0].mxu0
      %v2004 = vpop.f32.mrb[0].mxu0
      %v2005 = vpop.f32.mrb[0].mxu0
      %2006 = vdwg.mxu0
      %v2007 = vpack.c.bf16 %v2002, %v2002
      %2008 = vrot.lane.b32.xlu0 %v1780, 112
      %v2009 = vpop.permute.xlu0 %2008
      %2010 = vrot.lane.b32.xlu0 %v1781, 112
      %v2011 = vpop.permute.xlu0 %2010
      %v2013 = vsel %vm1087, %v2009, 0
      %v2016 = vsel %vm1087, %v2011, 0
      %2018 = vmatprep.subr.bf16.mxu0 0
      %2019 = vmatpush1.bf16.xpose.msra.mxu0 %v2016
      %2020 = vmatprep.subr.bf16.mxu0 0
      %2021 = vmatpush1.bf16.xpose.msra.mxu0 0
      %2022 = vmatprep.subr.bf16.mxu0 0
      %2023 = vmatpush1.bf16.xpose.msra.mxu0 0
      %2024 = vmatprep.subr.bf16.mxu0 0
      %2025 = vmatpush1.bf16.xpose.msra.mxu0 0
      %2026 = vmatprep.subr.bf16.mxu0 0
      %2027 = vmatpush1.bf16.xpose.msra.mxu0 0
      %2028 = vmatprep.subr.bf16.mxu0 0
      %2029 = vmatpush1.bf16.xpose.msra.mxu0 0
      %2030 = vmatprep.subr.bf16.mxu0 0
      %2031 = vmatpush1.bf16.xpose.msra.mxu0 0
      %2032 = vmatprep.subr.bf16.mxu0 0
      %2033 = vmatpush1.bf16.xpose.msra.mxu0 0
      %2034 = vmatprep.subr.bf16.mxu0 0
      %2035 = vmatpush1.bf16.xpose.msra.mxu0 0
      %2036 = vmatprep.subr.bf16.mxu0 0
      %2037 = vmatpush1.bf16.xpose.msra.mxu0 0
      %2038 = vmatprep.subr.bf16.mxu0 0
      %2039 = vmatpush1.bf16.xpose.msra.mxu0 0
      %2040 = vmatprep.subr.bf16.mxu0 0
      %2041 = vmatpush1.bf16.xpose.msra.mxu0 0
      %2042 = vmatprep.subr.bf16.mxu0 0
      %2043 = vmatpush1.bf16.xpose.msra.mxu0 0
      %2044 = vmatprep.subr.bf16.mxu0 0
      %2045 = vmatpush1.bf16.xpose.msra.mxu0 0
      %2046 = vmatprep.subr.bf16.mxu0 0
      %2047 = vmatpush1.bf16.xpose.msra.mxu0 0
      %2048 = vmatprep.subr.bf16.mxu0 0
      %2049 = vmatpush1.bf16.xpose.msra.mxu0 0
      %2050 = vmatprep.mubr.bf16.mxu0 0
      %2051 = vmatmul.mubr.bf16.gmra.mrb[0].mxu0 %v2013
      %v2052 = vpop.f32.mrb[0].mxu0
      %v2053 = vadd.f32 %v1786, %v2052
      %v2054 = vpop.f32.mrb[0].mxu0
      %v2055 = vpop.f32.mrb[0].mxu0
      %v2056 = vpop.f32.mrb[0].mxu0
      %2057 = vdwg.mxu0
      %v2058 = vsel %vm1087, %v2053, -inf
      %2059 = vmax.xlane.f32.xlu0 %v2058
      %v2060 = vpop.xlane.xlu0 %2059
      %v2061 = vsub.f32 %v2053, %v2060
      %v2062 = vmul.f32 %v2061, 1.442695
      %v2063 = vpow.pop %v2062
      %v2064 = vsel %vm1087, %v2063, 0.0
      %2065 = vadd.xlane.f32.xlu0 %v2064
      %v2066 = vpop.xlane.xlu0 %2065
      %v2067 = vrcp.pop %v2066
      %v2068 = vmul.f32 %v2063, %v2067
      %v2069 = vpack.c.bf16 %v2068, %v2068
      %2070 = vrot.lane.b32.xlu0 %v1781, 80
      %v2071 = vpop.permute.xlu0 %2070
      %v2073 = vsel %vm1087, %v2069, 0
      %v2076 = vsel %vm1151, %v2071, 0
      %2078 = vmatprep.subr.bf16.mxu0 0
      %2079 = vmatpush1.bf16.msra.mxu0 %v2076
      %2080 = vmatprep.subr.bf16.mxu0 0
      %2081 = vmatpush1.bf16.msra.mxu0 0
      %2082 = vmatprep.subr.bf16.mxu0 0
      %2083 = vmatpush1.bf16.msra.mxu0 0
      %2084 = vmatprep.subr.bf16.mxu0 0
      %2085 = vmatpush1.bf16.msra.mxu0 0
      %2086 = vmatprep.subr.bf16.mxu0 0
      %2087 = vmatpush1.bf16.msra.mxu0 0
      %2088 = vmatprep.subr.bf16.mxu0 0
      %2089 = vmatpush1.bf16.msra.mxu0 0
      %2090 = vmatprep.subr.bf16.mxu0 0
      %2091 = vmatpush1.bf16.msra.mxu0 0
      %2092 = vmatprep.subr.bf16.mxu0 0
      %2093 = vmatpush1.bf16.msra.mxu0 0
      %2094 = vmatprep.subr.bf16.mxu0 0
      %2095 = vmatpush1.bf16.msra.mxu0 0
      %2096 = vmatprep.subr.bf16.mxu0 0
      %2097 = vmatpush1.bf16.msra.mxu0 0
      %2098 = vmatprep.subr.bf16.mxu0 0
      %2099 = vmatpush1.bf16.msra.mxu0 0
      %2100 = vmatprep.subr.bf16.mxu0 0
      %2101 = vmatpush1.bf16.msra.mxu0 0
      %2102 = vmatprep.subr.bf16.mxu0 0
      %2103 = vmatpush1.bf16.msra.mxu0 0
      %2104 = vmatprep.subr.bf16.mxu0 0
      %2105 = vmatpush1.bf16.msra.mxu0 0
      %2106 = vmatprep.subr.bf16.mxu0 0
      %2107 = vmatpush1.bf16.msra.mxu0 0
      %2108 = vmatprep.subr.bf16.mxu0 0
      %2109 = vmatpush1.bf16.msra.mxu0 0
      %2110 = vmatprep.mubr.bf16.mxu0 0
      %2111 = vmatmul.mubr.bf16.gmra.mrb[0].mxu0 %v2073
      %v2112 = vpop.f32.mrb[0].mxu0
      %v2113 = vadd.f32 0.0, %v2112
      %v2114 = vpop.f32.mrb[0].mxu0
      %v2115 = vpop.f32.mrb[0].mxu0
      %v2116 = vpop.f32.mrb[0].mxu0
      %2117 = vdwg.mxu0
      %v2118 = vpack.c.bf16 %v2113, %v2113
      %2119 = vrot.lane.b32.xlu0 %v1780, 104
      %v2120 = vpop.permute.xlu0 %2119
      %2121 = vrot.lane.b32.xlu0 %v1781, 104
      %v2122 = vpop.permute.xlu0 %2121
      %v2124 = vsel %vm1087, %v2120, 0
      %v2127 = vsel %vm1087, %v2122, 0
      %2129 = vmatprep.subr.bf16.mxu0 0
      %2130 = vmatpush1.bf16.xpose.msra.mxu0 %v2127
      %2131 = vmatprep.subr.bf16.mxu0 0
      %2132 = vmatpush1.bf16.xpose.msra.mxu0 0
      %2133 = vmatprep.subr.bf16.mxu0 0
      %2134 = vmatpush1.bf16.xpose.msra.mxu0 0
      %2135 = vmatprep.subr.bf16.mxu0 0
      %2136 = vmatpush1.bf16.xpose.msra.mxu0 0
      %2137 = vmatprep.subr.bf16.mxu0 0
      %2138 = vmatpush1.bf16.xpose.msra.mxu0 0
      %2139 = vmatprep.subr.bf16.mxu0 0
      %2140 = vmatpush1.bf16.xpose.msra.mxu0 0
      %2141 = vmatprep.subr.bf16.mxu0 0
      %2142 = vmatpush1.bf16.xpose.msra.mxu0 0
      %2143 = vmatprep.subr.bf16.mxu0 0
      %2144 = vmatpush1.bf16.xpose.msra.mxu0 0
      %2145 = vmatprep.subr.bf16.mxu0 0
      %2146 = vmatpush1.bf16.xpose.msra.mxu0 0
      %2147 = vmatprep.subr.bf16.mxu0 0
      %2148 = vmatpush1.bf16.xpose.msra.mxu0 0
      %2149 = vmatprep.subr.bf16.mxu0 0
      %2150 = vmatpush1.bf16.xpose.msra.mxu0 0
      %2151 = vmatprep.subr.bf16.mxu0 0
      %2152 = vmatpush1.bf16.xpose.msra.mxu0 0
      %2153 = vmatprep.subr.bf16.mxu0 0
      %2154 = vmatpush1.bf16.xpose.msra.mxu0 0
      %2155 = vmatprep.subr.bf16.mxu0 0
      %2156 = vmatpush1.bf16.xpose.msra.mxu0 0
      %2157 = vmatprep.subr.bf16.mxu0 0
      %2158 = vmatpush1.bf16.xpose.msra.mxu0 0
      %2159 = vmatprep.subr.bf16.mxu0 0
      %2160 = vmatpush1.bf16.xpose.msra.mxu0 0
      %2161 = vmatprep.mubr.bf16.mxu0 0
      %2162 = vmatmul.mubr.bf16.gmra.mrb[0].mxu0 %v2124
      %v2163 = vpop.f32.mrb[0].mxu0
      %v2164 = vadd.f32 %v1786, %v2163
      %v2165 = vpop.f32.mrb[0].mxu0
      %v2166 = vpop.f32.mrb[0].mxu0
      %v2167 = vpop.f32.mrb[0].mxu0
      %2168 = vdwg.mxu0
      %v2169 = vsel %vm1087, %v2164, -inf
      %2170 = vmax.xlane.f32.xlu0 %v2169
      %v2171 = vpop.xlane.xlu0 %2170
      %v2172 = vsub.f32 %v2164, %v2171
      %v2173 = vmul.f32 %v2172, 1.442695
      %v2174 = vpow.pop %v2173
      %v2175 = vsel %vm1087, %v2174, 0.0
      %2176 = vadd.xlane.f32.xlu0 %v2175
      %v2177 = vpop.xlane.xlu0 %2176
      %v2178 = vrcp.pop %v2177
      %v2179 = vmul.f32 %v2174, %v2178
      %v2180 = vpack.c.bf16 %v2179, %v2179
      %2181 = vrot.lane.b32.xlu0 %v1781, 72
      %v2182 = vpop.permute.xlu0 %2181
      %v2184 = vsel %vm1087, %v2180, 0
      %v2187 = vsel %vm1151, %v2182, 0
      %2189 = vmatprep.subr.bf16.mxu0 0
      %2190 = vmatpush1.bf16.msra.mxu0 %v2187
      %2191 = vmatprep.subr.bf16.mxu0 0
      %2192 = vmatpush1.bf16.msra.mxu0 0
      %2193 = vmatprep.subr.bf16.mxu0 0
      %2194 = vmatpush1.bf16.msra.mxu0 0
      %2195 = vmatprep.subr.bf16.mxu0 0
      %2196 = vmatpush1.bf16.msra.mxu0 0
      %2197 = vmatprep.subr.bf16.mxu0 0
      %2198 = vmatpush1.bf16.msra.mxu0 0
      %2199 = vmatprep.subr.bf16.mxu0 0
      %2200 = vmatpush1.bf16.msra.mxu0 0
      %2201 = vmatprep.subr.bf16.mxu0 0
      %2202 = vmatpush1.bf16.msra.mxu0 0
      %2203 = vmatprep.subr.bf16.mxu0 0
      %2204 = vmatpush1.bf16.msra.mxu0 0
      %2205 = vmatprep.subr.bf16.mxu0 0
      %2206 = vmatpush1.bf16.msra.mxu0 0
      %2207 = vmatprep.subr.bf16.mxu0 0
      %2208 = vmatpush1.bf16.msra.mxu0 0
      %2209 = vmatprep.subr.bf16.mxu0 0
      %2210 = vmatpush1.bf16.msra.mxu0 0
      %2211 = vmatprep.subr.bf16.mxu0 0
      %2212 = vmatpush1.bf16.msra.mxu0 0
      %2213 = vmatprep.subr.bf16.mxu0 0
      %2214 = vmatpush1.bf16.msra.mxu0 0
      %2215 = vmatprep.subr.bf16.mxu0 0
      %2216 = vmatpush1.bf16.msra.mxu0 0
      %2217 = vmatprep.subr.bf16.mxu0 0
      %2218 = vmatpush1.bf16.msra.mxu0 0
      %2219 = vmatprep.subr.bf16.mxu0 0
      %2220 = vmatpush1.bf16.msra.mxu0 0
      %2221 = vmatprep.mubr.bf16.mxu0 0
      %2222 = vmatmul.mubr.bf16.gmra.mrb[0].mxu0 %v2184
      %v2223 = vpop.f32.mrb[0].mxu0
      %v2224 = vadd.f32 0.0, %v2223
      %v2225 = vpop.f32.mrb[0].mxu0
      %v2226 = vpop.f32.mrb[0].mxu0
      %v2227 = vpop.f32.mrb[0].mxu0
      %2228 = vdwg.mxu0
      %v2229 = vpack.c.bf16 %v2224, %v2224
      %2231 = vrot.lane.b32.xlu0 %v2007, 8
      %v2232 = vpop.permute.xlu0 %2231
      %2234 = vrot.lane.b32.xlu0 %v2118, 16
      %v2235 = vpop.permute.xlu0 %2234
      %2237 = vrot.lane.b32.xlu0 %v2229, 24
      %v2238 = vpop.permute.xlu0 %2237
      %v2241 = vsel %vm1087, %v1895, %v2232
      %v2243 = vsel %vm1542, %v2241, %v2235
      %v2245 = vsel %vm1545, %v2243, %v2238
      %v2246 = vld [vmem:[%s31] sm:$0xf]
      %v2247 = vld [vmem:[%s31 + $0x4] sm:$0xf]
      %v2248 = vld [vmem:[%s31 + $0x8] sm:$0xf]
      %v2249 = vld [vmem:[%s31 + $0xc] sm:$0xf]
      %v2250 = vld [vmem:[%s33] sm:$0x1]
      %v2252 = vlaneseq
      %v2253 = vshrl.u32 %v2252, 7
      %v2254 = vsub.s32 0, %v2253
      %v2255 = vrot.slane %v2250, %v2254
      %v2261 = vunpack.c.l.b16 %v2246
      %v2262 = vunpack.c.l.b16 %v2247
      %v2263 = vunpack.c.l.b16 %v2248
      %v2264 = vunpack.c.l.b16 %v2249
      %v2265 = vpack.c.b16 %v2262, %v2261
      %v2266 = vpack.c.b16 %v2264, %v2263
      %v2269 = vsel %vm1029, %v2245, 0
      %2271 = vmatprep.subr.bf16.mxu0 0
      %2272 = vmatpush1.bf16.msra.mxu0 %v2265
      %2273 = vmatprep.subr.bf16.mxu0 0
      %2274 = vmatpush1.bf16.msra.mxu0 %v2266
      %2275 = vmatprep.subr.bf16.mxu0 0
      %2276 = vmatpush1.bf16.msra.mxu0 0
      %2277 = vmatprep.subr.bf16.mxu0 0
      %2278 = vmatpush1.bf16.msra.mxu0 0
      %2279 = vmatprep.subr.bf16.mxu0 0
      %2280 = vmatpush1.bf16.msra.mxu0 0
      %2281 = vmatprep.subr.bf16.mxu0 0
      %2282 = vmatpush1.bf16.msra.mxu0 0
      %2283 = vmatprep.subr.bf16.mxu0 0
      %2284 = vmatpush1.bf16.msra.mxu0 0
      %2285 = vmatprep.subr.bf16.mxu0 0
      %2286 = vmatpush1.bf16.msra.mxu0 0
      %2287 = vmatprep.subr.bf16.mxu0 0
      %2288 = vmatpush1.bf16.msra.mxu0 0
      %2289 = vmatprep.subr.bf16.mxu0 0
      %2290 = vmatpush1.bf16.msra.mxu0 0
      %2291 = vmatprep.subr.bf16.mxu0 0
      %2292 = vmatpush1.bf16.msra.mxu0 0
      %2293 = vmatprep.subr.bf16.mxu0 0
      %2294 = vmatpush1.bf16.msra.mxu0 0
      %2295 = vmatprep.subr.bf16.mxu0 0
      %2296 = vmatpush1.bf16.msra.mxu0 0
      %2297 = vmatprep.subr.bf16.mxu0 0
      %2298 = vmatpush1.bf16.msra.mxu0 0
      %2299 = vmatprep.subr.bf16.mxu0 0
      %2300 = vmatpush1.bf16.msra.mxu0 0
      %2301 = vmatprep.subr.bf16.mxu0 0
      %2302 = vmatpush1.bf16.msra.mxu0 0
      %2303 = vmatprep.mubr.bf16.mxu0 0
      %2304 = vmatmul.mubr.bf16.gmra.mrb[0].mxu0 %v2269
      %v2305 = vpop.f32.mrb[0].mxu0
      %v2306 = vadd.f32 %v2255, %v2305
      %v2307 = vpop.f32.mrb[0].mxu0
      %v2308 = vpop.f32.mrb[0].mxu0
      %v2309 = vpop.f32.mrb[0].mxu0
      %2310 = vdwg.mxu0
      %v2311 = vadd.f32 %v1643, %v2306
      %v2312 = vsel %vm1029, %v2311, 0.0
      %2313 = vadd.xlane.f32.xlu0 %v2312
      %v2314 = vpop.xlane.xlu0 %2313
      %v2315 = vmul.f32 %v2314, %v1617
      %v2316 = vsub.f32 %v2311, %v2315
      %v2317 = vmul.f32 %v2316, %v2316
      %v2318 = vsel %vm1029, %v2317, 0.0
      %2319 = vadd.xlane.f32.xlu0 %v2318
      %v2320 = vpop.xlane.xlu0 %2319
      %v2321 = vmul.f32 %v2320, %v1617
      %v2322 = vadd.f32 %v2321, 1e-05
      %v2323 = vrsqrt.pop %v2322
      %v2324 = vmul.f32 %v2316, %v2323
      %v2325 = vld [vmem:[%s39] sm:$0x1]
      %v2327 = vlaneseq
      %v2328 = vshrl.u32 %v2327, 7
      %v2329 = vsub.s32 0, %v2328
      %v2330 = vrot.slane %v2325, %v2329
      %v2332 = vmul.f32 %v2324, %v2330
      %v2333 = vld [vmem:[%s41] sm:$0x1]
      %v2335 = vlaneseq
      %v2336 = vshrl.u32 %v2335, 7
      %v2337 = vsub.s32 0, %v2336
      %v2338 = vrot.slane %v2333, %v2337
      %v2340 = vadd.f32 %v2332, %v2338
      %v2341 = vpack.c.bf16 %v2340, %v2340
      %v2342 = vld [vmem:[%s47] sm:$0xf]
      %v2343 = vld [vmem:[%s47 + $0x4] sm:$0xf]
      %v2344 = vld [vmem:[%s47 + $0x8] sm:$0xf]
      %v2345 = vld [vmem:[%s47 + $0xc] sm:$0xf]
      %v2346 = vld [vmem:[%s49] sm:$0x1]
      %v2348 = vlaneseq
      %v2349 = vshrl.u32 %v2348, 7
      %v2350 = vsub.s32 0, %v2349
      %v2351 = vrot.slane %v2346, %v2350
      %v2357 = vunpack.c.l.b16 %v2342
      %v2358 = vunpack.c.l.b16 %v2343
      %v2359 = vunpack.c.l.b16 %v2344
      %v2360 = vunpack.c.l.b16 %v2345
      %v2361 = vpack.c.b16 %v2358, %v2357
      %v2362 = vpack.c.b16 %v2360, %v2359
      %v2366 = vsel %vm1029, %v2341, 0
      %2368 = vmatprep.subr.bf16.mxu0 0
      %2369 = vmatpush1.bf16.msra.mxu0 %v2361
      %2370 = vmatprep.subr.bf16.mxu0 0
      %2371 = vmatpush1.bf16.msra.mxu0 %v2362
      %2372 = vmatprep.subr.bf16.mxu0 0
      %2373 = vmatpush1.bf16.msra.mxu0 0
      %2374 = vmatprep.subr.bf16.mxu0 0
      %2375 = vmatpush1.bf16.msra.mxu0 0
      %2376 = vmatprep.subr.bf16.mxu0 0
      %2377 = vmatpush1.bf16.msra.mxu0 0
      %2378 = vmatprep.subr.bf16.mxu0 0
      %2379 = vmatpush1.bf16.msra.mxu0 0
      %2380 = vmatprep.subr.bf16.mxu0 0
      %2381 = vmatpush1.bf16.msra.mxu0 0
      %2382 = vmatprep.subr.bf16.mxu0 0
      %2383 = vmatpush1.bf16.msra.mxu0 0
      %2384 = vmatprep.subr.bf16.mxu0 0
      %2385 = vmatpush1.bf16.msra.mxu0 0
      %2386 = vmatprep.subr.bf16.mxu0 0
      %2387 = vmatpush1.bf16.msra.mxu0 0
      %2388 = vmatprep.subr.bf16.mxu0 0
      %2389 = vmatpush1.bf16.msra.mxu0 0
      %2390 = vmatprep.subr.bf16.mxu0 0
      %2391 = vmatpush1.bf16.msra.mxu0 0
      %2392 = vmatprep.subr.bf16.mxu0 0
      %2393 = vmatpush1.bf16.msra.mxu0 0
      %2394 = vmatprep.subr.bf16.mxu0 0
      %2395 = vmatpush1.bf16.msra.mxu0 0
      %2396 = vmatprep.subr.bf16.mxu0 0
      %2397 = vmatpush1.bf16.msra.mxu0 0
      %2398 = vmatprep.subr.bf16.mxu0 0
      %2399 = vmatpush1.bf16.msra.mxu0 0
      %2400 = vmatprep.mubr.bf16.mxu0 0
      %2401 = vmatmul.mubr.bf16.gmra.mrb[0].mxu0 %v2366
      %v2402 = vpop.f32.mrb[0].mxu0
      %v2403 = vadd.f32 %v2351, %v2402
      %v2404 = vpop.f32.mrb[0].mxu0
      %v2405 = vpop.f32.mrb[0].mxu0
      %v2406 = vpop.f32.mrb[0].mxu0
      %2407 = vdwg.mxu0
      %v2408 = vmax.f32 %v2403, 0.0
      %v2409 = vpack.c.bf16 %v2408, %v2408
      %v2410 = vld [vmem:[%s51] sm:$0xf]
      %v2411 = vld [vmem:[%s51 + $0x4] sm:$0xf]
      %v2412 = vld [vmem:[%s51 + $0x8] sm:$0xf]
      %v2413 = vld [vmem:[%s51 + $0xc] sm:$0xf]
      %v2414 = vld [vmem:[%s51 + $0x10] sm:$0xf]
      %v2415 = vld [vmem:[%s51 + $0x14] sm:$0xf]
      %v2416 = vld [vmem:[%s51 + $0x18] sm:$0xf]
      %v2417 = vld [vmem:[%s51 + $0x1c] sm:$0xf]
      %v2418 = vld [vmem:[%s53] sm:$0x1]
      %v2420 = vlaneseq
      %v2421 = vshrl.u32 %v2420, 7
      %v2422 = vsub.s32 0, %v2421
      %v2423 = vrot.slane %v2418, %v2422
      %v2433 = vunpack.c.l.b16 %v2410
      %v2434 = vunpack.c.l.b16 %v2411
      %v2435 = vunpack.c.l.b16 %v2412
      %v2436 = vunpack.c.l.b16 %v2413
      %v2437 = vunpack.c.l.b16 %v2414
      %v2438 = vunpack.c.l.b16 %v2415
      %v2439 = vunpack.c.l.b16 %v2416
      %v2440 = vunpack.c.l.b16 %v2417
      %v2441 = vpack.c.b16 %v2434, %v2433
      %v2442 = vpack.c.b16 %v2436, %v2435
      %v2443 = vpack.c.b16 %v2438, %v2437
      %v2444 = vpack.c.b16 %v2440, %v2439
      %vm2449 = vcmask 523264
      %v2451 = vsel %vm2449, %v2409, 0
      %2453 = vmatprep.subr.bf16.mxu0 0
      %2454 = vmatpush1.bf16.msra.mxu0 %v2441
      %2455 = vmatprep.subr.bf16.mxu0 0
      %2456 = vmatpush1.bf16.msra.mxu0 %v2442
      %2457 = vmatprep.subr.bf16.mxu0 0
      %2458 = vmatpush1.bf16.msra.mxu0 %v2443
      %2459 = vmatprep.subr.bf16.mxu0 0
      %2460 = vmatpush1.bf16.msra.mxu0 %v2444
      %2461 = vmatprep.subr.bf16.mxu0 0
      %2462 = vmatpush1.bf16.msra.mxu0 0
      %2463 = vmatprep.subr.bf16.mxu0 0
      %2464 = vmatpush1.bf16.msra.mxu0 0
      %2465 = vmatprep.subr.bf16.mxu0 0
      %2466 = vmatpush1.bf16.msra.mxu0 0
      %2467 = vmatprep.subr.bf16.mxu0 0
      %2468 = vmatpush1.bf16.msra.mxu0 0
      %2469 = vmatprep.subr.bf16.mxu0 0
      %2470 = vmatpush1.bf16.msra.mxu0 0
      %2471 = vmatprep.subr.bf16.mxu0 0
      %2472 = vmatpush1.bf16.msra.mxu0 0
      %2473 = vmatprep.subr.bf16.mxu0 0
      %2474 = vmatpush1.bf16.msra.mxu0 0
      %2475 = vmatprep.subr.bf16.mxu0 0
      %2476 = vmatpush1.bf16.msra.mxu0 0
      %2477 = vmatprep.subr.bf16.mxu0 0
      %2478 = vmatpush1.bf16.msra.mxu0 0
      %2479 = vmatprep.subr.bf16.mxu0 0
      %2480 = vmatpush1.bf16.msra.mxu0 0
      %2481 = vmatprep.subr.bf16.mxu0 0
      %2482 = vmatpush1.bf16.msra.mxu0 0
      %2483 = vmatprep.subr.bf16.mxu0 0
      %2484 = vmatpush1.bf16.msra.mxu0 0
      %2485 = vmatprep.mubr.bf16.mxu0 0
      %2486 = vmatmul.mubr.bf16.gmra.mrb[0].mxu0 %v2451
      %v2487 = vpop.f32.mrb[0].mxu0
      %v2488 = vadd.f32 %v2423, %v2487
      %v2489 = vpop.f32.mrb[0].mxu0
      %v2490 = vpop.f32.mrb[0].mxu0
      %v2491 = vpop.f32.mrb[0].mxu0
      %2492 = vdwg.mxu0
      %v2493 = vadd.f32 %v2340, %v2488
      %v2494 = vsel %vm1029, %v2493, 0.0
      %2495 = vadd.xlane.f32.xlu0 %v2494
      %v2496 = vpop.xlane.xlu0 %2495
      %v2497 = vmul.f32 %v2496, %v1617
      %v2498 = vsub.f32 %v2493, %v2497
      %v2499 = vmul.f32 %v2498, %v2498
      %v2500 = vsel %vm1029, %v2499, 0.0
      %2501 = vadd.xlane.f32.xlu0 %v2500
      %v2502 = vpop.xlane.xlu0 %2501
      %v2503 = vmul.f32 %v2502, %v1617
      %v2504 = vadd.f32 %v2503, 1e-05
      %v2505 = vrsqrt.pop %v2504
      %v2506 = vmul.f32 %v2498, %v2505
      %v2507 = vld [vmem:[%s43] sm:$0x1]
      %v2509 = vlaneseq
      %v2510 = vshrl.u32 %v2509, 7
      %v2511 = vsub.s32 0, %v2510
      %v2512 = vrot.slane %v2507, %v2511
      %v2514 = vmul.f32 %v2506, %v2512
      %v2515 = vld [vmem:[%s45] sm:$0x1]
      %v2517 = vlaneseq
      %v2518 = vshrl.u32 %v2517, 7
      %v2519 = vsub.s32 0, %v2518
      %v2520 = vrot.slane %v2515, %v2519
      %v2522 = vadd.f32 %v2514, %v2520
      %v2523 = vpack.c.bf16 %v2522, %v2522
      %v2525 = vsel %vm1029, %v2523, 0
      %2527 = vmatprep.subr.bf16.mxu0 0
      %2528 = vmatpush1.bf16.xpose.msra.mxu0 %v1736
      %2529 = vmatprep.subr.bf16.mxu0 0
      %2530 = vmatpush1.bf16.xpose.msra.mxu0 0
      %2531 = vmatprep.subr.bf16.mxu0 0
      %2532 = vmatpush1.bf16.xpose.msra.mxu0 0
      %2533 = vmatprep.subr.bf16.mxu0 0
      %2534 = vmatpush1.bf16.xpose.msra.mxu0 0
      %2535 = vmatprep.subr.bf16.mxu0 0
      %2536 = vmatpush1.bf16.xpose.msra.mxu0 0
      %2537 = vmatprep.subr.bf16.mxu0 0
      %2538 = vmatpush1.bf16.xpose.msra.mxu0 0
      %2539 = vmatprep.subr.bf16.mxu0 0
      %2540 = vmatpush1.bf16.xpose.msra.mxu0 0
      %2541 = vmatprep.subr.bf16.mxu0 0
      %2542 = vmatpush1.bf16.xpose.msra.mxu0 0
      %2543 = vmatprep.subr.bf16.mxu0 0
      %2544 = vmatpush1.bf16.xpose.msra.mxu0 0
      %2545 = vmatprep.subr.bf16.mxu0 0
      %2546 = vmatpush1.bf16.xpose.msra.mxu0 0
      %2547 = vmatprep.subr.bf16.mxu0 0
      %2548 = vmatpush1.bf16.xpose.msra.mxu0 0
      %2549 = vmatprep.subr.bf16.mxu0 0
      %2550 = vmatpush1.bf16.xpose.msra.mxu0 0
      %2551 = vmatprep.subr.bf16.mxu0 0
      %2552 = vmatpush1.bf16.xpose.msra.mxu0 0
      %2553 = vmatprep.subr.bf16.mxu0 0
      %2554 = vmatpush1.bf16.xpose.msra.mxu0 0
      %2555 = vmatprep.subr.bf16.mxu0 0
      %2556 = vmatpush1.bf16.xpose.msra.mxu0 0
      %2557 = vmatprep.subr.bf16.mxu0 0
      %2558 = vmatpush1.bf16.xpose.msra.mxu0 0
      %2559 = vmatprep.mubr.bf16.mxu0 0
      %2560 = vmatmul.mubr.bf16.gmra.mrb[0].mxu0 %v2525
      %v2561 = vpop.f32.mrb[0].mxu0
      %v2562 = vadd.f32 0.0, %v2561
      %v2563 = vpop.f32.mrb[0].mxu0
      %v2564 = vpop.f32.mrb[0].mxu0
      %v2565 = vpop.f32.mrb[0].mxu0
      %2566 = vdwg.mxu0
      %v2568 = vlaneseq
      %v2569 = vshrl.u32 %v2568, 7
      %v2570 = vsub.s32 0, %v2569
      %v2571 = vrot.slane %v983, %v2570
      %v2573 = vmul.f32 %v2562, %v2571
      %v2574 = vld [vmem:[%s13] sm:$0xf]
      %v2575 = vld [vmem:[%s13 + $0x4] sm:$0xf]
      %v2576 = vld [vmem:[%s13 + $0x8] sm:$0xf]
      %v2577 = vld [vmem:[%s13 + $0xc] sm:$0xf]
      %v2582 = vunpack.c.l.b16 %v2574
      %v2583 = vunpack.c.l.b16 %v2575
      %v2584 = vunpack.c.l.b16 %v2576
      %v2585 = vunpack.c.l.b16 %v2577
      %v2586 = vpack.c.b16 %v2583, %v2582
      %v2587 = vpack.c.b16 %v2585, %v2584
      %2590 = vmatprep.subr.bf16.mxu0 0
      %2591 = vmatpush1.bf16.msra.mxu0 %v2586
      %2592 = vmatprep.subr.bf16.mxu0 0
      %2593 = vmatpush1.bf16.msra.mxu0 %v2587
      %2594 = vmatprep.subr.bf16.mxu0 0
      %2595 = vmatpush1.bf16.msra.mxu0 0
      %2596 = vmatprep.subr.bf16.mxu0 0
      %2597 = vmatpush1.bf16.msra.mxu0 0
      %2598 = vmatprep.subr.bf16.mxu0 0
      %2599 = vmatpush1.bf16.msra.mxu0 0
      %2600 = vmatprep.subr.bf16.mxu0 0
      %2601 = vmatpush1.bf16.msra.mxu0 0
      %2602 = vmatprep.subr.bf16.mxu0 0
      %2603 = vmatpush1.bf16.msra.mxu0 0
      %2604 = vmatprep.subr.bf16.mxu0 0
      %2605 = vmatpush1.bf16.msra.mxu0 0
      %2606 = vmatprep.subr.bf16.mxu0 0
      %2607 = vmatpush1.bf16.msra.mxu0 0
      %2608 = vmatprep.subr.bf16.mxu0 0
      %2609 = vmatpush1.bf16.msra.mxu0 0
      %2610 = vmatprep.subr.bf16.mxu0 0
      %2611 = vmatpush1.bf16.msra.mxu0 0
      %2612 = vmatprep.subr.bf16.mxu0 0
      %2613 = vmatpush1.bf16.msra.mxu0 0
      %2614 = vmatprep.subr.bf16.mxu0 0
      %2615 = vmatpush1.bf16.msra.mxu0 0
      %2616 = vmatprep.subr.bf16.mxu0 0
      %2617 = vmatpush1.bf16.msra.mxu0 0
      %2618 = vmatprep.subr.bf16.mxu0 0
      %2619 = vmatpush1.bf16.msra.mxu0 0
      %2620 = vmatprep.subr.bf16.mxu0 0
      %2621 = vmatpush1.bf16.msra.mxu0 0
      %2622 = vmatprep.mubr.bf16.mxu0 0
      %2623 = vmatmul.mubr.bf16.gmra.mrb[0].mxu0 %v2525
      %v2624 = vpop.f32.mrb[0].mxu0
      %v2625 = vadd.f32 0.0, %v2624
      %v2626 = vpop.f32.mrb[0].mxu0
      %v2627 = vpop.f32.mrb[0].mxu0
      %v2628 = vpop.f32.mrb[0].mxu0
      %2629 = vdwg.mxu0
      %2631 = vrot.lane.b32.xlu0 %v2625, 8
      %v2632 = vpop.permute.xlu0 %2631
      %v2634 = vsel %vm1087, %v2573, %v2632
      %vm2635 = vcmask 113664
      %v2636 = vsel %vm2635, %v2634, 0.0
      %2637 = vst [vmem:[%s976] sm:$0xff] %v2636
      %v2638 = vsel %vm1087, %v2573, -inf
      %2639 = vmax.xlane.f32.xlu0 %v2638
      %v2640 = vpop.xlane.xlu0 %2639
      %vm2641 = vcmask 48128
      %v2642 = vsel %vm2641, %v2625, -inf
      %2643 = vmax.xlane.f32.xlu0 %v2642
      %v2644 = vpop.xlane.xlu0 %2643
      %v2645 = vmax.f32 %v2640, %v2644
      %v2646 = vmax.f32 %v2645, 0.0
      %v2647 = vsub.f32 0.0, %v2646
      %v2648 = vmul.f32 %v2647, 1.442695
      %v2649 = vpow.pop %v2648
      %v2650 = vmul.f32 %v2649, 58.0
      %v2651 = vsub.f32 %v2573, %v2646
      %v2652 = vmul.f32 %v2651, 1.442695
      %v2653 = vpow.pop %v2652
      %v2654 = vsel %vm1087, %v2653, 0.0
      %2655 = vadd.xlane.f32.xlu0 %v2654
      %v2656 = vpop.xlane.xlu0 %2655
      %v2657 = vadd.f32 %v2650, %v2656
      %v2658 = vsub.f32 %v2625, %v2646
      %v2659 = vmul.f32 %v2658, 1.442695
      %v2660 = vpow.pop %v2659
      %v2661 = vsel %vm2641, %v2660, 0.0
      %2662 = vadd.xlane.f32.xlu0 %v2661
      %v2663 = vpop.xlane.xlu0 %2662
      %v2664 = vadd.f32 %v2657, %v2663
      %v2665 = vlog2.pop %v2664
      %v2666 = vmul.f32 %v2665, 0.6931472
      %v2667 = vadd.f32 %v2646, %v2666
      %v2668 = vlaneseq
      %v2669 = vand.u32 %v2668, 127
      %v2670 = vsub.s32 %v981, 2
      %2671 = vset.pattern.permute.xlu0 0
      %2672 = vperm.xlu0 %2671, %v2670
      %v2673 = vpop.permute.xlu0 %2672
      %vm2674 = vcmp.eq.s32.totalorder %v2669, %v2673
      %v2675 = vsel %vm2674, %v2573, 0.0
      %v2676 = vsel %vm1087, %v2675, 0.0
      %2677 = vadd.xlane.f32.xlu0 %v2676
      %v2678 = vpop.xlane.xlu0 %2677
      %v2679 = vsub.s32 %v981, 66
      %2680 = vset.pattern.permute.xlu0 0
      %2681 = vperm.xlu0 %2680, %v2679
      %v2682 = vpop.permute.xlu0 %2681
      %vm2683 = vcmp.eq.s32.totalorder %v2669, %v2682
      %v2684 = vsel %vm2683, %v2625, 0.0
      %v2685 = vsel %vm2641, %v2684, 0.0
      %2686 = vadd.xlane.f32.xlu0 %v2685
      %v2687 = vpop.xlane.xlu0 %2686
      %v2688 = vadd.f32 %v2678, %v2687
      %vm2689 = vcmp.ne.s32.totalorder %v981, 0
      %v2690 = vsel %vm2689, 1, 0
      %v2691 = vcvt.s32.f32 %v2690
      %v2692 = vsub.f32 %v2667, %v2688
      %v2693 = vmul.f32 %v2692, %v2691
      %vm2694 = vcmask 7168
      %v2695 = vsel %vm2694, %v2693, 0.0
      %2696 = vadd.xlane.f32.xlu0 %v2695
      %v2697 = vpop.xlane.xlu0 %2696
      %v2698 = vrot.slane %v2697, 4
      %v2699 = vadd.f32 %v2697, %v2698
      %v2700 = vrot.slane %v2699, 2
      %v2701 = vadd.f32 %v2699, %v2700
      %v2702 = vrot.slane %v2701, 1
      %v2703 = vadd.f32 %v2701, %v2702
      %s2704 = vtos %v2703
      %v2705 = vsel %vm2694, %v2691, 0.0
      %2706 = vadd.xlane.f32.xlu0 %v2705
      %v2707 = vpop.xlane.xlu0 %2706
      %v2708 = vrot.slane %v2707, 4
      %v2709 = vadd.f32 %v2707, %v2708
      %v2710 = vrot.slane %v2709, 2
      %v2711 = vadd.f32 %v2709, %v2710
      %v2712 = vrot.slane %v2711, 1
      %v2713 = vadd.f32 %v2711, %v2712
      %s2714 = vtos %v2713
      %vm2715 = vcmask 57344
      %v2716 = vsel %vm2715, %v983, 0.0
      %2717 = vadd.xlane.f32.xlu0 %v2716
      %v2718 = vpop.xlane.xlu0 %2717
      %v2719 = vrot.slane %v2718, 4
      %v2720 = vadd.f32 %v2718, %v2719
      %v2721 = vrot.slane %v2720, 2
      %v2722 = vadd.f32 %v2720, %v2721
      %v2723 = vrot.slane %v2722, 1
      %v2724 = vadd.f32 %v2722, %v2723
      %s2725 = vtos %v2724
      %s2726 = smax.f32 %s2725, 1e-09
      %v2727 = vpack.c.bf16 %v983, %v983
      %v2729 = vsel %vm1087, %v2727, 0
      %v2731 = vsel %vm1151, %v984, 0
      %2733 = vmatprep.subr.bf16.mxu0 0
      %2734 = vmatpush1.bf16.msra.mxu0 %v2731
      %2735 = vmatprep.subr.bf16.mxu0 0
      %2736 = vmatpush1.bf16.msra.mxu0 0
      %2737 = vmatprep.subr.bf16.mxu0 0
      %2738 = vmatpush1.bf16.msra.mxu0 0
      %2739 = vmatprep.subr.bf16.mxu0 0
      %2740 = vmatpush1.bf16.msra.mxu0 0
      %2741 = vmatprep.subr.bf16.mxu0 0
      %2742 = vmatpush1.bf16.msra.mxu0 0
      %2743 = vmatprep.subr.bf16.mxu0 0
      %2744 = vmatpush1.bf16.msra.mxu0 0
      %2745 = vmatprep.subr.bf16.mxu0 0
      %2746 = vmatpush1.bf16.msra.mxu0 0
      %2747 = vmatprep.subr.bf16.mxu0 0
      %2748 = vmatpush1.bf16.msra.mxu0 0
      %2749 = vmatprep.subr.bf16.mxu0 0
      %2750 = vmatpush1.bf16.msra.mxu0 0
      %2751 = vmatprep.subr.bf16.mxu0 0
      %2752 = vmatpush1.bf16.msra.mxu0 0
      %2753 = vmatprep.subr.bf16.mxu0 0
      %2754 = vmatpush1.bf16.msra.mxu0 0
      %2755 = vmatprep.subr.bf16.mxu0 0
      %2756 = vmatpush1.bf16.msra.mxu0 0
      %2757 = vmatprep.subr.bf16.mxu0 0
      %2758 = vmatpush1.bf16.msra.mxu0 0
      %2759 = vmatprep.subr.bf16.mxu0 0
      %2760 = vmatpush1.bf16.msra.mxu0 0
      %2761 = vmatprep.subr.bf16.mxu0 0
      %2762 = vmatpush1.bf16.msra.mxu0 0
      %2763 = vmatprep.subr.bf16.mxu0 0
      %2764 = vmatpush1.bf16.msra.mxu0 0
      %2765 = vmatprep.mubr.bf16.mxu0 0
      %2766 = vmatmul.mubr.bf16.gmra.mrb[0].mxu0 %v2729
      %v2767 = vpop.f32.mrb[0].mxu0
      %v2768 = vadd.f32 0.0, %v2767
      %v2769 = vpop.f32.mrb[0].mxu0
      %v2770 = vpop.f32.mrb[0].mxu0
      %v2771 = vpop.f32.mrb[0].mxu0
      %2772 = vdwg.mxu0
      %v2773 = vstv %s2726
      %v2774 = vrcp.pop %v2773
      %v2775 = vmul.f32 %v2768, %v2774
      %v2776 = vpack.c.bf16 %v2775, %v2775
      %v2777 = vld [vmem:[%s55] sm:$0xf]
      %v2778 = vld [vmem:[%s55 + $0x4] sm:$0xf]
      %v2779 = vld [vmem:[%s55 + $0x8] sm:$0xf]
      %v2780 = vld [vmem:[%s55 + $0xc] sm:$0xf]
      %v2781 = vld [vmem:[%s57] sm:$0x1]
      %v2786 = vunpack.c.l.b16 %v2777
      %v2787 = vunpack.c.l.b16 %v2778
      %v2788 = vunpack.c.l.b16 %v2779
      %v2789 = vunpack.c.l.b16 %v2780
      %v2790 = vpack.c.b16 %v2787, %v2786
      %v2791 = vpack.c.b16 %v2789, %v2788
      %v2795 = vsel %vm1029, %v2776, 0
      %2797 = vmatprep.subr.bf16.mxu0 0
      %2798 = vmatpush1.bf16.msra.mxu0 %v2790
      %2799 = vmatprep.subr.bf16.mxu0 0
      %2800 = vmatpush1.bf16.msra.mxu0 %v2791
      %2801 = vmatprep.subr.bf16.mxu0 0
      %2802 = vmatpush1.bf16.msra.mxu0 0
      %2803 = vmatprep.subr.bf16.mxu0 0
      %2804 = vmatpush1.bf16.msra.mxu0 0
      %2805 = vmatprep.subr.bf16.mxu0 0
      %2806 = vmatpush1.bf16.msra.mxu0 0
      %2807 = vmatprep.subr.bf16.mxu0 0
      %2808 = vmatpush1.bf16.msra.mxu0 0
      %2809 = vmatprep.subr.bf16.mxu0 0
      %2810 = vmatpush1.bf16.msra.mxu0 0
      %2811 = vmatprep.subr.bf16.mxu0 0
      %2812 = vmatpush1.bf16.msra.mxu0 0
      %2813 = vmatprep.subr.bf16.mxu0 0
      %2814 = vmatpush1.bf16.msra.mxu0 0
      %2815 = vmatprep.subr.bf16.mxu0 0
      %2816 = vmatpush1.bf16.msra.mxu0 0
      %2817 = vmatprep.subr.bf16.mxu0 0
      %2818 = vmatpush1.bf16.msra.mxu0 0
      %2819 = vmatprep.subr.bf16.mxu0 0
      %2820 = vmatpush1.bf16.msra.mxu0 0
      %2821 = vmatprep.subr.bf16.mxu0 0
      %2822 = vmatpush1.bf16.msra.mxu0 0
      %2823 = vmatprep.subr.bf16.mxu0 0
      %2824 = vmatpush1.bf16.msra.mxu0 0
      %2825 = vmatprep.subr.bf16.mxu0 0
      %2826 = vmatpush1.bf16.msra.mxu0 0
      %2827 = vmatprep.subr.bf16.mxu0 0
      %2828 = vmatpush1.bf16.msra.mxu0 0
      %2829 = vmatprep.mubr.bf16.mxu0 0
      %2830 = vmatmul.mubr.bf16.gmra.mrb[0].mxu0 %v2795
      %v2831 = vpop.f32.mrb[0].mxu0
      %v2832 = vadd.f32 %v2781, %v2831
      %v2833 = vpop.f32.mrb[0].mxu0
      %v2834 = vpop.f32.mrb[0].mxu0
      %v2835 = vpop.f32.mrb[0].mxu0
      %2836 = vdwg.mxu0
      %v2837 = vsel %vm2694, %v988, 0
      %v2838 = vand.u32 %v2837, 65535
      %v2839 = vshrl.u32 %v2837, 16
      %v2840 = vcvt.s32.f32 %v2838
      %v2841 = vcvt.s32.f32 %v2839
      %2842 = vadd.xlane.f32.xlu0 %v2840
      %v2843 = vpop.xlane.xlu0 %2842
      %2844 = vadd.xlane.f32.xlu0 %v2841
      %v2845 = vpop.xlane.xlu0 %2844
      %v2846 = vcvt.f32.s32 %v2843
      %v2847 = vcvt.f32.s32 %v2845
      %v2848 = vshll.u32 %v2847, 16
      %v2849 = vadd.s32 %v2848, %v2846
      %v2850 = vrot.slane %v2849, 4
      %v2851 = vadd.s32 %v2849, %v2850
      %v2852 = vrot.slane %v2851, 2
      %v2853 = vadd.s32 %v2851, %v2852
      %v2854 = vrot.slane %v2853, 1
      %v2855 = vadd.s32 %v2853, %v2854
      %s2856 = vtos %v2855
      %vm2857 = vcmask 483328
      %v2858 = vsel %vm2857, %v2832, -inf
      %2859 = vmax.xlane.f32.xlu0 %v2858
      %v2860 = vpop.xlane.xlu0 %2859
      %v2861 = vrot.slane %v2860, 4
      %v2862 = vmax.f32 %v2860, %v2861
      %v2863 = vrot.slane %v2862, 2
      %v2864 = vmax.f32 %v2862, %v2863
      %v2865 = vrot.slane %v2864, 1
      %v2866 = vmax.f32 %v2864, %v2865
      %s2867 = vtos %v2866
      %v2868 = vstv %s2867
      %v2869 = vsub.f32 %v2832, %v2868
      %v2870 = vmul.f32 %v2869, 1.442695
      %v2871 = vpow.pop %v2870
      %v2872 = vsel %vm2857, %v2871, 0.0
      %2873 = vadd.xlane.f32.xlu0 %v2872
      %v2874 = vpop.xlane.xlu0 %2873
      %v2875 = vrot.slane %v2874, 4
      %v2876 = vadd.f32 %v2874, %v2875
      %v2877 = vrot.slane %v2876, 2
      %v2878 = vadd.f32 %v2876, %v2877
      %v2879 = vrot.slane %v2878, 1
      %v2880 = vadd.f32 %v2878, %v2879
      %s2881 = vtos %v2880
      %v2882 = vstv %s2881
      %v2883 = vlog2.pop %v2882
      %v2884 = vmul.f32 %v2883, 0.6931472
      %s2885 = vtos %v2884
      %s2886 = sadd.f32 %s2867, %s2885
      %v2887 = vstv %s2856
      %vm2888 = vcmp.eq.s32.totalorder %v2669, %v2887
      %v2889 = vsel %vm2888, %v2832, 0.0
      %v2890 = vsel %vm2857, %v2889, 0.0
      %2891 = vadd.xlane.f32.xlu0 %v2890
      %v2892 = vpop.xlane.xlu0 %2891
      %v2893 = vrot.slane %v2892, 4
      %v2894 = vadd.f32 %v2892, %v2893
      %v2895 = vrot.slane %v2894, 2
      %v2896 = vadd.f32 %v2894, %v2895
      %v2897 = vrot.slane %v2896, 1
      %v2898 = vadd.f32 %v2896, %v2897
      %s2899 = vtos %v2898
      %p2900 = scmp.ne.s32.totalorder %s2856, 0
      %s2901 = scalar_select %p2900, 1, 0
      %s2902 = scvt.s32.f32 %s2901
      %s2903 = ssub.f32 %s2886, %s2899
      %s2904 = smul.f32 %s2903, %s2902
      %vm2905 = vcmp.eq.s32.totalorder %v2669, 0
      %v2906 = vstv %s2704
      %v2907 = vsel %vm2905, %v2906, 0.0
      %vm2908 = vcmp.eq.s32.totalorder %v2669, 1
      %v2909 = vstv %s2714
      %v2910 = vsel %vm2908, %v2909, 0.0
      %v2911 = vadd.f32 %v2907, %v2910
      %vm2912 = vcmp.eq.s32.totalorder %v2669, 2
      %v2913 = vstv %s2904
      %v2914 = vsel %vm2912, %v2913, 0.0
      %v2915 = vadd.f32 %v2911, %v2914
      %vm2916 = vcmp.eq.s32.totalorder %v2669, 3
      %v2917 = vstv %s2902
      %v2918 = vsel %vm2916, %v2917, 0.0
      %v2919 = vadd.f32 %v2915, %v2918
      %2920 = vst [vmem:[%s979] sm:$0x1] %v2919
      %p2921 = scmp.lt.s32.totalorder %s73, 1
      %s2922 = scalar_select %p2921, %s73, 1
      %s2923 = smul.addr %s2922, 8
      %s2924 = scalar_lea.vmem %s59, %s2923
      %p2925 = scmp.lt.s32.totalorder %s73, 1
      %s2926 = scalar_select %p2925, %s73, 1
      %s2927 = scalar_lea.vmem %s61, %s2926
      // Predicated region
      $region137: #{custom_seq2seq_forward.3} parent=135 // pred_check
        %p2928 = pneg %p720
      $region138: #{custom_seq2seq_forward.3} parent=135 // pred_check_branch
        %2930 = sbr.rel (%p2928) target = $region140
      $region139: #{custom_seq2seq_forward.3} parent=135 // pred_region
        _
      $region140: #{custom_seq2seq_forward.3} parent=135 // pred_fallthru
        _
      // Predicated region
      $region141: #{custom_seq2seq_forward.3} parent=135 // pred_check
        %p2931 = pneg %p746
      $region142: #{custom_seq2seq_forward.3} parent=135 // pred_check_branch
        %2933 = sbr.rel (%p2931) target = $region144
      $region143: #{custom_seq2seq_forward.3} parent=135 // pred_region
        _
      $region144: #{custom_seq2seq_forward.3} parent=135 // pred_fallthru
        _
    $region136: #{custom_seq2seq_forward.3} parent=5 // pred_fallthru
      _
    %p2934 = scmp.le.s32.totalorder 2, %s68
    // Predicated region
    $region145: #{custom_seq2seq_forward.3} parent=5 // pred_check
      %p2935 = pneg %p2934
    $region146: #{custom_seq2seq_forward.3} parent=5 // pred_check_branch
      %2937 = sbr.rel (%p2935) target = $region148
    $region147: #{custom_seq2seq_forward.3} parent=5 // pred_region
      %s2938 = ssub.s32 %s68, 2
      // Predicated region
      $region149: #{custom_seq2seq_forward.3} parent=147 // pred_check
        %p2939 = pneg %p726
      $region150: #{custom_seq2seq_forward.3} parent=147 // pred_check_branch
        %2941 = sbr.rel (%p2939) target = $region152
      $region151: #{custom_seq2seq_forward.3} parent=147 // pred_region
        %p2942 = scmp.lt.s32.totalorder %s74, 1
        %s2943 = scalar_select %p2942, %s74, 1
        %s2944 = smul.addr %s2943, 8
        %s2945 = scalar_lea.vmem %s59, %s2944
      $region152: #{custom_seq2seq_forward.3} parent=147 // pred_fallthru
        _
      // Predicated region
      $region153: #{custom_seq2seq_forward.3} parent=147 // pred_check
        %p2946 = pneg %p752
      $region154: #{custom_seq2seq_forward.3} parent=147 // pred_check_branch
        %2948 = sbr.rel (%p2946) target = $region156
      $region155: #{custom_seq2seq_forward.3} parent=147 // pred_region
        %p2949 = scmp.lt.s32.totalorder %s74, 1
        %s2950 = scalar_select %p2949, %s74, 1
        %s2951 = scalar_lea.vmem %s61, %s2950
      $region156: #{custom_seq2seq_forward.3} parent=147 // pred_fallthru
        _
    $region148: #{custom_seq2seq_forward.3} parent=5 // pred_fallthru
      _
  $region6: #{custom_seq2seq_forward.3} parent=0 // loop_footer
    %s72 = sadd.s32 1, %s68
  $region7: #{custom_seq2seq_forward.3} parent=0 // loop_footer_branch
    %67 = sbr.rel target = $region3
  $region8: #{custom_seq2seq_forward.3} parent=0 // loop_exit
    _

</llo_original>
